<compile_context>
chip_gen: v7x
topology: tpu7x:2x2x1
jax: 0.10.0
libtpu: 0.0.40
codegen_flags: <defaults>
</compile_context>

<pallas_src>
import functools
import math

import jax
import jax.numpy as jnp
from jax.experimental import pallas as pl
from jax.experimental.pallas import tpu as pltpu

# ----------------------------- configuration (small, BERT-like) --------------
BATCH = 2
SEQ = 16
HIDDEN = 128          # bert.config.hidden_size (scaled down from 768)
N_HEADS = 4
HEAD_DIM = HIDDEN // N_HEADS
INTERMEDIATE = 256
N_LAYERS = 2
VOCAB = 64
MAX_POS = 64
NUM_LABELS = 24
CLS_HIDDEN = 128      # torch.nn.Linear(hidden_size, 128)
LN_EPS = 1e-12
DTYPE = jnp.float32
MXU_DTYPE = jnp.bfloat16   # MXU operand dtype (accumulation stays f32)


# ----------------------------- fused forward kernel --------------------------
def _fused_forward_kernel(
    x_ref, bias_ref, embg_ref, embb_ref,
    qkvw_ref, qkvb_ref, wo_ref, bo_ref, ln1g_ref, ln1b_ref,
    wi_ref, bi_ref, wo2_ref, bo2_ref, ln2g_ref, ln2b_ref,
    w1_ref, b1_ref, w2_ref, b2_ref,
    o_ref,
):
    """One grid step = full forward for one batch element.

    x_ref    : (1, S, H)  summed token+pos+type embeddings (pre-LayerNorm)
    bias_ref : (1, 1, S)  additive attention bias = (1 - mask) * -10000
    per-layer weights stacked along a leading N_LAYERS axis (bf16 for matmuls)
    o_ref    : (1, 1, NUM_LABELS) logits for this batch element
    """
    scale = 1.0 / math.sqrt(HEAD_DIM)

    def layer_norm(v, g, b):
        mean = jnp.mean(v, axis=-1, keepdims=True)
        var = jnp.mean((v - mean) ** 2, axis=-1, keepdims=True)
        return (v - mean) * jax.lax.rsqrt(var + LN_EPS) * g + b

    def mxu_dot(a, w_bf16):
        # bf16 operands for the MXU (weights already bf16), f32 accumulation.
        return jnp.dot(a.astype(MXU_DTYPE), w_bf16,
                       preferred_element_type=jnp.float32)

    def split_heads(mat, base):
        # (S, 3H) f32 slice -> (N_HEADS, S, HEAD_DIM) bf16
        return jnp.stack(
            [mat[:, base + h * HEAD_DIM: base + (h + 1) * HEAD_DIM]
             for h in range(N_HEADS)], axis=0).astype(MXU_DTYPE)

    # ---- embeddings LayerNorm ----
    x = layer_norm(x_ref[0], embg_ref[...], embb_ref[...])          # (S, H) f32
    bias_b = bias_ref[0]                                            # (1, S) f32

    # ---- encoder layers (statically unrolled; weights indexed per layer) ----
    for l in range(N_LAYERS):
        # Fused QKV projection: one (S, H) x (H, 3H) matmul.
        qkv = mxu_dot(x, qkvw_ref[l]) + qkvb_ref[l]                 # (S, 3H) f32
        qh = split_heads(qkv, 0 * HIDDEN)                           # (NH, S, D)
        kh = split_heads(qkv, 1 * HIDDEN)
        vh = split_heads(qkv, 2 * HIDDEN)

        # Batched-over-heads attention: one scores matmul, one softmax chain,
        # one context matmul per layer.
        s = jax.lax.dot_general(
            qh, kh, (((2,), (2,)), ((0,), (0,))),
            preferred_element_type=jnp.float32) * scale             # (NH, S, S)
        s = s + bias_b                                              # bcast keys
        m = jnp.max(s, axis=-1, keepdims=True)
        p = jnp.exp(s - m)
        denom = jnp.sum(p, axis=-1, keepdims=True)                  # >= 1
        probs = (p * pl.reciprocal(denom, approx=True)).astype(MXU_DTYPE)
        ctx3 = jax.lax.dot_general(
            probs, vh, (((2,), (1,)), ((0,), (0,))),
            preferred_element_type=jnp.float32)                     # (NH, S, D)
        # Re-assemble (S, H) context in registers (no VMEM scratch round-trip).
        ctx = jnp.concatenate([ctx3[h] for h in range(N_HEADS)], axis=-1)

        attn_out = mxu_dot(ctx, wo_ref[l]) + bo_ref[l]
        x = layer_norm(attn_out + x, ln1g_ref[l], ln1b_ref[l])

        inter = mxu_dot(x, wi_ref[l]) + bi_ref[l]
        # TODO(synk): HF BERT uses erf-GELU; tanh-approx differs by ~1e-3 rel.
        inter = jax.nn.gelu(inter, approximate=True)
        ffn = mxu_dot(inter, wo2_ref[l]) + bo2_ref[l]
        x = layer_norm(ffn + x, ln2g_ref[l], ln2b_ref[l])

    # ---- mean pool over sequence (all positions, as torch.mean(dim=1)),
    #      then classifier MLP (Linear -> ReLU -> Dropout==id -> Linear) ----
    pooled = jnp.mean(x, axis=0, keepdims=True)                     # (1, H)
    z = jnp.maximum(mxu_dot(pooled, w1_ref[...]) + b1_ref[...], 0.0)
    logits = mxu_dot(z, w2_ref[...]) + b2_ref[...]                  # (1, NUM_LABELS)
    o_ref[0] = logits.astype(o_ref.dtype)


def _resident_spec(shape):
    """Whole-array VMEM-resident BlockSpec (same block every grid step)."""
    zeros = (0,) * len(shape)
    return pl.BlockSpec(tuple(shape), lambda b, _z=zeros: _z)


def fused_forward(emb3d, bias3d, params):
    batched_inputs = [emb3d, bias3d]
    batched_specs = [
        pl.BlockSpec((1, SEQ, HIDDEN), lambda b: (b, 0, 0)),
        pl.BlockSpec((1, 1, SEQ), lambda b: (b, 0, 0)),
    ]
    weights = [
        params["emb_ln_g"], params["emb_ln_b"],
        params["qkv_w"], params["qkv_b"],
        params["wo"], params["bo"],
        params["ln1_g"], params["ln1_b"],
        params["wi"], params["bi"],
        params["wo2"], params["bo2"],
        params["ln2_g"], params["ln2_b"],
        params["cls_w1"], params["cls_b1"],
        params["cls_w2"], params["cls_b2"],
    ]
    weight_specs = [_resident_spec(w.shape) for w in weights]

    out = pl.pallas_call(
        _fused_forward_kernel,
        grid=(BATCH,),
        out_shape=jax.ShapeDtypeStruct((BATCH, 1, NUM_LABELS), DTYPE),
        in_specs=batched_specs + weight_specs,
        out_specs=pl.BlockSpec((1, 1, NUM_LABELS), lambda b: (b, 0, 0)),
        compiler_params=pltpu.CompilerParams(
            dimension_semantics=("parallel",)),
    )(*batched_inputs, *weights)
    return out.reshape(BATCH, NUM_LABELS)


# ----------------------------- parameter init --------------------------------
def init_params(key):
    def nrm(k, shape, dtype=DTYPE):
        return (0.02 * jax.random.normal(k, shape)).astype(dtype)

    keys = iter(jax.random.split(key, 8 + 4 * N_LAYERS))
    p = {
        "word_emb": nrm(next(keys), (VOCAB, HIDDEN)),
        "pos_emb": nrm(next(keys), (MAX_POS, HIDDEN)),
        "type_emb": nrm(next(keys), (2, HIDDEN)),
        "emb_ln_g": jnp.ones((1, HIDDEN), DTYPE),
        "emb_ln_b": jnp.zeros((1, HIDDEN), DTYPE),
        # Matmul weights live in HBM as bf16 (half the DMA, no in-kernel cast);
        # biases and LayerNorm params stay f32.
        "cls_w1": nrm(next(keys), (HIDDEN, CLS_HIDDEN), MXU_DTYPE),
        "cls_b1": jnp.zeros((1, CLS_HIDDEN), DTYPE),
        "cls_w2": nrm(next(keys), (CLS_HIDDEN, NUM_LABELS), MXU_DTYPE),
        "cls_b2": jnp.zeros((1, NUM_LABELS), DTYPE),
        # per-layer weights stacked along a leading N_LAYERS axis
        "qkv_w": jnp.stack([nrm(next(keys), (HIDDEN, 3 * HIDDEN), MXU_DTYPE)
                            for _ in range(N_LAYERS)]),
        "qkv_b": jnp.zeros((N_LAYERS, 1, 3 * HIDDEN), DTYPE),
        "wo": jnp.stack([nrm(next(keys), (HIDDEN, HIDDEN), MXU_DTYPE)
                         for _ in range(N_LAYERS)]),
        "bo": jnp.zeros((N_LAYERS, 1, HIDDEN), DTYPE),
        "ln1_g": jnp.ones((N_LAYERS, 1, HIDDEN), DTYPE),
        "ln1_b": jnp.zeros((N_LAYERS, 1, HIDDEN), DTYPE),
        "wi": jnp.stack([nrm(next(keys), (HIDDEN, INTERMEDIATE), MXU_DTYPE)
                         for _ in range(N_LAYERS)]),
        "bi": jnp.zeros((N_LAYERS, 1, INTERMEDIATE), DTYPE),
        "wo2": jnp.stack([nrm(next(keys), (INTERMEDIATE, HIDDEN), MXU_DTYPE)
                          for _ in range(N_LAYERS)]),
        "bo2": jnp.zeros((N_LAYERS, 1, HIDDEN), DTYPE),
        "ln2_g": jnp.ones((N_LAYERS, 1, HIDDEN), DTYPE),
        "ln2_b": jnp.zeros((N_LAYERS, 1, HIDDEN), DTYPE),
    }
    return p


# ----------------------------- forward pass -----------------------------------
def custom_bert_classifier_forward(params, input_ids, attention_mask):
    B, S = input_ids.shape
    # Embedding gather is plain-JAX glue; everything downstream is one kernel.
    word = params["word_emb"][input_ids]                         # (B, S, H)
    pos = params["pos_emb"][jnp.arange(S)]                       # (S, H)
    tok = params["type_emb"][0]                                  # (H,)  token_type_ids == 0
    emb = (word + pos[None, :, :] + tok[None, None, :]).astype(DTYPE)  # (B, S, H)

    # Precompute HF-BERT additive attention bias once: (1 - mask) * -10000.
    bias = ((1.0 - attention_mask.astype(jnp.float32)) * (-10000.0)
            ).reshape(B, 1, S)

    return fused_forward(emb, bias, params)


# ----------------------------- main --------------------------------------------
if __name__ == "__main__":
    key = jax.random.PRNGKey(0)
    pkey, ikey = jax.random.split(key)
    params = init_params(pkey)

    input_ids = jax.random.randint(ikey, (BATCH, SEQ), 0, VOCAB, dtype=jnp.int32)
    attention_mask = jnp.ones((BATCH, SEQ), dtype=jnp.int32)
    # pad out last 3 tokens of the second sequence (exercises the mask path)
    attention_mask = attention_mask.at[1, SEQ - 3:].set(0)

    fwd = jax.jit(functools.partial(custom_bert_classifier_forward, params))
    logits = fwd(input_ids, attention_mask)
    jax.block_until_ready(logits)

    assert logits.shape == (BATCH, NUM_LABELS), logits.shape
    assert bool(jnp.all(jnp.isfinite(logits)))
    print("KERNEL_OK")
</pallas_src>

<mosaic_0001>
module attributes {stable_mosaic.version = 11 : i64} {
  func.func @_fused_forward_kernel(%arg0: i32, %arg1: memref<1x16x128xf32, #tpu.memory_space<vmem>>, %arg2: memref<1x1x16xf32, #tpu.memory_space<vmem>>, %arg3: memref<1x128xf32, #tpu.memory_space<vmem>>, %arg4: memref<1x128xf32, #tpu.memory_space<vmem>>, %arg5: memref<2x128x384xbf16, #tpu.memory_space<vmem>>, %arg6: memref<2x1x384xf32, #tpu.memory_space<vmem>>, %arg7: memref<2x128x128xbf16, #tpu.memory_space<vmem>>, %arg8: memref<2x1x128xf32, #tpu.memory_space<vmem>>, %arg9: memref<2x1x128xf32, #tpu.memory_space<vmem>>, %arg10: memref<2x1x128xf32, #tpu.memory_space<vmem>>, %arg11: memref<2x128x256xbf16, #tpu.memory_space<vmem>>, %arg12: memref<2x1x256xf32, #tpu.memory_space<vmem>>, %arg13: memref<2x256x128xbf16, #tpu.memory_space<vmem>>, %arg14: memref<2x1x128xf32, #tpu.memory_space<vmem>>, %arg15: memref<2x1x128xf32, #tpu.memory_space<vmem>>, %arg16: memref<2x1x128xf32, #tpu.memory_space<vmem>>, %arg17: memref<128x128xbf16, #tpu.memory_space<vmem>>, %arg18: memref<1x128xf32, #tpu.memory_space<vmem>>, %arg19: memref<128x24xbf16, #tpu.memory_space<vmem>>, %arg20: memref<1x24xf32, #tpu.memory_space<vmem>>, %arg21: memref<1x1x24xf32, #tpu.memory_space<vmem>>) attributes {dimension_semantics = [#tpu.dimension_semantics<parallel>], iteration_bounds = array<i64: 2>, scalar_prefetch = 0 : i64, scratch_operands = 0 : i64, tpu.core_type = #tpu.core_type<tc>, window_params = [{transform_indices = @transform_0, window_bounds = array<i64: 1, 16, 128>}, {transform_indices = @transform_1, window_bounds = array<i64: 1, 1, 16>}, {pipeline_mode = #tpu.pipeline_mode<synchronous>, transform_indices = @transform_2, window_bounds = array<i64: 1, 128>}, {pipeline_mode = #tpu.pipeline_mode<synchronous>, transform_indices = @transform_3, window_bounds = array<i64: 1, 128>}, {pipeline_mode = #tpu.pipeline_mode<synchronous>, transform_indices = @transform_4, window_bounds = array<i64: 2, 128, 384>}, {pipeline_mode = #tpu.pipeline_mode<synchronous>, transform_indices = @transform_5, window_bounds = array<i64: 2, 1, 384>}, {pipeline_mode = #tpu.pipeline_mode<synchronous>, transform_indices = @transform_6, window_bounds = array<i64: 2, 128, 128>}, {pipeline_mode = #tpu.pipeline_mode<synchronous>, transform_indices = @transform_7, window_bounds = array<i64: 2, 1, 128>}, {pipeline_mode = #tpu.pipeline_mode<synchronous>, transform_indices = @transform_8, window_bounds = array<i64: 2, 1, 128>}, {pipeline_mode = #tpu.pipeline_mode<synchronous>, transform_indices = @transform_9, window_bounds = array<i64: 2, 1, 128>}, {pipeline_mode = #tpu.pipeline_mode<synchronous>, transform_indices = @transform_10, window_bounds = array<i64: 2, 128, 256>}, {pipeline_mode = #tpu.pipeline_mode<synchronous>, transform_indices = @transform_11, window_bounds = array<i64: 2, 1, 256>}, {pipeline_mode = #tpu.pipeline_mode<synchronous>, transform_indices = @transform_12, window_bounds = array<i64: 2, 256, 128>}, {pipeline_mode = #tpu.pipeline_mode<synchronous>, transform_indices = @transform_13, window_bounds = array<i64: 2, 1, 128>}, {pipeline_mode = #tpu.pipeline_mode<synchronous>, transform_indices = @transform_14, window_bounds = array<i64: 2, 1, 128>}, {pipeline_mode = #tpu.pipeline_mode<synchronous>, transform_indices = @transform_15, window_bounds = array<i64: 2, 1, 128>}, {pipeline_mode = #tpu.pipeline_mode<synchronous>, transform_indices = @transform_16, window_bounds = array<i64: 128, 128>}, {pipeline_mode = #tpu.pipeline_mode<synchronous>, transform_indices = @transform_17, window_bounds = array<i64: 1, 128>}, {pipeline_mode = #tpu.pipeline_mode<synchronous>, transform_indices = @transform_18, window_bounds = array<i64: 128, 24>}, {pipeline_mode = #tpu.pipeline_mode<synchronous>, transform_indices = @transform_19, window_bounds = array<i64: 1, 24>}, {transform_indices = @transform_20, window_bounds = array<i64: 1, 1, 24>}]} {
    %c0 = arith.constant 0 : index
    %c0_0 = arith.constant 0 : index
    %c0_1 = arith.constant 0 : index
    %0 = vector.load %arg1[%c0, %c0_0, %c0_1] : memref<1x16x128xf32, #tpu.memory_space<vmem>>, vector<1x16x128xf32>
    %1 = vector.shape_cast %0 : vector<1x16x128xf32> to vector<16x128xf32>
    %c0_2 = arith.constant 0 : index
    %c0_3 = arith.constant 0 : index
    %2 = vector.load %arg3[%c0_2, %c0_3] : memref<1x128xf32, #tpu.memory_space<vmem>>, vector<1x128xf32>
    %c0_4 = arith.constant 0 : index
    %c0_5 = arith.constant 0 : index
    %3 = vector.load %arg4[%c0_4, %c0_5] : memref<1x128xf32, #tpu.memory_space<vmem>>, vector<1x128xf32>
    %cst = arith.constant dense<0.000000e+00> : vector<16xf32>
    %4 = vector.multi_reduction <add>, %1, %cst [1] : vector<16x128xf32> to vector<16xf32>
    %5 = vector.shape_cast %4 : vector<16xf32> to vector<16x1xf32>
    %cst_6 = arith.constant 1.280000e+02 : f32
    %6 = vector.broadcast %cst_6 : f32 to vector<16x1xf32>
    %7 = arith.divf %5, %6 : vector<16x1xf32>
    %8 = vector.broadcast %7 : vector<16x1xf32> to vector<16x128xf32>
    %9 = arith.subf %1, %8 : vector<16x128xf32>
    %10 = arith.mulf %9, %9 : vector<16x128xf32>
    %cst_7 = arith.constant dense<0.000000e+00> : vector<16xf32>
    %11 = vector.multi_reduction <add>, %10, %cst_7 [1] : vector<16x128xf32> to vector<16xf32>
    %12 = vector.shape_cast %11 : vector<16xf32> to vector<16x1xf32>
    %cst_8 = arith.constant 1.280000e+02 : f32
    %13 = vector.broadcast %cst_8 : f32 to vector<16x1xf32>
    %14 = arith.divf %12, %13 : vector<16x1xf32>
    %15 = vector.broadcast %7 : vector<16x1xf32> to vector<16x128xf32>
    %16 = arith.subf %1, %15 : vector<16x128xf32>
    %cst_9 = arith.constant 9.99999996E-13 : f32
    %17 = vector.broadcast %cst_9 : f32 to vector<16x1xf32>
    %18 = arith.addf %14, %17 : vector<16x1xf32>
    %19 = math.rsqrt %18 : vector<16x1xf32>
    %20 = vector.broadcast %19 : vector<16x1xf32> to vector<16x128xf32>
    %21 = arith.mulf %16, %20 : vector<16x128xf32>
    %22 = vector.broadcast %2 : vector<1x128xf32> to vector<16x128xf32>
    %23 = arith.mulf %21, %22 : vector<16x128xf32>
    %24 = vector.broadcast %3 : vector<1x128xf32> to vector<16x128xf32>
    %25 = arith.addf %23, %24 : vector<16x128xf32>
    %c0_10 = arith.constant 0 : index
    %c0_11 = arith.constant 0 : index
    %c0_12 = arith.constant 0 : index
    %26 = vector.load %arg2[%c0_10, %c0_11, %c0_12] : memref<1x1x16xf32, #tpu.memory_space<vmem>>, vector<1x1x16xf32>
    %27 = vector.shape_cast %26 : vector<1x1x16xf32> to vector<1x16xf32>
    %c0_13 = arith.constant 0 : index
    %c0_14 = arith.constant 0 : index
    %c0_15 = arith.constant 0 : index
    %28 = vector.load %arg5[%c0_13, %c0_14, %c0_15] : memref<2x128x384xbf16, #tpu.memory_space<vmem>>, vector<1x128x384xbf16>
    %29 = vector.shape_cast %28 : vector<1x128x384xbf16> to vector<128x384xbf16>
    %30 = arith.truncf %25 : vector<16x128xf32> to vector<16x128xbf16>
    %cst_16 = arith.constant dense<0.000000e+00> : vector<16x384xf32>
    %31 = tpu.matmul %30, %29, %cst_16 {dimension_numbers = #tpu.dot_dimension_numbers<[1], [0], [0], [1], [0, 0, 1, 1], [], []>} : vector<16x128xbf16>, vector<128x384xbf16>, vector<16x384xf32> -> vector<16x384xf32>
    %c0_17 = arith.constant 0 : index
    %c0_18 = arith.constant 0 : index
    %c0_19 = arith.constant 0 : index
    %32 = vector.load %arg6[%c0_17, %c0_18, %c0_19] : memref<2x1x384xf32, #tpu.memory_space<vmem>>, vector<1x1x384xf32>
    %33 = vector.shape_cast %32 : vector<1x1x384xf32> to vector<1x384xf32>
    %34 = vector.broadcast %33 : vector<1x384xf32> to vector<16x384xf32>
    %35 = arith.addf %31, %34 : vector<16x384xf32>
    %36 = vector.extract_strided_slice %35 {offsets = [0, 0], sizes = [16, 32], strides = [1, 1]} : vector<16x384xf32> to vector<16x32xf32>
    %37 = vector.extract_strided_slice %35 {offsets = [0, 32], sizes = [16, 32], strides = [1, 1]} : vector<16x384xf32> to vector<16x32xf32>
    %38 = vector.extract_strided_slice %35 {offsets = [0, 64], sizes = [16, 32], strides = [1, 1]} : vector<16x384xf32> to vector<16x32xf32>
    %39 = vector.extract_strided_slice %35 {offsets = [0, 96], sizes = [16, 32], strides = [1, 1]} : vector<16x384xf32> to vector<16x32xf32>
    %40 = vector.shape_cast %36 : vector<16x32xf32> to vector<1x16x32xf32>
    %41 = vector.shape_cast %37 : vector<16x32xf32> to vector<1x16x32xf32>
    %42 = vector.shape_cast %38 : vector<16x32xf32> to vector<1x16x32xf32>
    %43 = vector.shape_cast %39 : vector<16x32xf32> to vector<1x16x32xf32>
    %44 = tpu.concatenate %40, %41, %42, %43 in 0 : vector<1x16x32xf32>, vector<1x16x32xf32>, vector<1x16x32xf32>, vector<1x16x32xf32> -> vector<4x16x32xf32>
    %45 = arith.truncf %44 : vector<4x16x32xf32> to vector<4x16x32xbf16>
    %46 = vector.extract_strided_slice %35 {offsets = [0, 128], sizes = [16, 32], strides = [1, 1]} : vector<16x384xf32> to vector<16x32xf32>
    %47 = vector.extract_strided_slice %35 {offsets = [0, 160], sizes = [16, 32], strides = [1, 1]} : vector<16x384xf32> to vector<16x32xf32>
    %48 = vector.extract_strided_slice %35 {offsets = [0, 192], sizes = [16, 32], strides = [1, 1]} : vector<16x384xf32> to vector<16x32xf32>
    %49 = vector.extract_strided_slice %35 {offsets = [0, 224], sizes = [16, 32], strides = [1, 1]} : vector<16x384xf32> to vector<16x32xf32>
    %50 = vector.shape_cast %46 : vector<16x32xf32> to vector<1x16x32xf32>
    %51 = vector.shape_cast %47 : vector<16x32xf32> to vector<1x16x32xf32>
    %52 = vector.shape_cast %48 : vector<16x32xf32> to vector<1x16x32xf32>
    %53 = vector.shape_cast %49 : vector<16x32xf32> to vector<1x16x32xf32>
    %54 = tpu.concatenate %50, %51, %52, %53 in 0 : vector<1x16x32xf32>, vector<1x16x32xf32>, vector<1x16x32xf32>, vector<1x16x32xf32> -> vector<4x16x32xf32>
    %55 = arith.truncf %54 : vector<4x16x32xf32> to vector<4x16x32xbf16>
    %56 = vector.extract_strided_slice %35 {offsets = [0, 256], sizes = [16, 32], strides = [1, 1]} : vector<16x384xf32> to vector<16x32xf32>
    %57 = vector.extract_strided_slice %35 {offsets = [0, 288], sizes = [16, 32], strides = [1, 1]} : vector<16x384xf32> to vector<16x32xf32>
    %58 = vector.extract_strided_slice %35 {offsets = [0, 320], sizes = [16, 32], strides = [1, 1]} : vector<16x384xf32> to vector<16x32xf32>
    %59 = vector.extract_strided_slice %35 {offsets = [0, 352], sizes = [16, 32], strides = [1, 1]} : vector<16x384xf32> to vector<16x32xf32>
    %60 = vector.shape_cast %56 : vector<16x32xf32> to vector<1x16x32xf32>
    %61 = vector.shape_cast %57 : vector<16x32xf32> to vector<1x16x32xf32>
    %62 = vector.shape_cast %58 : vector<16x32xf32> to vector<1x16x32xf32>
    %63 = vector.shape_cast %59 : vector<16x32xf32> to vector<1x16x32xf32>
    %64 = tpu.concatenate %60, %61, %62, %63 in 0 : vector<1x16x32xf32>, vector<1x16x32xf32>, vector<1x16x32xf32>, vector<1x16x32xf32> -> vector<4x16x32xf32>
    %65 = arith.truncf %64 : vector<4x16x32xf32> to vector<4x16x32xbf16>
    %cst_20 = arith.constant dense<0.000000e+00> : vector<4x16x16xf32>
    %66 = tpu.matmul %45, %55, %cst_20 {dimension_numbers = #tpu.dot_dimension_numbers<[2], [2], [1], [1], [0, 0, 0, 1, 1, 1], [0], [0]>} : vector<4x16x32xbf16>, vector<4x16x32xbf16>, vector<4x16x16xf32> -> vector<4x16x16xf32>
    %cst_21 = arith.constant 0.176776692 : f32
    %67 = vector.broadcast %cst_21 : f32 to vector<4x16x16xf32>
    %68 = arith.mulf %66, %67 : vector<4x16x16xf32>
    %69 = vector.shape_cast %27 : vector<1x16xf32> to vector<1x1x16xf32>
    %70 = vector.broadcast %69 : vector<1x1x16xf32> to vector<4x16x16xf32>
    %71 = arith.addf %68, %70 : vector<4x16x16xf32>
    %cst_22 = arith.constant dense<0xFF800000> : vector<4x16xf32>
    %72 = vector.multi_reduction <maximumf>, %71, %cst_22 [2] : vector<4x16x16xf32> to vector<4x16xf32>
    %73 = vector.shape_cast %72 : vector<4x16xf32> to vector<4x16x1xf32>
    %74 = vector.broadcast %73 : vector<4x16x1xf32> to vector<4x16x16xf32>
    %75 = arith.subf %71, %74 : vector<4x16x16xf32>
    %76 = math.exp %75 : vector<4x16x16xf32>
    %cst_23 = arith.constant dense<0.000000e+00> : vector<4x16xf32>
    %77 = vector.multi_reduction <add>, %76, %cst_23 [2] : vector<4x16x16xf32> to vector<4x16xf32>
    %78 = vector.shape_cast %77 : vector<4x16xf32> to vector<4x16x1xf32>
    %79 = tpu.reciprocal %78 {approx = true} : vector<4x16x1xf32> -> vector<4x16x1xf32>
    %80 = vector.broadcast %79 : vector<4x16x1xf32> to vector<4x16x16xf32>
    %81 = arith.mulf %76, %80 : vector<4x16x16xf32>
    %82 = arith.truncf %81 : vector<4x16x16xf32> to vector<4x16x16xbf16>
    %cst_24 = arith.constant dense<0.000000e+00> : vector<4x16x32xf32>
    %83 = tpu.matmul %82, %65, %cst_24 {dimension_numbers = #tpu.dot_dimension_numbers<[2], [1], [1], [2], [0, 0, 0, 1, 1, 2], [0], [0]>} : vector<4x16x16xbf16>, vector<4x16x32xbf16>, vector<4x16x32xf32> -> vector<4x16x32xf32>
    %84 = vector.extract_strided_slice %83 {offsets = [0, 0, 0], sizes = [1, 16, 32], strides = [1, 1, 1]} : vector<4x16x32xf32> to vector<1x16x32xf32>
    %85 = vector.shape_cast %84 : vector<1x16x32xf32> to vector<16x32xf32>
    %86 = vector.extract_strided_slice %83 {offsets = [1, 0, 0], sizes = [1, 16, 32], strides = [1, 1, 1]} : vector<4x16x32xf32> to vector<1x16x32xf32>
    %87 = vector.shape_cast %86 : vector<1x16x32xf32> to vector<16x32xf32>
    %88 = vector.extract_strided_slice %83 {offsets = [2, 0, 0], sizes = [1, 16, 32], strides = [1, 1, 1]} : vector<4x16x32xf32> to vector<1x16x32xf32>
    %89 = vector.shape_cast %88 : vector<1x16x32xf32> to vector<16x32xf32>
    %90 = vector.extract_strided_slice %83 {offsets = [3, 0, 0], sizes = [1, 16, 32], strides = [1, 1, 1]} : vector<4x16x32xf32> to vector<1x16x32xf32>
    %91 = vector.shape_cast %90 : vector<1x16x32xf32> to vector<16x32xf32>
    %92 = tpu.concatenate %85, %87, %89, %91 in 1 : vector<16x32xf32>, vector<16x32xf32>, vector<16x32xf32>, vector<16x32xf32> -> vector<16x128xf32>
    %c0_25 = arith.constant 0 : index
    %c0_26 = arith.constant 0 : index
    %c0_27 = arith.constant 0 : index
    %93 = vector.load %arg7[%c0_25, %c0_26, %c0_27] : memref<2x128x128xbf16, #tpu.memory_space<vmem>>, vector<1x128x128xbf16>
    %94 = vector.shape_cast %93 : vector<1x128x128xbf16> to vector<128x128xbf16>
    %95 = arith.truncf %92 : vector<16x128xf32> to vector<16x128xbf16>
    %cst_28 = arith.constant dense<0.000000e+00> : vector<16x128xf32>
    %96 = tpu.matmul %95, %94, %cst_28 {dimension_numbers = #tpu.dot_dimension_numbers<[1], [0], [0], [1], [0, 0, 1, 1], [], []>} : vector<16x128xbf16>, vector<128x128xbf16>, vector<16x128xf32> -> vector<16x128xf32>
    %c0_29 = arith.constant 0 : index
    %c0_30 = arith.constant 0 : index
    %c0_31 = arith.constant 0 : index
    %97 = vector.load %arg8[%c0_29, %c0_30, %c0_31] : memref<2x1x128xf32, #tpu.memory_space<vmem>>, vector<1x1x128xf32>
    %98 = vector.shape_cast %97 : vector<1x1x128xf32> to vector<1x128xf32>
    %99 = vector.broadcast %98 : vector<1x128xf32> to vector<16x128xf32>
    %100 = arith.addf %96, %99 : vector<16x128xf32>
    %101 = arith.addf %100, %25 : vector<16x128xf32>
    %c0_32 = arith.constant 0 : index
    %c0_33 = arith.constant 0 : index
    %c0_34 = arith.constant 0 : index
    %102 = vector.load %arg9[%c0_32, %c0_33, %c0_34] : memref<2x1x128xf32, #tpu.memory_space<vmem>>, vector<1x1x128xf32>
    %103 = vector.shape_cast %102 : vector<1x1x128xf32> to vector<1x128xf32>
    %c0_35 = arith.constant 0 : index
    %c0_36 = arith.constant 0 : index
    %c0_37 = arith.constant 0 : index
    %104 = vector.load %arg10[%c0_35, %c0_36, %c0_37] : memref<2x1x128xf32, #tpu.memory_space<vmem>>, vector<1x1x128xf32>
    %105 = vector.shape_cast %104 : vector<1x1x128xf32> to vector<1x128xf32>
    %cst_38 = arith.constant dense<0.000000e+00> : vector<16xf32>
    %106 = vector.multi_reduction <add>, %101, %cst_38 [1] : vector<16x128xf32> to vector<16xf32>
    %107 = vector.shape_cast %106 : vector<16xf32> to vector<16x1xf32>
    %cst_39 = arith.constant 1.280000e+02 : f32
    %108 = vector.broadcast %cst_39 : f32 to vector<16x1xf32>
    %109 = arith.divf %107, %108 : vector<16x1xf32>
    %110 = vector.broadcast %109 : vector<16x1xf32> to vector<16x128xf32>
    %111 = arith.subf %101, %110 : vector<16x128xf32>
    %112 = arith.mulf %111, %111 : vector<16x128xf32>
    %cst_40 = arith.constant dense<0.000000e+00> : vector<16xf32>
    %113 = vector.multi_reduction <add>, %112, %cst_40 [1] : vector<16x128xf32> to vector<16xf32>
    %114 = vector.shape_cast %113 : vector<16xf32> to vector<16x1xf32>
    %cst_41 = arith.constant 1.280000e+02 : f32
    %115 = vector.broadcast %cst_41 : f32 to vector<16x1xf32>
    %116 = arith.divf %114, %115 : vector<16x1xf32>
    %117 = vector.broadcast %109 : vector<16x1xf32> to vector<16x128xf32>
    %118 = arith.subf %101, %117 : vector<16x128xf32>
    %cst_42 = arith.constant 9.99999996E-13 : f32
    %119 = vector.broadcast %cst_42 : f32 to vector<16x1xf32>
    %120 = arith.addf %116, %119 : vector<16x1xf32>
    %121 = math.rsqrt %120 : vector<16x1xf32>
    %122 = vector.broadcast %121 : vector<16x1xf32> to vector<16x128xf32>
    %123 = arith.mulf %118, %122 : vector<16x128xf32>
    %124 = vector.broadcast %103 : vector<1x128xf32> to vector<16x128xf32>
    %125 = arith.mulf %123, %124 : vector<16x128xf32>
    %126 = vector.broadcast %105 : vector<1x128xf32> to vector<16x128xf32>
    %127 = arith.addf %125, %126 : vector<16x128xf32>
    %c0_43 = arith.constant 0 : index
    %c0_44 = arith.constant 0 : index
    %c0_45 = arith.constant 0 : index
    %128 = vector.load %arg11[%c0_43, %c0_44, %c0_45] : memref<2x128x256xbf16, #tpu.memory_space<vmem>>, vector<1x128x256xbf16>
    %129 = vector.shape_cast %128 : vector<1x128x256xbf16> to vector<128x256xbf16>
    %130 = arith.truncf %127 : vector<16x128xf32> to vector<16x128xbf16>
    %cst_46 = arith.constant dense<0.000000e+00> : vector<16x256xf32>
    %131 = tpu.matmul %130, %129, %cst_46 {dimension_numbers = #tpu.dot_dimension_numbers<[1], [0], [0], [1], [0, 0, 1, 1], [], []>} : vector<16x128xbf16>, vector<128x256xbf16>, vector<16x256xf32> -> vector<16x256xf32>
    %c0_47 = arith.constant 0 : index
    %c0_48 = arith.constant 0 : index
    %c0_49 = arith.constant 0 : index
    %132 = vector.load %arg12[%c0_47, %c0_48, %c0_49] : memref<2x1x256xf32, #tpu.memory_space<vmem>>, vector<1x1x256xf32>
    %133 = vector.shape_cast %132 : vector<1x1x256xf32> to vector<1x256xf32>
    %134 = vector.broadcast %133 : vector<1x256xf32> to vector<16x256xf32>
    %135 = arith.addf %131, %134 : vector<16x256xf32>
    %136 = arith.mulf %135, %135 : vector<16x256xf32>
    %137 = arith.mulf %135, %136 : vector<16x256xf32>
    %cst_50 = arith.constant 4.471500e-02 : f32
    %138 = vector.broadcast %cst_50 : f32 to vector<16x256xf32>
    %139 = arith.mulf %138, %137 : vector<16x256xf32>
    %140 = arith.addf %135, %139 : vector<16x256xf32>
    %cst_51 = arith.constant 0.797884583 : f32
    %141 = vector.broadcast %cst_51 : f32 to vector<16x256xf32>
    %142 = arith.mulf %141, %140 : vector<16x256xf32>
    %143 = math.tanh %142 : vector<16x256xf32>
    %cst_52 = arith.constant 1.000000e+00 : f32
    %144 = vector.broadcast %cst_52 : f32 to vector<16x256xf32>
    %145 = arith.addf %144, %143 : vector<16x256xf32>
    %cst_53 = arith.constant 5.000000e-01 : f32
    %146 = vector.broadcast %cst_53 : f32 to vector<16x256xf32>
    %147 = arith.mulf %146, %145 : vector<16x256xf32>
    %148 = arith.mulf %135, %147 : vector<16x256xf32>
    %c0_54 = arith.constant 0 : index
    %c0_55 = arith.constant 0 : index
    %c0_56 = arith.constant 0 : index
    %149 = vector.load %arg13[%c0_54, %c0_55, %c0_56] : memref<2x256x128xbf16, #tpu.memory_space<vmem>>, vector<1x256x128xbf16>
    %150 = vector.shape_cast %149 : vector<1x256x128xbf16> to vector<256x128xbf16>
    %151 = arith.truncf %148 : vector<16x256xf32> to vector<16x256xbf16>
    %cst_57 = arith.constant dense<0.000000e+00> : vector<16x128xf32>
    %152 = tpu.matmul %151, %150, %cst_57 {dimension_numbers = #tpu.dot_dimension_numbers<[1], [0], [0], [1], [0, 0, 1, 1], [], []>} : vector<16x256xbf16>, vector<256x128xbf16>, vector<16x128xf32> -> vector<16x128xf32>
    %c0_58 = arith.constant 0 : index
    %c0_59 = arith.constant 0 : index
    %c0_60 = arith.constant 0 : index
    %153 = vector.load %arg14[%c0_58, %c0_59, %c0_60] : memref<2x1x128xf32, #tpu.memory_space<vmem>>, vector<1x1x128xf32>
    %154 = vector.shape_cast %153 : vector<1x1x128xf32> to vector<1x128xf32>
    %155 = vector.broadcast %154 : vector<1x128xf32> to vector<16x128xf32>
    %156 = arith.addf %152, %155 : vector<16x128xf32>
    %157 = arith.addf %156, %127 : vector<16x128xf32>
    %c0_61 = arith.constant 0 : index
    %c0_62 = arith.constant 0 : index
    %c0_63 = arith.constant 0 : index
    %158 = vector.load %arg15[%c0_61, %c0_62, %c0_63] : memref<2x1x128xf32, #tpu.memory_space<vmem>>, vector<1x1x128xf32>
    %159 = vector.shape_cast %158 : vector<1x1x128xf32> to vector<1x128xf32>
    %c0_64 = arith.constant 0 : index
    %c0_65 = arith.constant 0 : index
    %c0_66 = arith.constant 0 : index
    %160 = vector.load %arg16[%c0_64, %c0_65, %c0_66] : memref<2x1x128xf32, #tpu.memory_space<vmem>>, vector<1x1x128xf32>
    %161 = vector.shape_cast %160 : vector<1x1x128xf32> to vector<1x128xf32>
    %cst_67 = arith.constant dense<0.000000e+00> : vector<16xf32>
    %162 = vector.multi_reduction <add>, %157, %cst_67 [1] : vector<16x128xf32> to vector<16xf32>
    %163 = vector.shape_cast %162 : vector<16xf32> to vector<16x1xf32>
    %cst_68 = arith.constant 1.280000e+02 : f32
    %164 = vector.broadcast %cst_68 : f32 to vector<16x1xf32>
    %165 = arith.divf %163, %164 : vector<16x1xf32>
    %166 = vector.broadcast %165 : vector<16x1xf32> to vector<16x128xf32>
    %167 = arith.subf %157, %166 : vector<16x128xf32>
    %168 = arith.mulf %167, %167 : vector<16x128xf32>
    %cst_69 = arith.constant dense<0.000000e+00> : vector<16xf32>
    %169 = vector.multi_reduction <add>, %168, %cst_69 [1] : vector<16x128xf32> to vector<16xf32>
    %170 = vector.shape_cast %169 : vector<16xf32> to vector<16x1xf32>
    %cst_70 = arith.constant 1.280000e+02 : f32
    %171 = vector.broadcast %cst_70 : f32 to vector<16x1xf32>
    %172 = arith.divf %170, %171 : vector<16x1xf32>
    %173 = vector.broadcast %165 : vector<16x1xf32> to vector<16x128xf32>
    %174 = arith.subf %157, %173 : vector<16x128xf32>
    %cst_71 = arith.constant 9.99999996E-13 : f32
    %175 = vector.broadcast %cst_71 : f32 to vector<16x1xf32>
    %176 = arith.addf %172, %175 : vector<16x1xf32>
    %177 = math.rsqrt %176 : vector<16x1xf32>
    %178 = vector.broadcast %177 : vector<16x1xf32> to vector<16x128xf32>
    %179 = arith.mulf %174, %178 : vector<16x128xf32>
    %180 = vector.broadcast %159 : vector<1x128xf32> to vector<16x128xf32>
    %181 = arith.mulf %179, %180 : vector<16x128xf32>
    %182 = vector.broadcast %161 : vector<1x128xf32> to vector<16x128xf32>
    %183 = arith.addf %181, %182 : vector<16x128xf32>
    %c1 = arith.constant 1 : index
    %c0_72 = arith.constant 0 : index
    %c0_73 = arith.constant 0 : index
    %184 = vector.load %arg5[%c1, %c0_72, %c0_73] : memref<2x128x384xbf16, #tpu.memory_space<vmem>>, vector<1x128x384xbf16>
    %185 = vector.shape_cast %184 : vector<1x128x384xbf16> to vector<128x384xbf16>
    %186 = arith.truncf %183 : vector<16x128xf32> to vector<16x128xbf16>
    %cst_74 = arith.constant dense<0.000000e+00> : vector<16x384xf32>
    %187 = tpu.matmul %186, %185, %cst_74 {dimension_numbers = #tpu.dot_dimension_numbers<[1], [0], [0], [1], [0, 0, 1, 1], [], []>} : vector<16x128xbf16>, vector<128x384xbf16>, vector<16x384xf32> -> vector<16x384xf32>
    %c1_75 = arith.constant 1 : index
    %c0_76 = arith.constant 0 : index
    %c0_77 = arith.constant 0 : index
    %188 = vector.load %arg6[%c1_75, %c0_76, %c0_77] : memref<2x1x384xf32, #tpu.memory_space<vmem>>, vector<1x1x384xf32>
    %189 = vector.shape_cast %188 : vector<1x1x384xf32> to vector<1x384xf32>
    %190 = vector.broadcast %189 : vector<1x384xf32> to vector<16x384xf32>
    %191 = arith.addf %187, %190 : vector<16x384xf32>
    %192 = vector.extract_strided_slice %191 {offsets = [0, 0], sizes = [16, 32], strides = [1, 1]} : vector<16x384xf32> to vector<16x32xf32>
    %193 = vector.extract_strided_slice %191 {offsets = [0, 32], sizes = [16, 32], strides = [1, 1]} : vector<16x384xf32> to vector<16x32xf32>
    %194 = vector.extract_strided_slice %191 {offsets = [0, 64], sizes = [16, 32], strides = [1, 1]} : vector<16x384xf32> to vector<16x32xf32>
    %195 = vector.extract_strided_slice %191 {offsets = [0, 96], sizes = [16, 32], strides = [1, 1]} : vector<16x384xf32> to vector<16x32xf32>
    %196 = vector.shape_cast %192 : vector<16x32xf32> to vector<1x16x32xf32>
    %197 = vector.shape_cast %193 : vector<16x32xf32> to vector<1x16x32xf32>
    %198 = vector.shape_cast %194 : vector<16x32xf32> to vector<1x16x32xf32>
    %199 = vector.shape_cast %195 : vector<16x32xf32> to vector<1x16x32xf32>
    %200 = tpu.concatenate %196, %197, %198, %199 in 0 : vector<1x16x32xf32>, vector<1x16x32xf32>, vector<1x16x32xf32>, vector<1x16x32xf32> -> vector<4x16x32xf32>
    %201 = arith.truncf %200 : vector<4x16x32xf32> to vector<4x16x32xbf16>
    %202 = vector.extract_strided_slice %191 {offsets = [0, 128], sizes = [16, 32], strides = [1, 1]} : vector<16x384xf32> to vector<16x32xf32>
    %203 = vector.extract_strided_slice %191 {offsets = [0, 160], sizes = [16, 32], strides = [1, 1]} : vector<16x384xf32> to vector<16x32xf32>
    %204 = vector.extract_strided_slice %191 {offsets = [0, 192], sizes = [16, 32], strides = [1, 1]} : vector<16x384xf32> to vector<16x32xf32>
    %205 = vector.extract_strided_slice %191 {offsets = [0, 224], sizes = [16, 32], strides = [1, 1]} : vector<16x384xf32> to vector<16x32xf32>
    %206 = vector.shape_cast %202 : vector<16x32xf32> to vector<1x16x32xf32>
    %207 = vector.shape_cast %203 : vector<16x32xf32> to vector<1x16x32xf32>
    %208 = vector.shape_cast %204 : vector<16x32xf32> to vector<1x16x32xf32>
    %209 = vector.shape_cast %205 : vector<16x32xf32> to vector<1x16x32xf32>
    %210 = tpu.concatenate %206, %207, %208, %209 in 0 : vector<1x16x32xf32>, vector<1x16x32xf32>, vector<1x16x32xf32>, vector<1x16x32xf32> -> vector<4x16x32xf32>
    %211 = arith.truncf %210 : vector<4x16x32xf32> to vector<4x16x32xbf16>
    %212 = vector.extract_strided_slice %191 {offsets = [0, 256], sizes = [16, 32], strides = [1, 1]} : vector<16x384xf32> to vector<16x32xf32>
    %213 = vector.extract_strided_slice %191 {offsets = [0, 288], sizes = [16, 32], strides = [1, 1]} : vector<16x384xf32> to vector<16x32xf32>
    %214 = vector.extract_strided_slice %191 {offsets = [0, 320], sizes = [16, 32], strides = [1, 1]} : vector<16x384xf32> to vector<16x32xf32>
    %215 = vector.extract_strided_slice %191 {offsets = [0, 352], sizes = [16, 32], strides = [1, 1]} : vector<16x384xf32> to vector<16x32xf32>
    %216 = vector.shape_cast %212 : vector<16x32xf32> to vector<1x16x32xf32>
    %217 = vector.shape_cast %213 : vector<16x32xf32> to vector<1x16x32xf32>
    %218 = vector.shape_cast %214 : vector<16x32xf32> to vector<1x16x32xf32>
    %219 = vector.shape_cast %215 : vector<16x32xf32> to vector<1x16x32xf32>
    %220 = tpu.concatenate %216, %217, %218, %219 in 0 : vector<1x16x32xf32>, vector<1x16x32xf32>, vector<1x16x32xf32>, vector<1x16x32xf32> -> vector<4x16x32xf32>
    %221 = arith.truncf %220 : vector<4x16x32xf32> to vector<4x16x32xbf16>
    %cst_78 = arith.constant dense<0.000000e+00> : vector<4x16x16xf32>
    %222 = tpu.matmul %201, %211, %cst_78 {dimension_numbers = #tpu.dot_dimension_numbers<[2], [2], [1], [1], [0, 0, 0, 1, 1, 1], [0], [0]>} : vector<4x16x32xbf16>, vector<4x16x32xbf16>, vector<4x16x16xf32> -> vector<4x16x16xf32>
    %cst_79 = arith.constant 0.176776692 : f32
    %223 = vector.broadcast %cst_79 : f32 to vector<4x16x16xf32>
    %224 = arith.mulf %222, %223 : vector<4x16x16xf32>
    %225 = vector.shape_cast %27 : vector<1x16xf32> to vector<1x1x16xf32>
    %226 = vector.broadcast %225 : vector<1x1x16xf32> to vector<4x16x16xf32>
    %227 = arith.addf %224, %226 : vector<4x16x16xf32>
    %cst_80 = arith.constant dense<0xFF800000> : vector<4x16xf32>
    %228 = vector.multi_reduction <maximumf>, %227, %cst_80 [2] : vector<4x16x16xf32> to vector<4x16xf32>
    %229 = vector.shape_cast %228 : vector<4x16xf32> to vector<4x16x1xf32>
    %230 = vector.broadcast %229 : vector<4x16x1xf32> to vector<4x16x16xf32>
    %231 = arith.subf %227, %230 : vector<4x16x16xf32>
    %232 = math.exp %231 : vector<4x16x16xf32>
    %cst_81 = arith.constant dense<0.000000e+00> : vector<4x16xf32>
    %233 = vector.multi_reduction <add>, %232, %cst_81 [2] : vector<4x16x16xf32> to vector<4x16xf32>
    %234 = vector.shape_cast %233 : vector<4x16xf32> to vector<4x16x1xf32>
    %235 = tpu.reciprocal %234 {approx = true} : vector<4x16x1xf32> -> vector<4x16x1xf32>
    %236 = vector.broadcast %235 : vector<4x16x1xf32> to vector<4x16x16xf32>
    %237 = arith.mulf %232, %236 : vector<4x16x16xf32>
    %238 = arith.truncf %237 : vector<4x16x16xf32> to vector<4x16x16xbf16>
    %cst_82 = arith.constant dense<0.000000e+00> : vector<4x16x32xf32>
    %239 = tpu.matmul %238, %221, %cst_82 {dimension_numbers = #tpu.dot_dimension_numbers<[2], [1], [1], [2], [0, 0, 0, 1, 1, 2], [0], [0]>} : vector<4x16x16xbf16>, vector<4x16x32xbf16>, vector<4x16x32xf32> -> vector<4x16x32xf32>
    %240 = vector.extract_strided_slice %239 {offsets = [0, 0, 0], sizes = [1, 16, 32], strides = [1, 1, 1]} : vector<4x16x32xf32> to vector<1x16x32xf32>
    %241 = vector.shape_cast %240 : vector<1x16x32xf32> to vector<16x32xf32>
    %242 = vector.extract_strided_slice %239 {offsets = [1, 0, 0], sizes = [1, 16, 32], strides = [1, 1, 1]} : vector<4x16x32xf32> to vector<1x16x32xf32>
    %243 = vector.shape_cast %242 : vector<1x16x32xf32> to vector<16x32xf32>
    %244 = vector.extract_strided_slice %239 {offsets = [2, 0, 0], sizes = [1, 16, 32], strides = [1, 1, 1]} : vector<4x16x32xf32> to vector<1x16x32xf32>
    %245 = vector.shape_cast %244 : vector<1x16x32xf32> to vector<16x32xf32>
    %246 = vector.extract_strided_slice %239 {offsets = [3, 0, 0], sizes = [1, 16, 32], strides = [1, 1, 1]} : vector<4x16x32xf32> to vector<1x16x32xf32>
    %247 = vector.shape_cast %246 : vector<1x16x32xf32> to vector<16x32xf32>
    %248 = tpu.concatenate %241, %243, %245, %247 in 1 : vector<16x32xf32>, vector<16x32xf32>, vector<16x32xf32>, vector<16x32xf32> -> vector<16x128xf32>
    %c1_83 = arith.constant 1 : index
    %c0_84 = arith.constant 0 : index
    %c0_85 = arith.constant 0 : index
    %249 = vector.load %arg7[%c1_83, %c0_84, %c0_85] : memref<2x128x128xbf16, #tpu.memory_space<vmem>>, vector<1x128x128xbf16>
    %250 = vector.shape_cast %249 : vector<1x128x128xbf16> to vector<128x128xbf16>
    %251 = arith.truncf %248 : vector<16x128xf32> to vector<16x128xbf16>
    %cst_86 = arith.constant dense<0.000000e+00> : vector<16x128xf32>
    %252 = tpu.matmul %251, %250, %cst_86 {dimension_numbers = #tpu.dot_dimension_numbers<[1], [0], [0], [1], [0, 0, 1, 1], [], []>} : vector<16x128xbf16>, vector<128x128xbf16>, vector<16x128xf32> -> vector<16x128xf32>
    %c1_87 = arith.constant 1 : index
    %c0_88 = arith.constant 0 : index
    %c0_89 = arith.constant 0 : index
    %253 = vector.load %arg8[%c1_87, %c0_88, %c0_89] : memref<2x1x128xf32, #tpu.memory_space<vmem>>, vector<1x1x128xf32>
    %254 = vector.shape_cast %253 : vector<1x1x128xf32> to vector<1x128xf32>
    %255 = vector.broadcast %254 : vector<1x128xf32> to vector<16x128xf32>
    %256 = arith.addf %252, %255 : vector<16x128xf32>
    %257 = arith.addf %256, %183 : vector<16x128xf32>
    %c1_90 = arith.constant 1 : index
    %c0_91 = arith.constant 0 : index
    %c0_92 = arith.constant 0 : index
    %258 = vector.load %arg9[%c1_90, %c0_91, %c0_92] : memref<2x1x128xf32, #tpu.memory_space<vmem>>, vector<1x1x128xf32>
    %259 = vector.shape_cast %258 : vector<1x1x128xf32> to vector<1x128xf32>
    %c1_93 = arith.constant 1 : index
    %c0_94 = arith.constant 0 : index
    %c0_95 = arith.constant 0 : index
    %260 = vector.load %arg10[%c1_93, %c0_94, %c0_95] : memref<2x1x128xf32, #tpu.memory_space<vmem>>, vector<1x1x128xf32>
    %261 = vector.shape_cast %260 : vector<1x1x128xf32> to vector<1x128xf32>
    %cst_96 = arith.constant dense<0.000000e+00> : vector<16xf32>
    %262 = vector.multi_reduction <add>, %257, %cst_96 [1] : vector<16x128xf32> to vector<16xf32>
    %263 = vector.shape_cast %262 : vector<16xf32> to vector<16x1xf32>
    %cst_97 = arith.constant 1.280000e+02 : f32
    %264 = vector.broadcast %cst_97 : f32 to vector<16x1xf32>
    %265 = arith.divf %263, %264 : vector<16x1xf32>
    %266 = vector.broadcast %265 : vector<16x1xf32> to vector<16x128xf32>
    %267 = arith.subf %257, %266 : vector<16x128xf32>
    %268 = arith.mulf %267, %267 : vector<16x128xf32>
    %cst_98 = arith.constant dense<0.000000e+00> : vector<16xf32>
    %269 = vector.multi_reduction <add>, %268, %cst_98 [1] : vector<16x128xf32> to vector<16xf32>
    %270 = vector.shape_cast %269 : vector<16xf32> to vector<16x1xf32>
    %cst_99 = arith.constant 1.280000e+02 : f32
    %271 = vector.broadcast %cst_99 : f32 to vector<16x1xf32>
    %272 = arith.divf %270, %271 : vector<16x1xf32>
    %273 = vector.broadcast %265 : vector<16x1xf32> to vector<16x128xf32>
    %274 = arith.subf %257, %273 : vector<16x128xf32>
    %cst_100 = arith.constant 9.99999996E-13 : f32
    %275 = vector.broadcast %cst_100 : f32 to vector<16x1xf32>
    %276 = arith.addf %272, %275 : vector<16x1xf32>
    %277 = math.rsqrt %276 : vector<16x1xf32>
    %278 = vector.broadcast %277 : vector<16x1xf32> to vector<16x128xf32>
    %279 = arith.mulf %274, %278 : vector<16x128xf32>
    %280 = vector.broadcast %259 : vector<1x128xf32> to vector<16x128xf32>
    %281 = arith.mulf %279, %280 : vector<16x128xf32>
    %282 = vector.broadcast %261 : vector<1x128xf32> to vector<16x128xf32>
    %283 = arith.addf %281, %282 : vector<16x128xf32>
    %c1_101 = arith.constant 1 : index
    %c0_102 = arith.constant 0 : index
    %c0_103 = arith.constant 0 : index
    %284 = vector.load %arg11[%c1_101, %c0_102, %c0_103] : memref<2x128x256xbf16, #tpu.memory_space<vmem>>, vector<1x128x256xbf16>
    %285 = vector.shape_cast %284 : vector<1x128x256xbf16> to vector<128x256xbf16>
    %286 = arith.truncf %283 : vector<16x128xf32> to vector<16x128xbf16>
    %cst_104 = arith.constant dense<0.000000e+00> : vector<16x256xf32>
    %287 = tpu.matmul %286, %285, %cst_104 {dimension_numbers = #tpu.dot_dimension_numbers<[1], [0], [0], [1], [0, 0, 1, 1], [], []>} : vector<16x128xbf16>, vector<128x256xbf16>, vector<16x256xf32> -> vector<16x256xf32>
    %c1_105 = arith.constant 1 : index
    %c0_106 = arith.constant 0 : index
    %c0_107 = arith.constant 0 : index
    %288 = vector.load %arg12[%c1_105, %c0_106, %c0_107] : memref<2x1x256xf32, #tpu.memory_space<vmem>>, vector<1x1x256xf32>
    %289 = vector.shape_cast %288 : vector<1x1x256xf32> to vector<1x256xf32>
    %290 = vector.broadcast %289 : vector<1x256xf32> to vector<16x256xf32>
    %291 = arith.addf %287, %290 : vector<16x256xf32>
    %292 = arith.mulf %291, %291 : vector<16x256xf32>
    %293 = arith.mulf %291, %292 : vector<16x256xf32>
    %cst_108 = arith.constant 4.471500e-02 : f32
    %294 = vector.broadcast %cst_108 : f32 to vector<16x256xf32>
    %295 = arith.mulf %294, %293 : vector<16x256xf32>
    %296 = arith.addf %291, %295 : vector<16x256xf32>
    %cst_109 = arith.constant 0.797884583 : f32
    %297 = vector.broadcast %cst_109 : f32 to vector<16x256xf32>
    %298 = arith.mulf %297, %296 : vector<16x256xf32>
    %299 = math.tanh %298 : vector<16x256xf32>
    %cst_110 = arith.constant 1.000000e+00 : f32
    %300 = vector.broadcast %cst_110 : f32 to vector<16x256xf32>
    %301 = arith.addf %300, %299 : vector<16x256xf32>
    %cst_111 = arith.constant 5.000000e-01 : f32
    %302 = vector.broadcast %cst_111 : f32 to vector<16x256xf32>
    %303 = arith.mulf %302, %301 : vector<16x256xf32>
    %304 = arith.mulf %291, %303 : vector<16x256xf32>
    %c1_112 = arith.constant 1 : index
    %c0_113 = arith.constant 0 : index
    %c0_114 = arith.constant 0 : index
    %305 = vector.load %arg13[%c1_112, %c0_113, %c0_114] : memref<2x256x128xbf16, #tpu.memory_space<vmem>>, vector<1x256x128xbf16>
    %306 = vector.shape_cast %305 : vector<1x256x128xbf16> to vector<256x128xbf16>
    %307 = arith.truncf %304 : vector<16x256xf32> to vector<16x256xbf16>
    %cst_115 = arith.constant dense<0.000000e+00> : vector<16x128xf32>
    %308 = tpu.matmul %307, %306, %cst_115 {dimension_numbers = #tpu.dot_dimension_numbers<[1], [0], [0], [1], [0, 0, 1, 1], [], []>} : vector<16x256xbf16>, vector<256x128xbf16>, vector<16x128xf32> -> vector<16x128xf32>
    %c1_116 = arith.constant 1 : index
    %c0_117 = arith.constant 0 : index
    %c0_118 = arith.constant 0 : index
    %309 = vector.load %arg14[%c1_116, %c0_117, %c0_118] : memref<2x1x128xf32, #tpu.memory_space<vmem>>, vector<1x1x128xf32>
    %310 = vector.shape_cast %309 : vector<1x1x128xf32> to vector<1x128xf32>
    %311 = vector.broadcast %310 : vector<1x128xf32> to vector<16x128xf32>
    %312 = arith.addf %308, %311 : vector<16x128xf32>
    %313 = arith.addf %312, %283 : vector<16x128xf32>
    %c1_119 = arith.constant 1 : index
    %c0_120 = arith.constant 0 : index
    %c0_121 = arith.constant 0 : index
    %314 = vector.load %arg15[%c1_119, %c0_120, %c0_121] : memref<2x1x128xf32, #tpu.memory_space<vmem>>, vector<1x1x128xf32>
    %315 = vector.shape_cast %314 : vector<1x1x128xf32> to vector<1x128xf32>
    %c1_122 = arith.constant 1 : index
    %c0_123 = arith.constant 0 : index
    %c0_124 = arith.constant 0 : index
    %316 = vector.load %arg16[%c1_122, %c0_123, %c0_124] : memref<2x1x128xf32, #tpu.memory_space<vmem>>, vector<1x1x128xf32>
    %317 = vector.shape_cast %316 : vector<1x1x128xf32> to vector<1x128xf32>
    %cst_125 = arith.constant dense<0.000000e+00> : vector<16xf32>
    %318 = vector.multi_reduction <add>, %313, %cst_125 [1] : vector<16x128xf32> to vector<16xf32>
    %319 = vector.shape_cast %318 : vector<16xf32> to vector<16x1xf32>
    %cst_126 = arith.constant 1.280000e+02 : f32
    %320 = vector.broadcast %cst_126 : f32 to vector<16x1xf32>
    %321 = arith.divf %319, %320 : vector<16x1xf32>
    %322 = vector.broadcast %321 : vector<16x1xf32> to vector<16x128xf32>
    %323 = arith.subf %313, %322 : vector<16x128xf32>
    %324 = arith.mulf %323, %323 : vector<16x128xf32>
    %cst_127 = arith.constant dense<0.000000e+00> : vector<16xf32>
    %325 = vector.multi_reduction <add>, %324, %cst_127 [1] : vector<16x128xf32> to vector<16xf32>
    %326 = vector.shape_cast %325 : vector<16xf32> to vector<16x1xf32>
    %cst_128 = arith.constant 1.280000e+02 : f32
    %327 = vector.broadcast %cst_128 : f32 to vector<16x1xf32>
    %328 = arith.divf %326, %327 : vector<16x1xf32>
    %329 = vector.broadcast %321 : vector<16x1xf32> to vector<16x128xf32>
    %330 = arith.subf %313, %329 : vector<16x128xf32>
    %cst_129 = arith.constant 9.99999996E-13 : f32
    %331 = vector.broadcast %cst_129 : f32 to vector<16x1xf32>
    %332 = arith.addf %328, %331 : vector<16x1xf32>
    %333 = math.rsqrt %332 : vector<16x1xf32>
    %334 = vector.broadcast %333 : vector<16x1xf32> to vector<16x128xf32>
    %335 = arith.mulf %330, %334 : vector<16x128xf32>
    %336 = vector.broadcast %315 : vector<1x128xf32> to vector<16x128xf32>
    %337 = arith.mulf %335, %336 : vector<16x128xf32>
    %338 = vector.broadcast %317 : vector<1x128xf32> to vector<16x128xf32>
    %339 = arith.addf %337, %338 : vector<16x128xf32>
    %cst_130 = arith.constant dense<0.000000e+00> : vector<128xf32>
    %340 = vector.multi_reduction <add>, %339, %cst_130 [0] : vector<16x128xf32> to vector<128xf32>
    %341 = vector.shape_cast %340 : vector<128xf32> to vector<1x128xf32>
    %cst_131 = arith.constant 1.600000e+01 : f32
    %342 = vector.broadcast %cst_131 : f32 to vector<1x128xf32>
    %343 = arith.divf %341, %342 : vector<1x128xf32>
    %c0_132 = arith.constant 0 : index
    %c0_133 = arith.constant 0 : index
    %344 = vector.load %arg17[%c0_132, %c0_133] : memref<128x128xbf16, #tpu.memory_space<vmem>>, vector<128x128xbf16>
    %345 = arith.truncf %343 : vector<1x128xf32> to vector<1x128xbf16>
    %cst_134 = arith.constant dense<0.000000e+00> : vector<1x128xf32>
    %346 = tpu.matmul %345, %344, %cst_134 {dimension_numbers = #tpu.dot_dimension_numbers<[1], [0], [0], [1], [0, 0, 1, 1], [], []>} : vector<1x128xbf16>, vector<128x128xbf16>, vector<1x128xf32> -> vector<1x128xf32>
    %c0_135 = arith.constant 0 : index
    %c0_136 = arith.constant 0 : index
    %347 = vector.load %arg18[%c0_135, %c0_136] : memref<1x128xf32, #tpu.memory_space<vmem>>, vector<1x128xf32>
    %348 = arith.addf %346, %347 : vector<1x128xf32>
    %cst_137 = arith.constant 0.000000e+00 : f32
    %349 = vector.broadcast %cst_137 : f32 to vector<1x128xf32>
    %350 = arith.maximumf %348, %349 : vector<1x128xf32>
    %c0_138 = arith.constant 0 : index
    %c0_139 = arith.constant 0 : index
    %351 = vector.load %arg19[%c0_138, %c0_139] : memref<128x24xbf16, #tpu.memory_space<vmem>>, vector<128x24xbf16>
    %352 = arith.truncf %350 : vector<1x128xf32> to vector<1x128xbf16>
    %cst_140 = arith.constant dense<0.000000e+00> : vector<1x24xf32>
    %353 = tpu.matmul %352, %351, %cst_140 {dimension_numbers = #tpu.dot_dimension_numbers<[1], [0], [0], [1], [0, 0, 1, 1], [], []>} : vector<1x128xbf16>, vector<128x24xbf16>, vector<1x24xf32> -> vector<1x24xf32>
    %c0_141 = arith.constant 0 : index
    %c0_142 = arith.constant 0 : index
    %354 = vector.load %arg20[%c0_141, %c0_142] : memref<1x24xf32, #tpu.memory_space<vmem>>, vector<1x24xf32>
    %355 = arith.addf %353, %354 : vector<1x24xf32>
    %c0_143 = arith.constant 0 : index
    %c0_144 = arith.constant 0 : index
    %c0_145 = arith.constant 0 : index
    %356 = vector.load %arg21[%c0_143, %c0_144, %c0_145] : memref<1x1x24xf32, #tpu.memory_space<vmem>>, vector<1x1x24xf32>
    %357 = vector.shape_cast %356 : vector<1x1x24xf32> to vector<1x24xf32>
    %358 = vector.shape_cast %355 : vector<1x24xf32> to vector<1x1x24xf32>
    tpu.vector_store %arg21[%c0_143, %c0_144, %c0_145], %358 {strides = array<i32>} : memref<1x1x24xf32, #tpu.memory_space<vmem>>, vector<1x1x24xf32>,
    return
  }
  func.func @transform_0(%arg0: i32) -> (i32, i32, i32) {
    %c0_i32 = arith.constant 0 : i32
    %c0_i32_0 = arith.constant 0 : i32
    %c0_i32_1 = arith.constant 0 : i32
    return %arg0, %c0_i32, %c0_i32_0 : i32, i32, i32
  }
  func.func @transform_1(%arg0: i32) -> (i32, i32, i32) {
    %c0_i32 = arith.constant 0 : i32
    %c0_i32_0 = arith.constant 0 : i32
    %c0_i32_1 = arith.constant 0 : i32
    return %arg0, %c0_i32, %c0_i32_0 : i32, i32, i32
  }
  func.func @transform_2(%arg0: i32) -> (i32, i32) {
    %c0_i32 = arith.constant 0 : i32
    %c0_i32_0 = arith.constant 0 : i32
    %c0_i32_1 = arith.constant 0 : i32
    return %c0_i32, %c0_i32_0 : i32, i32
  }
  func.func @transform_3(%arg0: i32) -> (i32, i32) {
    %c0_i32 = arith.constant 0 : i32
    %c0_i32_0 = arith.constant 0 : i32
    %c0_i32_1 = arith.constant 0 : i32
    return %c0_i32, %c0_i32_0 : i32, i32
  }
  func.func @transform_4(%arg0: i32) -> (i32, i32, i32) {
    %c0_i32 = arith.constant 0 : i32
    %c0_i32_0 = arith.constant 0 : i32
    %c0_i32_1 = arith.constant 0 : i32
    %c0_i32_2 = arith.constant 0 : i32
    return %c0_i32, %c0_i32_0, %c0_i32_1 : i32, i32, i32
  }
  func.func @transform_5(%arg0: i32) -> (i32, i32, i32) {
    %c0_i32 = arith.constant 0 : i32
    %c0_i32_0 = arith.constant 0 : i32
    %c0_i32_1 = arith.constant 0 : i32
    %c0_i32_2 = arith.constant 0 : i32
    return %c0_i32, %c0_i32_0, %c0_i32_1 : i32, i32, i32
  }
  func.func @transform_6(%arg0: i32) -> (i32, i32, i32) {
    %c0_i32 = arith.constant 0 : i32
    %c0_i32_0 = arith.constant 0 : i32
    %c0_i32_1 = arith.constant 0 : i32
    %c0_i32_2 = arith.constant 0 : i32
    return %c0_i32, %c0_i32_0, %c0_i32_1 : i32, i32, i32
  }
  func.func @transform_7(%arg0: i32) -> (i32, i32, i32) {
    %c0_i32 = arith.constant 0 : i32
    %c0_i32_0 = arith.constant 0 : i32
    %c0_i32_1 = arith.constant 0 : i32
    %c0_i32_2 = arith.constant 0 : i32
    return %c0_i32, %c0_i32_0, %c0_i32_1 : i32, i32, i32
  }
  func.func @transform_8(%arg0: i32) -> (i32, i32, i32) {
    %c0_i32 = arith.constant 0 : i32
    %c0_i32_0 = arith.constant 0 : i32
    %c0_i32_1 = arith.constant 0 : i32
    %c0_i32_2 = arith.constant 0 : i32
    return %c0_i32, %c0_i32_0, %c0_i32_1 : i32, i32, i32
  }
  func.func @transform_9(%arg0: i32) -> (i32, i32, i32) {
    %c0_i32 = arith.constant 0 : i32
    %c0_i32_0 = arith.constant 0 : i32
    %c0_i32_1 = arith.constant 0 : i32
    %c0_i32_2 = arith.constant 0 : i32
    return %c0_i32, %c0_i32_0, %c0_i32_1 : i32, i32, i32
  }
  func.func @transform_10(%arg0: i32) -> (i32, i32, i32) {
    %c0_i32 = arith.constant 0 : i32
    %c0_i32_0 = arith.constant 0 : i32
    %c0_i32_1 = arith.constant 0 : i32
    %c0_i32_2 = arith.constant 0 : i32
    return %c0_i32, %c0_i32_0, %c0_i32_1 : i32, i32, i32
  }
  func.func @transform_11(%arg0: i32) -> (i32, i32, i32) {
    %c0_i32 = arith.constant 0 : i32
    %c0_i32_0 = arith.constant 0 : i32
    %c0_i32_1 = arith.constant 0 : i32
    %c0_i32_2 = arith.constant 0 : i32
    return %c0_i32, %c0_i32_0, %c0_i32_1 : i32, i32, i32
  }
  func.func @transform_12(%arg0: i32) -> (i32, i32, i32) {
    %c0_i32 = arith.constant 0 : i32
    %c0_i32_0 = arith.constant 0 : i32
    %c0_i32_1 = arith.constant 0 : i32
    %c0_i32_2 = arith.constant 0 : i32
    return %c0_i32, %c0_i32_0, %c0_i32_1 : i32, i32, i32
  }
  func.func @transform_13(%arg0: i32) -> (i32, i32, i32) {
    %c0_i32 = arith.constant 0 : i32
    %c0_i32_0 = arith.constant 0 : i32
    %c0_i32_1 = arith.constant 0 : i32
    %c0_i32_2 = arith.constant 0 : i32
    return %c0_i32, %c0_i32_0, %c0_i32_1 : i32, i32, i32
  }
  func.func @transform_14(%arg0: i32) -> (i32, i32, i32) {
    %c0_i32 = arith.constant 0 : i32
    %c0_i32_0 = arith.constant 0 : i32
    %c0_i32_1 = arith.constant 0 : i32
    %c0_i32_2 = arith.constant 0 : i32
    return %c0_i32, %c0_i32_0, %c0_i32_1 : i32, i32, i32
  }
  func.func @transform_15(%arg0: i32) -> (i32, i32, i32) {
    %c0_i32 = arith.constant 0 : i32
    %c0_i32_0 = arith.constant 0 : i32
    %c0_i32_1 = arith.constant 0 : i32
    %c0_i32_2 = arith.constant 0 : i32
    return %c0_i32, %c0_i32_0, %c0_i32_1 : i32, i32, i32
  }
  func.func @transform_16(%arg0: i32) -> (i32, i32) {
    %c0_i32 = arith.constant 0 : i32
    %c0_i32_0 = arith.constant 0 : i32
    %c0_i32_1 = arith.constant 0 : i32
    return %c0_i32, %c0_i32_0 : i32, i32
  }
  func.func @transform_17(%arg0: i32) -> (i32, i32) {
    %c0_i32 = arith.constant 0 : i32
    %c0_i32_0 = arith.constant 0 : i32
    %c0_i32_1 = arith.constant 0 : i32
    return %c0_i32, %c0_i32_0 : i32, i32
  }
  func.func @transform_18(%arg0: i32) -> (i32, i32) {
    %c0_i32 = arith.constant 0 : i32
    %c0_i32_0 = arith.constant 0 : i32
    %c0_i32_1 = arith.constant 0 : i32
    return %c0_i32, %c0_i32_0 : i32, i32
  }
  func.func @transform_19(%arg0: i32) -> (i32, i32) {
    %c0_i32 = arith.constant 0 : i32
    %c0_i32_0 = arith.constant 0 : i32
    %c0_i32_1 = arith.constant 0 : i32
    return %c0_i32, %c0_i32_0 : i32, i32
  }
  func.func @transform_20(%arg0: i32) -> (i32, i32, i32) {
    %c0_i32 = arith.constant 0 : i32
    %c0_i32_0 = arith.constant 0 : i32
    %c0_i32_1 = arith.constant 0 : i32
    return %arg0, %c0_i32, %c0_i32_0 : i32, i32, i32
  }
}

</mosaic_0001>

<llo_original>
// kernel: custom_bert_classifier_forward.1
$region0: #{custom_bert_classifier_forward.1}
  #allocation0 [shape = 'u32[]', space=smem, size = 0x4, offset = 0x4, fixed_abs, tag = 'smem constant byte address 0x4 - core index']
  #allocation1 [shape = 'u32[144,128]{1,0:T(1,128)}', space=vmem, size = 0x12000, scoped, tag = 'internal scratch']
  %s0 = inlined_call_operand.vmem [shape: f32[2,16,128], index: 0, kind: input, shape index: {}]
  %s1 = inlined_call_operand.vmem [shape: f32[2,1,16], index: 1, kind: input, shape index: {}]
  %s2 = inlined_call_operand.vmem [shape: f32[1,128], index: 2, kind: input, shape index: {}]
  %s3 = inlined_call_operand.vmem [shape: f32[1,128], index: 3, kind: input, shape index: {}, may-alias: {3,17}]
  %s4 = inlined_call_operand.vmem [shape: bf16[2,128,384], index: 4, kind: input, shape index: {}]
  %s5 = inlined_call_operand.vmem [shape: f32[2,1,384], index: 5, kind: input, shape index: {}]
  %s6 = inlined_call_operand.vmem [shape: bf16[2,128,128], index: 6, kind: input, shape index: {}]
  %s7 = inlined_call_operand.vmem [shape: f32[2,1,128], index: 7, kind: input, shape index: {}, may-alias: {7,9,13,15}]
  %s8 = inlined_call_operand.vmem [shape: f32[2,1,128], index: 8, kind: input, shape index: {}, may-alias: {8,14}]
  %s9 = inlined_call_operand.vmem [shape: f32[2,1,128], index: 9, kind: input, shape index: {}, may-alias: {7,9,13,15}]
  %s10 = inlined_call_operand.vmem [shape: bf16[2,128,256], index: 10, kind: input, shape index: {}]
  %s11 = inlined_call_operand.vmem [shape: f32[2,1,256], index: 11, kind: input, shape index: {}]
  %s12 = inlined_call_operand.vmem [shape: bf16[2,256,128], index: 12, kind: input, shape index: {}]
  %s13 = inlined_call_operand.vmem [shape: f32[2,1,128], index: 13, kind: input, shape index: {}, may-alias: {7,9,13,15}]
  %s14 = inlined_call_operand.vmem [shape: f32[2,1,128], index: 14, kind: input, shape index: {}, may-alias: {8,14}]
  %s15 = inlined_call_operand.vmem [shape: f32[2,1,128], index: 15, kind: input, shape index: {}, may-alias: {7,9,13,15}]
  %s16 = inlined_call_operand.vmem [shape: bf16[128,128], index: 16, kind: input, shape index: {}]
  %s17 = inlined_call_operand.vmem [shape: f32[1,128], index: 17, kind: input, shape index: {}, may-alias: {3,17}]
  %s18 = inlined_call_operand.vmem [shape: bf16[128,24], index: 18, kind: input, shape index: {}]
  %s19 = inlined_call_operand.vmem [shape: f32[1,24], index: 19, kind: input, shape index: {}]
  %s20 = inlined_call_operand.hbm [shape: f32[2,1,24], index: 20, kind: output, shape index: {}]
  %s21 = sld [smem:[#allocation0]]
  $region113: #{custom_bert_classifier_forward.1} parent=0
    _
  %s23 = ssub.s32 1, %s21
  %s24 = scalar_select 0, %s23, %s21
  $region1: #{custom_bert_classifier_forward.1} parent=0
    #allocation2 [shape = 'u8[1024]{0}', space=vmem, size = 0x400, scoped, tag = 'output window, operand 0']
    #allocation3 [shape = 's32[2]{0}', space=sflag, size = 0x8, scoped, tag = 'scoped memory for custom_bert_classifier_forward.1']
    %25 = vsyncpa [#allocation3], 0
    %s26 = scalar_lea.sflag [#allocation3], 1
    %27 = vsyncpa %s26, 0
    loop: start=0, step=1, limit=4
    $region2: #{custom_bert_classifier_forward.1} parent=1 // loop_pre_header
      _
    $region3: #{custom_bert_classifier_forward.1} parent=1 // loop_header
      %s29 = sphi 0, %s33
      %p30 = scmp.ge.s32.totalorder %s29, 4
      %s39 = sphi 0, %s41
      %s42 = sphi 0, %s39
      %s43 = sphi 0, %s42
      %s59 = sphi 0, %s43
      %s65 = sphi 0, %s67
      %s68 = sphi 0, %s65
      %s69 = sphi 0, %s68
      %s85 = sphi 0, %s69
      %s89 = sphi 0, %s89
      %s91 = sphi 0, %s89
      %s92 = sphi 0, %s91
      %s106 = sphi 0, %s92
      %s110 = sphi 0, %s110
      %s112 = sphi 0, %s110
      %s113 = sphi 0, %s112
      %s127 = sphi 0, %s113
      %s131 = sphi 0, %s131
      %s133 = sphi 0, %s131
      %s134 = sphi 0, %s133
      %s148 = sphi 0, %s134
      %s152 = sphi 0, %s152
      %s154 = sphi 0, %s152
      %s155 = sphi 0, %s154
      %s169 = sphi 0, %s155
      %s173 = sphi 0, %s173
      %s175 = sphi 0, %s173
      %s176 = sphi 0, %s175
      %s190 = sphi 0, %s176
      %s194 = sphi 0, %s194
      %s196 = sphi 0, %s194
      %s197 = sphi 0, %s196
      %s211 = sphi 0, %s197
      %s215 = sphi 0, %s215
      %s217 = sphi 0, %s215
      %s218 = sphi 0, %s217
      %s232 = sphi 0, %s218
      %s236 = sphi 0, %s236
      %s238 = sphi 0, %s236
      %s239 = sphi 0, %s238
      %s253 = sphi 0, %s239
      %s257 = sphi 0, %s257
      %s259 = sphi 0, %s257
      %s260 = sphi 0, %s259
      %s274 = sphi 0, %s260
      %s278 = sphi 0, %s278
      %s280 = sphi 0, %s278
      %s281 = sphi 0, %s280
      %s295 = sphi 0, %s281
      %s299 = sphi 0, %s299
      %s301 = sphi 0, %s299
      %s302 = sphi 0, %s301
      %s316 = sphi 0, %s302
      %s320 = sphi 0, %s320
      %s322 = sphi 0, %s320
      %s323 = sphi 0, %s322
      %s337 = sphi 0, %s323
      %s341 = sphi 0, %s341
      %s343 = sphi 0, %s341
      %s344 = sphi 0, %s343
      %s358 = sphi 0, %s344
      %s362 = sphi 0, %s362
      %s364 = sphi 0, %s362
      %s365 = sphi 0, %s364
      %s379 = sphi 0, %s365
      %s383 = sphi 0, %s383
      %s385 = sphi 0, %s383
      %s386 = sphi 0, %s385
      %s400 = sphi 0, %s386
      %s404 = sphi 0, %s404
      %s406 = sphi 0, %s404
      %s407 = sphi 0, %s406
      %s421 = sphi 0, %s407
      %s425 = sphi 0, %s425
      %s427 = sphi 0, %s425
      %s428 = sphi 0, %s427
      %s442 = sphi 0, %s428
      %s446 = sphi 0, %s446
      %s448 = sphi 0, %s446
      %s449 = sphi 0, %s448
      %s463 = sphi 0, %s449
      %s469 = sphi 0, %s471
      %s472 = sphi 0, %s469
      %s473 = sphi 0, %s472
      %s489 = sphi 0, %s473
    $region4: #{custom_bert_classifier_forward.1} parent=1 // loop_header_branch
      %32 = sbr.rel (%p30) target = $region8
    $region5: #{custom_bert_classifier_forward.1} parent=1 // loop_body
      %s34 = ssub.s32 %s29, 1
      %s35 = ssub.s32 %s29, 2
      %s36 = sadd.s32 %s29, 1
      %s37 = ssub.s32 %s29, %s36
      %p38 = scmp.eq.s32.totalorder %s37, 0
      %s40 = sadd.s32 %s39, 1
      %s41 = scalar_select %p38, %s39, %s40
      %p44 = pneg %p38
      %p45 = scmp.eq.s32.totalorder %s29, 1
      %p46 = por %p44, %p45
      %p47 = scmp.ne.s32.totalorder %s39, %s42
      %p48 = scmp.eq.s32.totalorder %s29, 0
      %p49 = por %p47, %p48
      %p50 = scmp.ne.s32.totalorder %s39, %s42
      %p51 = scmp.eq.s32.totalorder %s34, 1
      %p52 = por %p50, %p51
      %p53 = scmp.ne.s32.totalorder %s42, %s43
      %p54 = scmp.eq.s32.totalorder %s34, 0
      %p55 = por %p53, %p54
      %p56 = scmp.ne.s32.totalorder %s42, %s43
      %p57 = scmp.eq.s32.totalorder %s35, 1
      %p58 = por %p56, %p57
      %p60 = scmp.ne.s32.totalorder %s43, %s59
      %p61 = scmp.eq.s32.totalorder %s35, 0
      %p62 = por %p60, %p61
      %s63 = ssub.s32 %s29, %s36
      %p64 = scmp.eq.s32.totalorder %s63, 0
      %s66 = sadd.s32 %s65, 1
      %s67 = scalar_select %p64, %s65, %s66
      %p70 = pneg %p64
      %p71 = scmp.eq.s32.totalorder %s29, 1
      %p72 = por %p70, %p71
      %p73 = scmp.ne.s32.totalorder %s65, %s68
      %p74 = scmp.eq.s32.totalorder %s29, 0
      %p75 = por %p73, %p74
      %p76 = scmp.ne.s32.totalorder %s65, %s68
      %p77 = scmp.eq.s32.totalorder %s34, 1
      %p78 = por %p76, %p77
      %p79 = scmp.ne.s32.totalorder %s68, %s69
      %p80 = scmp.eq.s32.totalorder %s34, 0
      %p81 = por %p79, %p80
      %p82 = scmp.ne.s32.totalorder %s68, %s69
      %p83 = scmp.eq.s32.totalorder %s35, 1
      %p84 = por %p82, %p83
      %p86 = scmp.ne.s32.totalorder %s69, %s85
      %p87 = scmp.eq.s32.totalorder %s35, 0
      %p88 = por %p86, %p87
      %s90 = sadd.s32 %s89, 1
      %p93 = scmp.eq.s32.totalorder %s29, 1
      %p94 = scmp.ne.s32.totalorder %s89, %s91
      %p95 = scmp.eq.s32.totalorder %s29, 0
      %p96 = por %p94, %p95
      %p97 = scmp.ne.s32.totalorder %s89, %s91
      %p98 = scmp.eq.s32.totalorder %s34, 1
      %p99 = por %p97, %p98
      %p100 = scmp.ne.s32.totalorder %s91, %s92
      %p101 = scmp.eq.s32.totalorder %s34, 0
      %p102 = por %p100, %p101
      %p103 = scmp.ne.s32.totalorder %s91, %s92
      %p104 = scmp.eq.s32.totalorder %s35, 1
      %p105 = por %p103, %p104
      %p107 = scmp.ne.s32.totalorder %s92, %s106
      %p108 = scmp.eq.s32.totalorder %s35, 0
      %p109 = por %p107, %p108
      %s111 = sadd.s32 %s110, 1
      %p114 = scmp.eq.s32.totalorder %s29, 1
      %p115 = scmp.ne.s32.totalorder %s110, %s112
      %p116 = scmp.eq.s32.totalorder %s29, 0
      %p117 = por %p115, %p116
      %p118 = scmp.ne.s32.totalorder %s110, %s112
      %p119 = scmp.eq.s32.totalorder %s34, 1
      %p120 = por %p118, %p119
      %p121 = scmp.ne.s32.totalorder %s112, %s113
      %p122 = scmp.eq.s32.totalorder %s34, 0
      %p123 = por %p121, %p122
      %p124 = scmp.ne.s32.totalorder %s112, %s113
      %p125 = scmp.eq.s32.totalorder %s35, 1
      %p126 = por %p124, %p125
      %p128 = scmp.ne.s32.totalorder %s113, %s127
      %p129 = scmp.eq.s32.totalorder %s35, 0
      %p130 = por %p128, %p129
      %s132 = sadd.s32 %s131, 1
      %p135 = scmp.eq.s32.totalorder %s29, 1
      %p136 = scmp.ne.s32.totalorder %s131, %s133
      %p137 = scmp.eq.s32.totalorder %s29, 0
      %p138 = por %p136, %p137
      %p139 = scmp.ne.s32.totalorder %s131, %s133
      %p140 = scmp.eq.s32.totalorder %s34, 1
      %p141 = por %p139, %p140
      %p142 = scmp.ne.s32.totalorder %s133, %s134
      %p143 = scmp.eq.s32.totalorder %s34, 0
      %p144 = por %p142, %p143
      %p145 = scmp.ne.s32.totalorder %s133, %s134
      %p146 = scmp.eq.s32.totalorder %s35, 1
      %p147 = por %p145, %p146
      %p149 = scmp.ne.s32.totalorder %s134, %s148
      %p150 = scmp.eq.s32.totalorder %s35, 0
      %p151 = por %p149, %p150
      %s153 = sadd.s32 %s152, 1
      %p156 = scmp.eq.s32.totalorder %s29, 1
      %p157 = scmp.ne.s32.totalorder %s152, %s154
      %p158 = scmp.eq.s32.totalorder %s29, 0
      %p159 = por %p157, %p158
      %p160 = scmp.ne.s32.totalorder %s152, %s154
      %p161 = scmp.eq.s32.totalorder %s34, 1
      %p162 = por %p160, %p161
      %p163 = scmp.ne.s32.totalorder %s154, %s155
      %p164 = scmp.eq.s32.totalorder %s34, 0
      %p165 = por %p163, %p164
      %p166 = scmp.ne.s32.totalorder %s154, %s155
      %p167 = scmp.eq.s32.totalorder %s35, 1
      %p168 = por %p166, %p167
      %p170 = scmp.ne.s32.totalorder %s155, %s169
      %p171 = scmp.eq.s32.totalorder %s35, 0
      %p172 = por %p170, %p171
      %s174 = sadd.s32 %s173, 1
      %p177 = scmp.eq.s32.totalorder %s29, 1
      %p178 = scmp.ne.s32.totalorder %s173, %s175
      %p179 = scmp.eq.s32.totalorder %s29, 0
      %p180 = por %p178, %p179
      %p181 = scmp.ne.s32.totalorder %s173, %s175
      %p182 = scmp.eq.s32.totalorder %s34, 1
      %p183 = por %p181, %p182
      %p184 = scmp.ne.s32.totalorder %s175, %s176
      %p185 = scmp.eq.s32.totalorder %s34, 0
      %p186 = por %p184, %p185
      %p187 = scmp.ne.s32.totalorder %s175, %s176
      %p188 = scmp.eq.s32.totalorder %s35, 1
      %p189 = por %p187, %p188
      %p191 = scmp.ne.s32.totalorder %s176, %s190
      %p192 = scmp.eq.s32.totalorder %s35, 0
      %p193 = por %p191, %p192
      %s195 = sadd.s32 %s194, 1
      %p198 = scmp.eq.s32.totalorder %s29, 1
      %p199 = scmp.ne.s32.totalorder %s194, %s196
      %p200 = scmp.eq.s32.totalorder %s29, 0
      %p201 = por %p199, %p200
      %p202 = scmp.ne.s32.totalorder %s194, %s196
      %p203 = scmp.eq.s32.totalorder %s34, 1
      %p204 = por %p202, %p203
      %p205 = scmp.ne.s32.totalorder %s196, %s197
      %p206 = scmp.eq.s32.totalorder %s34, 0
      %p207 = por %p205, %p206
      %p208 = scmp.ne.s32.totalorder %s196, %s197
      %p209 = scmp.eq.s32.totalorder %s35, 1
      %p210 = por %p208, %p209
      %p212 = scmp.ne.s32.totalorder %s197, %s211
      %p213 = scmp.eq.s32.totalorder %s35, 0
      %p214 = por %p212, %p213
      %s216 = sadd.s32 %s215, 1
      %p219 = scmp.eq.s32.totalorder %s29, 1
      %p220 = scmp.ne.s32.totalorder %s215, %s217
      %p221 = scmp.eq.s32.totalorder %s29, 0
      %p222 = por %p220, %p221
      %p223 = scmp.ne.s32.totalorder %s215, %s217
      %p224 = scmp.eq.s32.totalorder %s34, 1
      %p225 = por %p223, %p224
      %p226 = scmp.ne.s32.totalorder %s217, %s218
      %p227 = scmp.eq.s32.totalorder %s34, 0
      %p228 = por %p226, %p227
      %p229 = scmp.ne.s32.totalorder %s217, %s218
      %p230 = scmp.eq.s32.totalorder %s35, 1
      %p231 = por %p229, %p230
      %p233 = scmp.ne.s32.totalorder %s218, %s232
      %p234 = scmp.eq.s32.totalorder %s35, 0
      %p235 = por %p233, %p234
      %s237 = sadd.s32 %s236, 1
      %p240 = scmp.eq.s32.totalorder %s29, 1
      %p241 = scmp.ne.s32.totalorder %s236, %s238
      %p242 = scmp.eq.s32.totalorder %s29, 0
      %p243 = por %p241, %p242
      %p244 = scmp.ne.s32.totalorder %s236, %s238
      %p245 = scmp.eq.s32.totalorder %s34, 1
      %p246 = por %p244, %p245
      %p247 = scmp.ne.s32.totalorder %s238, %s239
      %p248 = scmp.eq.s32.totalorder %s34, 0
      %p249 = por %p247, %p248
      %p250 = scmp.ne.s32.totalorder %s238, %s239
      %p251 = scmp.eq.s32.totalorder %s35, 1
      %p252 = por %p250, %p251
      %p254 = scmp.ne.s32.totalorder %s239, %s253
      %p255 = scmp.eq.s32.totalorder %s35, 0
      %p256 = por %p254, %p255
      %s258 = sadd.s32 %s257, 1
      %p261 = scmp.eq.s32.totalorder %s29, 1
      %p262 = scmp.ne.s32.totalorder %s257, %s259
      %p263 = scmp.eq.s32.totalorder %s29, 0
      %p264 = por %p262, %p263
      %p265 = scmp.ne.s32.totalorder %s257, %s259
      %p266 = scmp.eq.s32.totalorder %s34, 1
      %p267 = por %p265, %p266
      %p268 = scmp.ne.s32.totalorder %s259, %s260
      %p269 = scmp.eq.s32.totalorder %s34, 0
      %p270 = por %p268, %p269
      %p271 = scmp.ne.s32.totalorder %s259, %s260
      %p272 = scmp.eq.s32.totalorder %s35, 1
      %p273 = por %p271, %p272
      %p275 = scmp.ne.s32.totalorder %s260, %s274
      %p276 = scmp.eq.s32.totalorder %s35, 0
      %p277 = por %p275, %p276
      %s279 = sadd.s32 %s278, 1
      %p282 = scmp.eq.s32.totalorder %s29, 1
      %p283 = scmp.ne.s32.totalorder %s278, %s280
      %p284 = scmp.eq.s32.totalorder %s29, 0
      %p285 = por %p283, %p284
      %p286 = scmp.ne.s32.totalorder %s278, %s280
      %p287 = scmp.eq.s32.totalorder %s34, 1
      %p288 = por %p286, %p287
      %p289 = scmp.ne.s32.totalorder %s280, %s281
      %p290 = scmp.eq.s32.totalorder %s34, 0
      %p291 = por %p289, %p290
      %p292 = scmp.ne.s32.totalorder %s280, %s281
      %p293 = scmp.eq.s32.totalorder %s35, 1
      %p294 = por %p292, %p293
      %p296 = scmp.ne.s32.totalorder %s281, %s295
      %p297 = scmp.eq.s32.totalorder %s35, 0
      %p298 = por %p296, %p297
      %s300 = sadd.s32 %s299, 1
      %p303 = scmp.eq.s32.totalorder %s29, 1
      %p304 = scmp.ne.s32.totalorder %s299, %s301
      %p305 = scmp.eq.s32.totalorder %s29, 0
      %p306 = por %p304, %p305
      %p307 = scmp.ne.s32.totalorder %s299, %s301
      %p308 = scmp.eq.s32.totalorder %s34, 1
      %p309 = por %p307, %p308
      %p310 = scmp.ne.s32.totalorder %s301, %s302
      %p311 = scmp.eq.s32.totalorder %s34, 0
      %p312 = por %p310, %p311
      %p313 = scmp.ne.s32.totalorder %s301, %s302
      %p314 = scmp.eq.s32.totalorder %s35, 1
      %p315 = por %p313, %p314
      %p317 = scmp.ne.s32.totalorder %s302, %s316
      %p318 = scmp.eq.s32.totalorder %s35, 0
      %p319 = por %p317, %p318
      %s321 = sadd.s32 %s320, 1
      %p324 = scmp.eq.s32.totalorder %s29, 1
      %p325 = scmp.ne.s32.totalorder %s320, %s322
      %p326 = scmp.eq.s32.totalorder %s29, 0
      %p327 = por %p325, %p326
      %p328 = scmp.ne.s32.totalorder %s320, %s322
      %p329 = scmp.eq.s32.totalorder %s34, 1
      %p330 = por %p328, %p329
      %p331 = scmp.ne.s32.totalorder %s322, %s323
      %p332 = scmp.eq.s32.totalorder %s34, 0
      %p333 = por %p331, %p332
      %p334 = scmp.ne.s32.totalorder %s322, %s323
      %p335 = scmp.eq.s32.totalorder %s35, 1
      %p336 = por %p334, %p335
      %p338 = scmp.ne.s32.totalorder %s323, %s337
      %p339 = scmp.eq.s32.totalorder %s35, 0
      %p340 = por %p338, %p339
      %s342 = sadd.s32 %s341, 1
      %p345 = scmp.eq.s32.totalorder %s29, 1
      %p346 = scmp.ne.s32.totalorder %s341, %s343
      %p347 = scmp.eq.s32.totalorder %s29, 0
      %p348 = por %p346, %p347
      %p349 = scmp.ne.s32.totalorder %s341, %s343
      %p350 = scmp.eq.s32.totalorder %s34, 1
      %p351 = por %p349, %p350
      %p352 = scmp.ne.s32.totalorder %s343, %s344
      %p353 = scmp.eq.s32.totalorder %s34, 0
      %p354 = por %p352, %p353
      %p355 = scmp.ne.s32.totalorder %s343, %s344
      %p356 = scmp.eq.s32.totalorder %s35, 1
      %p357 = por %p355, %p356
      %p359 = scmp.ne.s32.totalorder %s344, %s358
      %p360 = scmp.eq.s32.totalorder %s35, 0
      %p361 = por %p359, %p360
      %s363 = sadd.s32 %s362, 1
      %p366 = scmp.eq.s32.totalorder %s29, 1
      %p367 = scmp.ne.s32.totalorder %s362, %s364
      %p368 = scmp.eq.s32.totalorder %s29, 0
      %p369 = por %p367, %p368
      %p370 = scmp.ne.s32.totalorder %s362, %s364
      %p371 = scmp.eq.s32.totalorder %s34, 1
      %p372 = por %p370, %p371
      %p373 = scmp.ne.s32.totalorder %s364, %s365
      %p374 = scmp.eq.s32.totalorder %s34, 0
      %p375 = por %p373, %p374
      %p376 = scmp.ne.s32.totalorder %s364, %s365
      %p377 = scmp.eq.s32.totalorder %s35, 1
      %p378 = por %p376, %p377
      %p380 = scmp.ne.s32.totalorder %s365, %s379
      %p381 = scmp.eq.s32.totalorder %s35, 0
      %p382 = por %p380, %p381
      %s384 = sadd.s32 %s383, 1
      %p387 = scmp.eq.s32.totalorder %s29, 1
      %p388 = scmp.ne.s32.totalorder %s383, %s385
      %p389 = scmp.eq.s32.totalorder %s29, 0
      %p390 = por %p388, %p389
      %p391 = scmp.ne.s32.totalorder %s383, %s385
      %p392 = scmp.eq.s32.totalorder %s34, 1
      %p393 = por %p391, %p392
      %p394 = scmp.ne.s32.totalorder %s385, %s386
      %p395 = scmp.eq.s32.totalorder %s34, 0
      %p396 = por %p394, %p395
      %p397 = scmp.ne.s32.totalorder %s385, %s386
      %p398 = scmp.eq.s32.totalorder %s35, 1
      %p399 = por %p397, %p398
      %p401 = scmp.ne.s32.totalorder %s386, %s400
      %p402 = scmp.eq.s32.totalorder %s35, 0
      %p403 = por %p401, %p402
      %s405 = sadd.s32 %s404, 1
      %p408 = scmp.eq.s32.totalorder %s29, 1
      %p409 = scmp.ne.s32.totalorder %s404, %s406
      %p410 = scmp.eq.s32.totalorder %s29, 0
      %p411 = por %p409, %p410
      %p412 = scmp.ne.s32.totalorder %s404, %s406
      %p413 = scmp.eq.s32.totalorder %s34, 1
      %p414 = por %p412, %p413
      %p415 = scmp.ne.s32.totalorder %s406, %s407
      %p416 = scmp.eq.s32.totalorder %s34, 0
      %p417 = por %p415, %p416
      %p418 = scmp.ne.s32.totalorder %s406, %s407
      %p419 = scmp.eq.s32.totalorder %s35, 1
      %p420 = por %p418, %p419
      %p422 = scmp.ne.s32.totalorder %s407, %s421
      %p423 = scmp.eq.s32.totalorder %s35, 0
      %p424 = por %p422, %p423
      %s426 = sadd.s32 %s425, 1
      %p429 = scmp.eq.s32.totalorder %s29, 1
      %p430 = scmp.ne.s32.totalorder %s425, %s427
      %p431 = scmp.eq.s32.totalorder %s29, 0
      %p432 = por %p430, %p431
      %p433 = scmp.ne.s32.totalorder %s425, %s427
      %p434 = scmp.eq.s32.totalorder %s34, 1
      %p435 = por %p433, %p434
      %p436 = scmp.ne.s32.totalorder %s427, %s428
      %p437 = scmp.eq.s32.totalorder %s34, 0
      %p438 = por %p436, %p437
      %p439 = scmp.ne.s32.totalorder %s427, %s428
      %p440 = scmp.eq.s32.totalorder %s35, 1
      %p441 = por %p439, %p440
      %p443 = scmp.ne.s32.totalorder %s428, %s442
      %p444 = scmp.eq.s32.totalorder %s35, 0
      %p445 = por %p443, %p444
      %s447 = sadd.s32 %s446, 1
      %p450 = scmp.eq.s32.totalorder %s29, 1
      %p451 = scmp.ne.s32.totalorder %s446, %s448
      %p452 = scmp.eq.s32.totalorder %s29, 0
      %p453 = por %p451, %p452
      %p454 = scmp.ne.s32.totalorder %s446, %s448
      %p455 = scmp.eq.s32.totalorder %s34, 1
      %p456 = por %p454, %p455
      %p457 = scmp.ne.s32.totalorder %s448, %s449
      %p458 = scmp.eq.s32.totalorder %s34, 0
      %p459 = por %p457, %p458
      %p460 = scmp.ne.s32.totalorder %s448, %s449
      %p461 = scmp.eq.s32.totalorder %s35, 1
      %p462 = por %p460, %p461
      %p464 = scmp.ne.s32.totalorder %s449, %s463
      %p465 = scmp.eq.s32.totalorder %s35, 0
      %p466 = por %p464, %p465
      %s467 = ssub.s32 %s29, %s36
      %p468 = scmp.eq.s32.totalorder %s467, 0
      %s470 = sadd.s32 %s469, 1
      %s471 = scalar_select %p468, %s469, %s470
      %p474 = pneg %p468
      %p475 = scmp.eq.s32.totalorder %s29, 1
      %p476 = por %p474, %p475
      %p477 = scmp.ne.s32.totalorder %s469, %s472
      %p478 = scmp.eq.s32.totalorder %s29, 0
      %p479 = por %p477, %p478
      %p480 = scmp.ne.s32.totalorder %s469, %s472
      %p481 = scmp.eq.s32.totalorder %s34, 1
      %p482 = por %p480, %p481
      %p483 = scmp.ne.s32.totalorder %s472, %s473
      %p484 = scmp.eq.s32.totalorder %s34, 0
      %p485 = por %p483, %p484
      %p486 = scmp.ne.s32.totalorder %s472, %s473
      %p487 = scmp.eq.s32.totalorder %s35, 1
      %p488 = por %p486, %p487
      %p490 = scmp.ne.s32.totalorder %s473, %s489
      %p491 = scmp.eq.s32.totalorder %s35, 0
      %p492 = por %p490, %p491
      %p493 = scmp.le.s32.totalorder 1, %s29
      %p494 = scmp.lt.s32.totalorder %s29, 3
      %p495 = pnand %p493, %p494
      %p496 = pneg %p495
      // Predicated region
      $region9: #{custom_bert_classifier_forward.1} parent=5 // pred_check
        _
      $region10: #{custom_bert_classifier_forward.1} parent=5 // pred_check_branch
        %498 = sbr.rel (%p495) target = $region12
      $region11: #{custom_bert_classifier_forward.1} parent=5 // pred_region
        %s499 = ssub.s32 %s29, 1
        // Predicated region
        $region13: #{custom_bert_classifier_forward.1} parent=11 // pred_check
          %p500 = pneg %p102
        $region14: #{custom_bert_classifier_forward.1} parent=11 // pred_check_branch
          %502 = sbr.rel (%p500) target = $region16
        $region15: #{custom_bert_classifier_forward.1} parent=11 // pred_region
          _
        $region16: #{custom_bert_classifier_forward.1} parent=11 // pred_fallthru
          _
        // Predicated region
        $region17: #{custom_bert_classifier_forward.1} parent=11 // pred_check
          %p503 = pneg %p123
        $region18: #{custom_bert_classifier_forward.1} parent=11 // pred_check_branch
          %505 = sbr.rel (%p503) target = $region20
        $region19: #{custom_bert_classifier_forward.1} parent=11 // pred_region
          _
        $region20: #{custom_bert_classifier_forward.1} parent=11 // pred_fallthru
          _
        // Predicated region
        $region21: #{custom_bert_classifier_forward.1} parent=11 // pred_check
          %p506 = pneg %p144
        $region22: #{custom_bert_classifier_forward.1} parent=11 // pred_check_branch
          %508 = sbr.rel (%p506) target = $region24
        $region23: #{custom_bert_classifier_forward.1} parent=11 // pred_region
          _
        $region24: #{custom_bert_classifier_forward.1} parent=11 // pred_fallthru
          _
        // Predicated region
        $region25: #{custom_bert_classifier_forward.1} parent=11 // pred_check
          %p509 = pneg %p165
        $region26: #{custom_bert_classifier_forward.1} parent=11 // pred_check_branch
          %511 = sbr.rel (%p509) target = $region28
        $region27: #{custom_bert_classifier_forward.1} parent=11 // pred_region
          _
        $region28: #{custom_bert_classifier_forward.1} parent=11 // pred_fallthru
          _
        // Predicated region
        $region29: #{custom_bert_classifier_forward.1} parent=11 // pred_check
          %p512 = pneg %p186
        $region30: #{custom_bert_classifier_forward.1} parent=11 // pred_check_branch
          %514 = sbr.rel (%p512) target = $region32
        $region31: #{custom_bert_classifier_forward.1} parent=11 // pred_region
          _
        $region32: #{custom_bert_classifier_forward.1} parent=11 // pred_fallthru
          _
        // Predicated region
        $region33: #{custom_bert_classifier_forward.1} parent=11 // pred_check
          %p515 = pneg %p207
        $region34: #{custom_bert_classifier_forward.1} parent=11 // pred_check_branch
          %517 = sbr.rel (%p515) target = $region36
        $region35: #{custom_bert_classifier_forward.1} parent=11 // pred_region
          _
        $region36: #{custom_bert_classifier_forward.1} parent=11 // pred_fallthru
          _
        // Predicated region
        $region37: #{custom_bert_classifier_forward.1} parent=11 // pred_check
          %p518 = pneg %p228
        $region38: #{custom_bert_classifier_forward.1} parent=11 // pred_check_branch
          %520 = sbr.rel (%p518) target = $region40
        $region39: #{custom_bert_classifier_forward.1} parent=11 // pred_region
          _
        $region40: #{custom_bert_classifier_forward.1} parent=11 // pred_fallthru
          _
        // Predicated region
        $region41: #{custom_bert_classifier_forward.1} parent=11 // pred_check
          %p521 = pneg %p249
        $region42: #{custom_bert_classifier_forward.1} parent=11 // pred_check_branch
          %523 = sbr.rel (%p521) target = $region44
        $region43: #{custom_bert_classifier_forward.1} parent=11 // pred_region
          _
        $region44: #{custom_bert_classifier_forward.1} parent=11 // pred_fallthru
          _
        // Predicated region
        $region45: #{custom_bert_classifier_forward.1} parent=11 // pred_check
          %p524 = pneg %p270
        $region46: #{custom_bert_classifier_forward.1} parent=11 // pred_check_branch
          %526 = sbr.rel (%p524) target = $region48
        $region47: #{custom_bert_classifier_forward.1} parent=11 // pred_region
          _
        $region48: #{custom_bert_classifier_forward.1} parent=11 // pred_fallthru
          _
        // Predicated region
        $region49: #{custom_bert_classifier_forward.1} parent=11 // pred_check
          %p527 = pneg %p291
        $region50: #{custom_bert_classifier_forward.1} parent=11 // pred_check_branch
          %529 = sbr.rel (%p527) target = $region52
        $region51: #{custom_bert_classifier_forward.1} parent=11 // pred_region
          _
        $region52: #{custom_bert_classifier_forward.1} parent=11 // pred_fallthru
          _
        // Predicated region
        $region53: #{custom_bert_classifier_forward.1} parent=11 // pred_check
          %p530 = pneg %p312
        $region54: #{custom_bert_classifier_forward.1} parent=11 // pred_check_branch
          %532 = sbr.rel (%p530) target = $region56
        $region55: #{custom_bert_classifier_forward.1} parent=11 // pred_region
          _
        $region56: #{custom_bert_classifier_forward.1} parent=11 // pred_fallthru
          _
        // Predicated region
        $region57: #{custom_bert_classifier_forward.1} parent=11 // pred_check
          %p533 = pneg %p333
        $region58: #{custom_bert_classifier_forward.1} parent=11 // pred_check_branch
          %535 = sbr.rel (%p533) target = $region60
        $region59: #{custom_bert_classifier_forward.1} parent=11 // pred_region
          _
        $region60: #{custom_bert_classifier_forward.1} parent=11 // pred_fallthru
          _
        // Predicated region
        $region61: #{custom_bert_classifier_forward.1} parent=11 // pred_check
          %p536 = pneg %p354
        $region62: #{custom_bert_classifier_forward.1} parent=11 // pred_check_branch
          %538 = sbr.rel (%p536) target = $region64
        $region63: #{custom_bert_classifier_forward.1} parent=11 // pred_region
          _
        $region64: #{custom_bert_classifier_forward.1} parent=11 // pred_fallthru
          _
        // Predicated region
        $region65: #{custom_bert_classifier_forward.1} parent=11 // pred_check
          %p539 = pneg %p375
        $region66: #{custom_bert_classifier_forward.1} parent=11 // pred_check_branch
          %541 = sbr.rel (%p539) target = $region68
        $region67: #{custom_bert_classifier_forward.1} parent=11 // pred_region
          _
        $region68: #{custom_bert_classifier_forward.1} parent=11 // pred_fallthru
          _
        // Predicated region
        $region69: #{custom_bert_classifier_forward.1} parent=11 // pred_check
          %p542 = pneg %p396
        $region70: #{custom_bert_classifier_forward.1} parent=11 // pred_check_branch
          %544 = sbr.rel (%p542) target = $region72
        $region71: #{custom_bert_classifier_forward.1} parent=11 // pred_region
          _
        $region72: #{custom_bert_classifier_forward.1} parent=11 // pred_fallthru
          _
        // Predicated region
        $region73: #{custom_bert_classifier_forward.1} parent=11 // pred_check
          %p545 = pneg %p417
        $region74: #{custom_bert_classifier_forward.1} parent=11 // pred_check_branch
          %547 = sbr.rel (%p545) target = $region76
        $region75: #{custom_bert_classifier_forward.1} parent=11 // pred_region
          _
        $region76: #{custom_bert_classifier_forward.1} parent=11 // pred_fallthru
          _
        // Predicated region
        $region77: #{custom_bert_classifier_forward.1} parent=11 // pred_check
          %p548 = pneg %p438
        $region78: #{custom_bert_classifier_forward.1} parent=11 // pred_check_branch
          %550 = sbr.rel (%p548) target = $region80
        $region79: #{custom_bert_classifier_forward.1} parent=11 // pred_region
          _
        $region80: #{custom_bert_classifier_forward.1} parent=11 // pred_fallthru
          _
        // Predicated region
        $region81: #{custom_bert_classifier_forward.1} parent=11 // pred_check
          %p551 = pneg %p459
        $region82: #{custom_bert_classifier_forward.1} parent=11 // pred_check_branch
          %553 = sbr.rel (%p551) target = $region84
        $region83: #{custom_bert_classifier_forward.1} parent=11 // pred_region
          _
        $region84: #{custom_bert_classifier_forward.1} parent=11 // pred_fallthru
          _
      $region12: #{custom_bert_classifier_forward.1} parent=5 // pred_fallthru
        _
      %p554 = scmp.lt.s32.totalorder %s29, 2
      // Predicated region
      $region85: #{custom_bert_classifier_forward.1} parent=5 // pred_check
        %p555 = pneg %p554
      $region86: #{custom_bert_classifier_forward.1} parent=5 // pred_check_branch
        %557 = sbr.rel (%p555) target = $region88
      $region87: #{custom_bert_classifier_forward.1} parent=5 // pred_region
        // Predicated region
        $region89: #{custom_bert_classifier_forward.1} parent=87 // pred_check
          %p558 = pneg %p49
        $region90: #{custom_bert_classifier_forward.1} parent=87 // pred_check_branch
          %560 = sbr.rel (%p558) target = $region92
        $region91: #{custom_bert_classifier_forward.1} parent=87 // pred_region
          %p561 = scmp.lt.s32.totalorder %s29, 1
          %s562 = scalar_select %p561, %s29, 1
          %s563 = smul.addr %s562, 2
          %s564 = smul.addr %s563, 8
          %s565 = scalar_lea.vmem %s0, %s564
        $region92: #{custom_bert_classifier_forward.1} parent=87 // pred_fallthru
          _
        // Predicated region
        $region93: #{custom_bert_classifier_forward.1} parent=87 // pred_check
          %p566 = pneg %p75
        $region94: #{custom_bert_classifier_forward.1} parent=87 // pred_check_branch
          %568 = sbr.rel (%p566) target = $region96
        $region95: #{custom_bert_classifier_forward.1} parent=87 // pred_region
          %p569 = scmp.lt.s32.totalorder %s29, 1
          %s570 = scalar_select %p569, %s29, 1
          %s571 = scalar_lea.vmem %s1, %s570
        $region96: #{custom_bert_classifier_forward.1} parent=87 // pred_fallthru
          _
      $region88: #{custom_bert_classifier_forward.1} parent=5 // pred_fallthru
        _
      %p572 = scmp.le.s32.totalorder 1, %s29
      %p573 = scmp.lt.s32.totalorder %s29, 3
      %p574 = pnand %p572, %p573
      %p575 = pneg %p574
      // Predicated region
      $region97: #{custom_bert_classifier_forward.1} parent=5 // pred_check
        _
      $region98: #{custom_bert_classifier_forward.1} parent=5 // pred_check_branch
        %577 = sbr.rel (%p574) target = $region100
      $region99: #{custom_bert_classifier_forward.1} parent=5 // pred_region
        %s578 = ssub.s32 %s29, 1
        %p579 = scmp.lt.s32.totalorder %s34, 1
        %s580 = scalar_select %p579, %s34, 1
        %s581 = smul.addr %s580, 2
        %s582 = smul.addr %s581, 8
        %s583 = scalar_lea.vmem %s0, %s582
        %p584 = pneg %p55
        %p585 = pneg %p52
        %p586 = scmp.lt.s32.totalorder %s34, 1
        %s587 = scalar_select %p586, %s34, 1
        %s588 = scalar_lea.vmem %s1, %s587
        %p589 = pneg %p81
        %p590 = pneg %p78
        %p591 = pneg %p102
        %p592 = pneg %p99
        %p593 = pneg %p123
        %p594 = pneg %p120
        %p595 = pneg %p144
        %p596 = pneg %p141
        %p597 = pneg %p165
        %p598 = pneg %p162
        %p599 = pneg %p186
        %p600 = pneg %p183
        %p601 = pneg %p207
        %p602 = pneg %p204
        %p603 = pneg %p228
        %p604 = pneg %p225
        %p605 = pneg %p249
        %p606 = pneg %p246
        %p607 = pneg %p270
        %p608 = pneg %p267
        %p609 = pneg %p291
        %p610 = pneg %p288
        %p611 = pneg %p312
        %p612 = pneg %p309
        %p613 = pneg %p333
        %p614 = pneg %p330
        %p615 = pneg %p354
        %p616 = pneg %p351
        %p617 = pneg %p375
        %p618 = pneg %p372
        %p619 = pneg %p396
        %p620 = pneg %p393
        %p621 = pneg %p417
        %p622 = pneg %p414
        %p623 = pneg %p438
        %p624 = pneg %p435
        %p625 = pneg %p459
        %p626 = pneg %p456
        %p627 = pneg %p485
        %p628 = pneg %p482
        %s629 = sand.u32 %s472, 1
        %s630 = scalar_lea.sflag [#allocation3], %s629
        %s631 = sand.u32 %s472, 1
        %s632 = scalar_lea.vmem [#allocation2], %s631
        %p633 = scmp.lt.s32.totalorder %s34, 1
        %s634 = scalar_select %p633, %s34, 1
        %s635 = smul.addr %s634, 2
        %s636 = smul.addr %s635, 8
        %s637 = scalar_lea.vmem %s0, %s636
        %p638 = scmp.lt.s32.totalorder %s34, 1
        %s639 = scalar_select %p638, %s34, 1
        %s640 = scalar_lea.vmem %s1, %s639
        %v642 = vld [vmem:[%s637] sm:$0xff]
        %v643 = vld [vmem:[%s637 + $0x8] sm:$0xff]
        %v644 = vld [vmem:[%s2] sm:$0x1]
        %v645 = vld [vmem:[%s3] sm:$0x1]
        %646 = vadd.xlane.f32.xlu0 %v642
        %v647 = vpop.xlane.xlu0 %646
        %648 = vadd.xlane.f32.xlu0 %v643
        %v649 = vpop.xlane.xlu0 %648
        %v650 = vrcp.pop 128.0
        %v651 = vmul.f32 %v647, %v650
        %v652 = vmul.f32 %v649, %v650
        %v653 = vsub.f32 %v642, %v651
        %v654 = vsub.f32 %v643, %v652
        %v655 = vmul.f32 %v653, %v653
        %v656 = vmul.f32 %v654, %v654
        %657 = vadd.xlane.f32.xlu0 %v655
        %v658 = vpop.xlane.xlu0 %657
        %659 = vadd.xlane.f32.xlu0 %v656
        %v660 = vpop.xlane.xlu0 %659
        %v661 = vmul.f32 %v658, %v650
        %v662 = vmul.f32 %v660, %v650
        %v663 = vadd.f32 %v661, 1e-12
        %v664 = vadd.f32 %v662, 1e-12
        %v665 = vrsqrt.pop %v663
        %v666 = vrsqrt.pop %v664
        %v667 = vmul.f32 %v653, %v665
        %v668 = vmul.f32 %v654, %v666
        %v670 = vlaneseq
        %v671 = vshrl.u32 %v670, 7
        %v672 = vsub.s32 0, %v671
        %v673 = vrot.slane %v644, %v672
        %v675 = vmul.f32 %v667, %v673
        %v676 = vmul.f32 %v668, %v673
        %v678 = vlaneseq
        %v679 = vshrl.u32 %v678, 7
        %v680 = vsub.s32 0, %v679
        %v681 = vrot.slane %v645, %v680
        %v683 = vadd.f32 %v675, %v681
        %v684 = vadd.f32 %v676, %v681
        %v685 = vld [vmem:[%s640] sm:$0x1]
        %v686 = vld [vmem:[%s4] sm:$0xff]
        %v687 = vld [vmem:[%s4 + $0x8] sm:$0xf]
        %v688 = vld [vmem:[%s4 + $0xc] sm:$0xff]
        %v689 = vld [vmem:[%s4 + $0x14] sm:$0xf]
        %v690 = vld [vmem:[%s4 + $0x18] sm:$0xff]
        %v691 = vld [vmem:[%s4 + $0x20] sm:$0xf]
        %v692 = vld [vmem:[%s4 + $0x24] sm:$0xff]
        %v693 = vld [vmem:[%s4 + $0x2c] sm:$0xf]
        %v694 = vld [vmem:[%s4 + $0x30] sm:$0xff]
        %v695 = vld [vmem:[%s4 + $0x38] sm:$0xf]
        %v696 = vld [vmem:[%s4 + $0x3c] sm:$0xff]
        %v697 = vld [vmem:[%s4 + $0x44] sm:$0xf]
        %v698 = vld [vmem:[%s4 + $0x48] sm:$0xff]
        %v699 = vld [vmem:[%s4 + $0x50] sm:$0xf]
        %v700 = vld [vmem:[%s4 + $0x54] sm:$0xff]
        %v701 = vld [vmem:[%s4 + $0x5c] sm:$0xf]
        %v702 = vld [vmem:[%s4 + $0x60] sm:$0xff]
        %v703 = vld [vmem:[%s4 + $0x68] sm:$0xf]
        %v704 = vld [vmem:[%s4 + $0x6c] sm:$0xff]
        %v705 = vld [vmem:[%s4 + $0x74] sm:$0xf]
        %v706 = vld [vmem:[%s4 + $0x78] sm:$0xff]
        %v707 = vld [vmem:[%s4 + $0x80] sm:$0xf]
        %v708 = vld [vmem:[%s4 + $0x84] sm:$0xff]
        %v709 = vld [vmem:[%s4 + $0x8c] sm:$0xf]
        %v710 = vld [vmem:[%s4 + $0x90] sm:$0xff]
        %v711 = vld [vmem:[%s4 + $0x98] sm:$0xf]
        %v712 = vld [vmem:[%s4 + $0x9c] sm:$0xff]
        %v713 = vld [vmem:[%s4 + $0xa4] sm:$0xf]
        %v714 = vld [vmem:[%s4 + $0xa8] sm:$0xff]
        %v715 = vld [vmem:[%s4 + $0xb0] sm:$0xf]
        %v716 = vld [vmem:[%s4 + $0xb4] sm:$0xff]
        %v717 = vld [vmem:[%s4 + $0xbc] sm:$0xf]
        %v718 = vpack.c.bf16 %v684, %v683
        %v719 = vld [vmem:[%s5] sm:$0x7]
        %v721 = vlaneseq
        %v722 = vshrl.u32 %v721, 7
        %v723 = vsub.s32 0, %v722
        %v724 = vrot.slane %v719, %v723
        %v725 = vlaneseq
        %v726 = vshrl.u32 %v725, 7
        %v727 = vsub.s32 1, %v726
        %v728 = vrot.slane %v719, %v727
        %v729 = vlaneseq
        %v730 = vshrl.u32 %v729, 7
        %v731 = vsub.s32 2, %v730
        %v732 = vrot.slane %v719, %v731
        %v768 = vunpack.c.l.b16 %v686
        %v769 = vunpack.c.h.b16 %v686
        %v770 = vunpack.c.l.b16 %v687
        %v771 = vunpack.c.l.b16 %v688
        %v772 = vunpack.c.h.b16 %v688
        %v773 = vunpack.c.l.b16 %v689
        %v774 = vunpack.c.l.b16 %v690
        %v775 = vunpack.c.h.b16 %v690
        %v776 = vunpack.c.l.b16 %v691
        %v777 = vunpack.c.l.b16 %v692
        %v778 = vunpack.c.h.b16 %v692
        %v779 = vunpack.c.l.b16 %v693
        %v780 = vunpack.c.l.b16 %v694
        %v781 = vunpack.c.h.b16 %v694
        %v782 = vunpack.c.l.b16 %v695
        %v783 = vunpack.c.l.b16 %v696
        %v784 = vunpack.c.h.b16 %v696
        %v785 = vunpack.c.l.b16 %v697
        %v786 = vunpack.c.l.b16 %v698
        %v787 = vunpack.c.h.b16 %v698
        %v788 = vunpack.c.l.b16 %v699
        %v789 = vunpack.c.l.b16 %v700
        %v790 = vunpack.c.h.b16 %v700
        %v791 = vunpack.c.l.b16 %v701
        %v792 = vunpack.c.l.b16 %v702
        %v793 = vunpack.c.h.b16 %v702
        %v794 = vunpack.c.l.b16 %v703
        %v795 = vunpack.c.l.b16 %v704
        %v796 = vunpack.c.h.b16 %v704
        %v797 = vunpack.c.l.b16 %v705
        %v798 = vunpack.c.l.b16 %v706
        %v799 = vunpack.c.h.b16 %v706
        %v800 = vunpack.c.l.b16 %v707
        %v801 = vunpack.c.l.b16 %v708
        %v802 = vunpack.c.h.b16 %v708
        %v803 = vunpack.c.l.b16 %v709
        %v804 = vunpack.c.l.b16 %v710
        %v805 = vunpack.c.h.b16 %v710
        %v806 = vunpack.c.l.b16 %v711
        %v807 = vunpack.c.l.b16 %v712
        %v808 = vunpack.c.h.b16 %v712
        %v809 = vunpack.c.l.b16 %v713
        %v810 = vunpack.c.l.b16 %v714
        %v811 = vunpack.c.h.b16 %v714
        %v812 = vunpack.c.l.b16 %v715
        %v813 = vunpack.c.l.b16 %v716
        %v814 = vunpack.c.h.b16 %v716
        %v815 = vunpack.c.l.b16 %v717
        %v816 = vpack.c.b16 %v771, %v768
        %v817 = vpack.c.b16 %v772, %v769
        %v818 = vpack.c.b16 %v773, %v770
        %v819 = vpack.c.b16 %v777, %v774
        %v820 = vpack.c.b16 %v778, %v775
        %v821 = vpack.c.b16 %v779, %v776
        %v822 = vpack.c.b16 %v783, %v780
        %v823 = vpack.c.b16 %v784, %v781
        %v824 = vpack.c.b16 %v785, %v782
        %v825 = vpack.c.b16 %v789, %v786
        %v826 = vpack.c.b16 %v790, %v787
        %v827 = vpack.c.b16 %v791, %v788
        %v828 = vpack.c.b16 %v795, %v792
        %v829 = vpack.c.b16 %v796, %v793
        %v830 = vpack.c.b16 %v797, %v794
        %v831 = vpack.c.b16 %v801, %v798
        %v832 = vpack.c.b16 %v802, %v799
        %v833 = vpack.c.b16 %v803, %v800
        %v834 = vpack.c.b16 %v807, %v804
        %v835 = vpack.c.b16 %v808, %v805
        %v836 = vpack.c.b16 %v809, %v806
        %v837 = vpack.c.b16 %v813, %v810
        %v838 = vpack.c.b16 %v814, %v811
        %v839 = vpack.c.b16 %v815, %v812
        %864 = vmatprep.subr.bf16.mxu0 %v817
        %865 = vmatpush1.bf16.msra.mxu0 %v816
        %866 = vmatprep.subr.bf16.mxu0 %v820
        %867 = vmatpush1.bf16.msra.mxu0 %v819
        %868 = vmatprep.subr.bf16.mxu0 %v823
        %869 = vmatpush1.bf16.msra.mxu0 %v822
        %870 = vmatprep.subr.bf16.mxu0 %v826
        %871 = vmatpush1.bf16.msra.mxu0 %v825
        %872 = vmatprep.subr.bf16.mxu0 %v829
        %873 = vmatpush1.bf16.msra.mxu0 %v828
        %874 = vmatprep.subr.bf16.mxu0 %v832
        %875 = vmatpush1.bf16.msra.mxu0 %v831
        %876 = vmatprep.subr.bf16.mxu0 %v835
        %877 = vmatpush1.bf16.msra.mxu0 %v834
        %878 = vmatprep.subr.bf16.mxu0 %v838
        %879 = vmatpush1.bf16.msra.mxu0 %v837
        %880 = vmatprep.subr.bf16.mxu0 0
        %881 = vmatpush1.bf16.msra.mxu0 0
        %882 = vmatprep.subr.bf16.mxu0 0
        %883 = vmatpush1.bf16.msra.mxu0 0
        %884 = vmatprep.subr.bf16.mxu0 0
        %885 = vmatpush1.bf16.msra.mxu0 0
        %886 = vmatprep.subr.bf16.mxu0 0
        %887 = vmatpush1.bf16.msra.mxu0 0
        %888 = vmatprep.subr.bf16.mxu0 0
        %889 = vmatpush1.bf16.msra.mxu0 0
        %890 = vmatprep.subr.bf16.mxu0 0
        %891 = vmatpush1.bf16.msra.mxu0 0
        %892 = vmatprep.subr.bf16.mxu0 0
        %893 = vmatpush1.bf16.msra.mxu0 0
        %894 = vmatprep.subr.bf16.mxu0 0
        %895 = vmatpush1.bf16.msra.mxu0 0
        %896 = vmatprep.mubr.bf16.mxu0 0
        %897 = vmatmul.mubr.bf16.gmra.mrb[0].mxu0 %v718
        %v898 = vpop.f32.mrb[0].mxu0
        %v899 = vadd.f32 %v724, %v898
        %v900 = vpop.f32.mrb[0].mxu0
        %v901 = vadd.f32 %v728, %v900
        %v902 = vpop.f32.mrb[0].mxu0
        %v903 = vadd.f32 %v724, %v902
        %v904 = vpop.f32.mrb[0].mxu0
        %v905 = vadd.f32 %v728, %v904
        %906 = vdwg.mxu0
        %907 = vmatprep.subr.bf16.mxu0 0
        %908 = vmatpush1.bf16.msra.mxu0 %v818
        %909 = vmatprep.subr.bf16.mxu0 0
        %910 = vmatpush1.bf16.msra.mxu0 %v821
        %911 = vmatprep.subr.bf16.mxu0 0
        %912 = vmatpush1.bf16.msra.mxu0 %v824
        %913 = vmatprep.subr.bf16.mxu0 0
        %914 = vmatpush1.bf16.msra.mxu0 %v827
        %915 = vmatprep.subr.bf16.mxu0 0
        %916 = vmatpush1.bf16.msra.mxu0 %v830
        %917 = vmatprep.subr.bf16.mxu0 0
        %918 = vmatpush1.bf16.msra.mxu0 %v833
        %919 = vmatprep.subr.bf16.mxu0 0
        %920 = vmatpush1.bf16.msra.mxu0 %v836
        %921 = vmatprep.subr.bf16.mxu0 0
        %922 = vmatpush1.bf16.msra.mxu0 %v839
        %923 = vmatprep.subr.bf16.mxu0 0
        %924 = vmatpush1.bf16.msra.mxu0 0
        %925 = vmatprep.subr.bf16.mxu0 0
        %926 = vmatpush1.bf16.msra.mxu0 0
        %927 = vmatprep.subr.bf16.mxu0 0
        %928 = vmatpush1.bf16.msra.mxu0 0
        %929 = vmatprep.subr.bf16.mxu0 0
        %930 = vmatpush1.bf16.msra.mxu0 0
        %931 = vmatprep.subr.bf16.mxu0 0
        %932 = vmatpush1.bf16.msra.mxu0 0
        %933 = vmatprep.subr.bf16.mxu0 0
        %934 = vmatpush1.bf16.msra.mxu0 0
        %935 = vmatprep.subr.bf16.mxu0 0
        %936 = vmatpush1.bf16.msra.mxu0 0
        %937 = vmatprep.subr.bf16.mxu0 0
        %938 = vmatpush1.bf16.msra.mxu0 0
        %939 = vmatprep.mubr.bf16.mxu0 0
        %940 = vmatmul.mubr.bf16.gmra.mrb[0].mxu0 %v718
        %v941 = vpop.f32.mrb[0].mxu0
        %v942 = vadd.f32 %v732, %v941
        %v943 = vpop.f32.mrb[0].mxu0
        %v944 = vpop.f32.mrb[0].mxu0
        %v945 = vadd.f32 %v732, %v944
        %v946 = vpop.f32.mrb[0].mxu0
        %947 = vdwg.mxu0
        %950 = vrot.lane.b32.xlu0 %v899, 96
        %v951 = vpop.permute.xlu0 %950
        %952 = vrot.lane.b32.xlu0 %v903, 96
        %v953 = vpop.permute.xlu0 %952
        %956 = vrot.lane.b32.xlu0 %v899, 64
        %v957 = vpop.permute.xlu0 %956
        %958 = vrot.lane.b32.xlu0 %v903, 64
        %v959 = vpop.permute.xlu0 %958
        %962 = vrot.lane.b32.xlu0 %v899, 32
        %v963 = vpop.permute.xlu0 %962
        %964 = vrot.lane.b32.xlu0 %v903, 32
        %v965 = vpop.permute.xlu0 %964
        %v968 = vpack.c.bf16 %v903, %v899
        %v969 = vpack.c.bf16 %v953, %v951
        %v970 = vpack.c.bf16 %v959, %v957
        %v971 = vpack.c.bf16 %v965, %v963
        %974 = vrot.lane.b32.xlu0 %v901, 96
        %v975 = vpop.permute.xlu0 %974
        %976 = vrot.lane.b32.xlu0 %v905, 96
        %v977 = vpop.permute.xlu0 %976
        %980 = vrot.lane.b32.xlu0 %v901, 64
        %v981 = vpop.permute.xlu0 %980
        %982 = vrot.lane.b32.xlu0 %v905, 64
        %v983 = vpop.permute.xlu0 %982
        %986 = vrot.lane.b32.xlu0 %v901, 32
        %v987 = vpop.permute.xlu0 %986
        %988 = vrot.lane.b32.xlu0 %v905, 32
        %v989 = vpop.permute.xlu0 %988
        %v992 = vpack.c.bf16 %v905, %v901
        %v993 = vpack.c.bf16 %v977, %v975
        %v994 = vpack.c.bf16 %v983, %v981
        %v995 = vpack.c.bf16 %v989, %v987
        %998 = vrot.lane.b32.xlu0 %v942, 96
        %v999 = vpop.permute.xlu0 %998
        %1000 = vrot.lane.b32.xlu0 %v945, 96
        %v1001 = vpop.permute.xlu0 %1000
        %1004 = vrot.lane.b32.xlu0 %v942, 64
        %v1005 = vpop.permute.xlu0 %1004
        %1006 = vrot.lane.b32.xlu0 %v945, 64
        %v1007 = vpop.permute.xlu0 %1006
        %1010 = vrot.lane.b32.xlu0 %v942, 32
        %v1011 = vpop.permute.xlu0 %1010
        %1012 = vrot.lane.b32.xlu0 %v945, 32
        %v1013 = vpop.permute.xlu0 %1012
        %v1016 = vpack.c.bf16 %v945, %v942
        %v1017 = vpack.c.bf16 %v1001, %v999
        %v1018 = vpack.c.bf16 %v1007, %v1005
        %v1019 = vpack.c.bf16 %v1013, %v1011
        %vm1020 = vcmask 261120
        %v1022 = vsel %vm1020, %v968, 0
        %v1025 = vsel %vm1020, %v992, 0
        %1027 = vmatprep.subr.bf16.mxu0 0
        %1028 = vmatpush1.bf16.xpose.msra.mxu0 %v1025
        %1029 = vmatprep.subr.bf16.mxu0 0
        %1030 = vmatpush1.bf16.xpose.msra.mxu0 0
        %1031 = vmatprep.subr.bf16.mxu0 0
        %1032 = vmatpush1.bf16.xpose.msra.mxu0 0
        %1033 = vmatprep.subr.bf16.mxu0 0
        %1034 = vmatpush1.bf16.xpose.msra.mxu0 0
        %1035 = vmatprep.subr.bf16.mxu0 0
        %1036 = vmatpush1.bf16.xpose.msra.mxu0 0
        %1037 = vmatprep.subr.bf16.mxu0 0
        %1038 = vmatpush1.bf16.xpose.msra.mxu0 0
        %1039 = vmatprep.subr.bf16.mxu0 0
        %1040 = vmatpush1.bf16.xpose.msra.mxu0 0
        %1041 = vmatprep.subr.bf16.mxu0 0
        %1042 = vmatpush1.bf16.xpose.msra.mxu0 0
        %1043 = vmatprep.subr.bf16.mxu0 0
        %1044 = vmatpush1.bf16.xpose.msra.mxu0 0
        %1045 = vmatprep.subr.bf16.mxu0 0
        %1046 = vmatpush1.bf16.xpose.msra.mxu0 0
        %1047 = vmatprep.subr.bf16.mxu0 0
        %1048 = vmatpush1.bf16.xpose.msra.mxu0 0
        %1049 = vmatprep.subr.bf16.mxu0 0
        %1050 = vmatpush1.bf16.xpose.msra.mxu0 0
        %1051 = vmatprep.subr.bf16.mxu0 0
        %1052 = vmatpush1.bf16.xpose.msra.mxu0 0
        %1053 = vmatprep.subr.bf16.mxu0 0
        %1054 = vmatpush1.bf16.xpose.msra.mxu0 0
        %1055 = vmatprep.subr.bf16.mxu0 0
        %1056 = vmatpush1.bf16.xpose.msra.mxu0 0
        %1057 = vmatprep.subr.bf16.mxu0 0
        %1058 = vmatpush1.bf16.xpose.msra.mxu0 0
        %1059 = vmatprep.mubr.bf16.mxu0 0
        %1060 = vmatmul.mubr.bf16.gmra.mrb[0].mxu0 %v1022
        %v1061 = vpop.f32.mrb[0].mxu0
        %v1062 = vadd.f32 0.0, %v1061
        %v1063 = vpop.f32.mrb[0].mxu0
        %v1064 = vpop.f32.mrb[0].mxu0
        %v1065 = vadd.f32 0.0, %v1064
        %v1066 = vpop.f32.mrb[0].mxu0
        %1067 = vdwg.mxu0
        %v1069 = vsel %vm1020, %v969, 0
        %v1072 = vsel %vm1020, %v993, 0
        %1074 = vmatprep.subr.bf16.mxu0 0
        %1075 = vmatpush1.bf16.xpose.msra.mxu0 %v1072
        %1076 = vmatprep.subr.bf16.mxu0 0
        %1077 = vmatpush1.bf16.xpose.msra.mxu0 0
        %1078 = vmatprep.subr.bf16.mxu0 0
        %1079 = vmatpush1.bf16.xpose.msra.mxu0 0
        %1080 = vmatprep.subr.bf16.mxu0 0
        %1081 = vmatpush1.bf16.xpose.msra.mxu0 0
        %1082 = vmatprep.subr.bf16.mxu0 0
        %1083 = vmatpush1.bf16.xpose.msra.mxu0 0
        %1084 = vmatprep.subr.bf16.mxu0 0
        %1085 = vmatpush1.bf16.xpose.msra.mxu0 0
        %1086 = vmatprep.subr.bf16.mxu0 0
        %1087 = vmatpush1.bf16.xpose.msra.mxu0 0
        %1088 = vmatprep.subr.bf16.mxu0 0
        %1089 = vmatpush1.bf16.xpose.msra.mxu0 0
        %1090 = vmatprep.subr.bf16.mxu0 0
        %1091 = vmatpush1.bf16.xpose.msra.mxu0 0
        %1092 = vmatprep.subr.bf16.mxu0 0
        %1093 = vmatpush1.bf16.xpose.msra.mxu0 0
        %1094 = vmatprep.subr.bf16.mxu0 0
        %1095 = vmatpush1.bf16.xpose.msra.mxu0 0
        %1096 = vmatprep.subr.bf16.mxu0 0
        %1097 = vmatpush1.bf16.xpose.msra.mxu0 0
        %1098 = vmatprep.subr.bf16.mxu0 0
        %1099 = vmatpush1.bf16.xpose.msra.mxu0 0
        %1100 = vmatprep.subr.bf16.mxu0 0
        %1101 = vmatpush1.bf16.xpose.msra.mxu0 0
        %1102 = vmatprep.subr.bf16.mxu0 0
        %1103 = vmatpush1.bf16.xpose.msra.mxu0 0
        %1104 = vmatprep.subr.bf16.mxu0 0
        %1105 = vmatpush1.bf16.xpose.msra.mxu0 0
        %1106 = vmatprep.mubr.bf16.mxu0 0
        %1107 = vmatmul.mubr.bf16.gmra.mrb[0].mxu0 %v1069
        %v1108 = vpop.f32.mrb[0].mxu0
        %v1109 = vadd.f32 0.0, %v1108
        %v1110 = vpop.f32.mrb[0].mxu0
        %v1111 = vpop.f32.mrb[0].mxu0
        %v1112 = vadd.f32 0.0, %v1111
        %v1113 = vpop.f32.mrb[0].mxu0
        %1114 = vdwg.mxu0
        %v1116 = vsel %vm1020, %v970, 0
        %v1119 = vsel %vm1020, %v994, 0
        %1121 = vmatprep.subr.bf16.mxu0 0
        %1122 = vmatpush1.bf16.xpose.msra.mxu0 %v1119
        %1123 = vmatprep.subr.bf16.mxu0 0
        %1124 = vmatpush1.bf16.xpose.msra.mxu0 0
        %1125 = vmatprep.subr.bf16.mxu0 0
        %1126 = vmatpush1.bf16.xpose.msra.mxu0 0
        %1127 = vmatprep.subr.bf16.mxu0 0
        %1128 = vmatpush1.bf16.xpose.msra.mxu0 0
        %1129 = vmatprep.subr.bf16.mxu0 0
        %1130 = vmatpush1.bf16.xpose.msra.mxu0 0
        %1131 = vmatprep.subr.bf16.mxu0 0
        %1132 = vmatpush1.bf16.xpose.msra.mxu0 0
        %1133 = vmatprep.subr.bf16.mxu0 0
        %1134 = vmatpush1.bf16.xpose.msra.mxu0 0
        %1135 = vmatprep.subr.bf16.mxu0 0
        %1136 = vmatpush1.bf16.xpose.msra.mxu0 0
        %1137 = vmatprep.subr.bf16.mxu0 0
        %1138 = vmatpush1.bf16.xpose.msra.mxu0 0
        %1139 = vmatprep.subr.bf16.mxu0 0
        %1140 = vmatpush1.bf16.xpose.msra.mxu0 0
        %1141 = vmatprep.subr.bf16.mxu0 0
        %1142 = vmatpush1.bf16.xpose.msra.mxu0 0
        %1143 = vmatprep.subr.bf16.mxu0 0
        %1144 = vmatpush1.bf16.xpose.msra.mxu0 0
        %1145 = vmatprep.subr.bf16.mxu0 0
        %1146 = vmatpush1.bf16.xpose.msra.mxu0 0
        %1147 = vmatprep.subr.bf16.mxu0 0
        %1148 = vmatpush1.bf16.xpose.msra.mxu0 0
        %1149 = vmatprep.subr.bf16.mxu0 0
        %1150 = vmatpush1.bf16.xpose.msra.mxu0 0
        %1151 = vmatprep.subr.bf16.mxu0 0
        %1152 = vmatpush1.bf16.xpose.msra.mxu0 0
        %1153 = vmatprep.mubr.bf16.mxu0 0
        %1154 = vmatmul.mubr.bf16.gmra.mrb[0].mxu0 %v1116
        %v1155 = vpop.f32.mrb[0].mxu0
        %v1156 = vadd.f32 0.0, %v1155
        %v1157 = vpop.f32.mrb[0].mxu0
        %v1158 = vpop.f32.mrb[0].mxu0
        %v1159 = vadd.f32 0.0, %v1158
        %v1160 = vpop.f32.mrb[0].mxu0
        %1161 = vdwg.mxu0
        %v1163 = vsel %vm1020, %v971, 0
        %v1166 = vsel %vm1020, %v995, 0
        %1168 = vmatprep.subr.bf16.mxu0 0
        %1169 = vmatpush1.bf16.xpose.msra.mxu0 %v1166
        %1170 = vmatprep.subr.bf16.mxu0 0
        %1171 = vmatpush1.bf16.xpose.msra.mxu0 0
        %1172 = vmatprep.subr.bf16.mxu0 0
        %1173 = vmatpush1.bf16.xpose.msra.mxu0 0
        %1174 = vmatprep.subr.bf16.mxu0 0
        %1175 = vmatpush1.bf16.xpose.msra.mxu0 0
        %1176 = vmatprep.subr.bf16.mxu0 0
        %1177 = vmatpush1.bf16.xpose.msra.mxu0 0
        %1178 = vmatprep.subr.bf16.mxu0 0
        %1179 = vmatpush1.bf16.xpose.msra.mxu0 0
        %1180 = vmatprep.subr.bf16.mxu0 0
        %1181 = vmatpush1.bf16.xpose.msra.mxu0 0
        %1182 = vmatprep.subr.bf16.mxu0 0
        %1183 = vmatpush1.bf16.xpose.msra.mxu0 0
        %1184 = vmatprep.subr.bf16.mxu0 0
        %1185 = vmatpush1.bf16.xpose.msra.mxu0 0
        %1186 = vmatprep.subr.bf16.mxu0 0
        %1187 = vmatpush1.bf16.xpose.msra.mxu0 0
        %1188 = vmatprep.subr.bf16.mxu0 0
        %1189 = vmatpush1.bf16.xpose.msra.mxu0 0
        %1190 = vmatprep.subr.bf16.mxu0 0
        %1191 = vmatpush1.bf16.xpose.msra.mxu0 0
        %1192 = vmatprep.subr.bf16.mxu0 0
        %1193 = vmatpush1.bf16.xpose.msra.mxu0 0
        %1194 = vmatprep.subr.bf16.mxu0 0
        %1195 = vmatpush1.bf16.xpose.msra.mxu0 0
        %1196 = vmatprep.subr.bf16.mxu0 0
        %1197 = vmatpush1.bf16.xpose.msra.mxu0 0
        %1198 = vmatprep.subr.bf16.mxu0 0
        %1199 = vmatpush1.bf16.xpose.msra.mxu0 0
        %1200 = vmatprep.mubr.bf16.mxu0 0
        %1201 = vmatmul.mubr.bf16.gmra.mrb[0].mxu0 %v1163
        %v1202 = vpop.f32.mrb[0].mxu0
        %v1203 = vadd.f32 0.0, %v1202
        %v1204 = vpop.f32.mrb[0].mxu0
        %v1205 = vpop.f32.mrb[0].mxu0
        %v1206 = vadd.f32 0.0, %v1205
        %v1207 = vpop.f32.mrb[0].mxu0
        %1208 = vdwg.mxu0
        %v1209 = vmul.f32 %v1062, 0.17677669
        %v1210 = vmul.f32 %v1065, 0.17677669
        %v1211 = vmul.f32 %v1109, 0.17677669
        %v1212 = vmul.f32 %v1112, 0.17677669
        %v1213 = vmul.f32 %v1156, 0.17677669
        %v1214 = vmul.f32 %v1159, 0.17677669
        %v1215 = vmul.f32 %v1203, 0.17677669
        %v1216 = vmul.f32 %v1206, 0.17677669
        %v1218 = vlaneseq
        %v1219 = vshrl.u32 %v1218, 7
        %v1220 = vsub.s32 0, %v1219
        %v1221 = vrot.slane %v685, %v1220
        %v1223 = vadd.f32 %v1209, %v1221
        %v1224 = vadd.f32 %v1210, %v1221
        %v1225 = vadd.f32 %v1211, %v1221
        %v1226 = vadd.f32 %v1212, %v1221
        %v1227 = vadd.f32 %v1213, %v1221
        %v1228 = vadd.f32 %v1214, %v1221
        %v1229 = vadd.f32 %v1215, %v1221
        %v1230 = vadd.f32 %v1216, %v1221
        %vm1231 = vcmask 130048
        %v1232 = vsel %vm1231, %v1223, -inf
        %1233 = vmax.xlane.f32.xlu0 %v1232
        %v1234 = vpop.xlane.xlu0 %1233
        %v1235 = vsel %vm1231, %v1224, -inf
        %1236 = vmax.xlane.f32.xlu0 %v1235
        %v1237 = vpop.xlane.xlu0 %1236
        %v1238 = vsel %vm1231, %v1225, -inf
        %1239 = vmax.xlane.f32.xlu0 %v1238
        %v1240 = vpop.xlane.xlu0 %1239
        %v1241 = vsel %vm1231, %v1226, -inf
        %1242 = vmax.xlane.f32.xlu0 %v1241
        %v1243 = vpop.xlane.xlu0 %1242
        %v1244 = vsel %vm1231, %v1227, -inf
        %1245 = vmax.xlane.f32.xlu0 %v1244
        %v1246 = vpop.xlane.xlu0 %1245
        %v1247 = vsel %vm1231, %v1228, -inf
        %1248 = vmax.xlane.f32.xlu0 %v1247
        %v1249 = vpop.xlane.xlu0 %1248
        %v1250 = vsel %vm1231, %v1229, -inf
        %1251 = vmax.xlane.f32.xlu0 %v1250
        %v1252 = vpop.xlane.xlu0 %1251
        %v1253 = vsel %vm1231, %v1230, -inf
        %1254 = vmax.xlane.f32.xlu0 %v1253
        %v1255 = vpop.xlane.xlu0 %1254
        %v1256 = vsub.f32 %v1223, %v1234
        %v1257 = vsub.f32 %v1224, %v1237
        %v1258 = vsub.f32 %v1225, %v1240
        %v1259 = vsub.f32 %v1226, %v1243
        %v1260 = vsub.f32 %v1227, %v1246
        %v1261 = vsub.f32 %v1228, %v1249
        %v1262 = vsub.f32 %v1229, %v1252
        %v1263 = vsub.f32 %v1230, %v1255
        %v1264 = vmul.f32 %v1256, 1.442695
        %v1265 = vpow.pop %v1264
        %v1266 = vmul.f32 %v1257, 1.442695
        %v1267 = vpow.pop %v1266
        %v1268 = vmul.f32 %v1258, 1.442695
        %v1269 = vpow.pop %v1268
        %v1270 = vmul.f32 %v1259, 1.442695
        %v1271 = vpow.pop %v1270
        %v1272 = vmul.f32 %v1260, 1.442695
        %v1273 = vpow.pop %v1272
        %v1274 = vmul.f32 %v1261, 1.442695
        %v1275 = vpow.pop %v1274
        %v1276 = vmul.f32 %v1262, 1.442695
        %v1277 = vpow.pop %v1276
        %v1278 = vmul.f32 %v1263, 1.442695
        %v1279 = vpow.pop %v1278
        %v1280 = vsel %vm1231, %v1265, 0.0
        %1281 = vadd.xlane.f32.xlu0 %v1280
        %v1282 = vpop.xlane.xlu0 %1281
        %v1283 = vsel %vm1231, %v1267, 0.0
        %1284 = vadd.xlane.f32.xlu0 %v1283
        %v1285 = vpop.xlane.xlu0 %1284
        %v1286 = vsel %vm1231, %v1269, 0.0
        %1287 = vadd.xlane.f32.xlu0 %v1286
        %v1288 = vpop.xlane.xlu0 %1287
        %v1289 = vsel %vm1231, %v1271, 0.0
        %1290 = vadd.xlane.f32.xlu0 %v1289
        %v1291 = vpop.xlane.xlu0 %1290
        %v1292 = vsel %vm1231, %v1273, 0.0
        %1293 = vadd.xlane.f32.xlu0 %v1292
        %v1294 = vpop.xlane.xlu0 %1293
        %v1295 = vsel %vm1231, %v1275, 0.0
        %1296 = vadd.xlane.f32.xlu0 %v1295
        %v1297 = vpop.xlane.xlu0 %1296
        %v1298 = vsel %vm1231, %v1277, 0.0
        %1299 = vadd.xlane.f32.xlu0 %v1298
        %v1300 = vpop.xlane.xlu0 %1299
        %v1301 = vsel %vm1231, %v1279, 0.0
        %1302 = vadd.xlane.f32.xlu0 %v1301
        %v1303 = vpop.xlane.xlu0 %1302
        %v1304 = vrcp.pop %v1282
        %v1305 = vrcp.pop %v1285
        %v1306 = vrcp.pop %v1288
        %v1307 = vrcp.pop %v1291
        %v1308 = vrcp.pop %v1294
        %v1309 = vrcp.pop %v1297
        %v1310 = vrcp.pop %v1300
        %v1311 = vrcp.pop %v1303
        %v1312 = vmul.f32 %v1265, %v1304
        %v1313 = vmul.f32 %v1267, %v1305
        %v1314 = vmul.f32 %v1269, %v1306
        %v1315 = vmul.f32 %v1271, %v1307
        %v1316 = vmul.f32 %v1273, %v1308
        %v1317 = vmul.f32 %v1275, %v1309
        %v1318 = vmul.f32 %v1277, %v1310
        %v1319 = vmul.f32 %v1279, %v1311
        %v1320 = vpack.c.bf16 %v1313, %v1312
        %v1321 = vpack.c.bf16 %v1315, %v1314
        %v1322 = vpack.c.bf16 %v1317, %v1316
        %v1323 = vpack.c.bf16 %v1319, %v1318
        %v1325 = vsel %vm1231, %v1320, 0
        %1327 = vmatprep.subr.bf16.mxu0 0
        %1328 = vmatpush1.bf16.msra.mxu0 %v1016
        %1329 = vmatprep.subr.bf16.mxu0 0
        %1330 = vmatpush1.bf16.msra.mxu0 0
        %1331 = vmatprep.subr.bf16.mxu0 0
        %1332 = vmatpush1.bf16.msra.mxu0 0
        %1333 = vmatprep.subr.bf16.mxu0 0
        %1334 = vmatpush1.bf16.msra.mxu0 0
        %1335 = vmatprep.subr.bf16.mxu0 0
        %1336 = vmatpush1.bf16.msra.mxu0 0
        %1337 = vmatprep.subr.bf16.mxu0 0
        %1338 = vmatpush1.bf16.msra.mxu0 0
        %1339 = vmatprep.subr.bf16.mxu0 0
        %1340 = vmatpush1.bf16.msra.mxu0 0
        %1341 = vmatprep.subr.bf16.mxu0 0
        %1342 = vmatpush1.bf16.msra.mxu0 0
        %1343 = vmatprep.subr.bf16.mxu0 0
        %1344 = vmatpush1.bf16.msra.mxu0 0
        %1345 = vmatprep.subr.bf16.mxu0 0
        %1346 = vmatpush1.bf16.msra.mxu0 0
        %1347 = vmatprep.subr.bf16.mxu0 0
        %1348 = vmatpush1.bf16.msra.mxu0 0
        %1349 = vmatprep.subr.bf16.mxu0 0
        %1350 = vmatpush1.bf16.msra.mxu0 0
        %1351 = vmatprep.subr.bf16.mxu0 0
        %1352 = vmatpush1.bf16.msra.mxu0 0
        %1353 = vmatprep.subr.bf16.mxu0 0
        %1354 = vmatpush1.bf16.msra.mxu0 0
        %1355 = vmatprep.subr.bf16.mxu0 0
        %1356 = vmatpush1.bf16.msra.mxu0 0
        %1357 = vmatprep.subr.bf16.mxu0 0
        %1358 = vmatpush1.bf16.msra.mxu0 0
        %1359 = vmatprep.mubr.bf16.mxu0 0
        %1360 = vmatmul.mubr.bf16.gmra.mrb[0].mxu0 %v1325
        %v1361 = vpop.f32.mrb[0].mxu0
        %v1362 = vadd.f32 0.0, %v1361
        %v1363 = vpop.f32.mrb[0].mxu0
        %v1364 = vpop.f32.mrb[0].mxu0
        %v1365 = vadd.f32 0.0, %v1364
        %v1366 = vpop.f32.mrb[0].mxu0
        %1367 = vdwg.mxu0
        %v1369 = vsel %vm1231, %v1321, 0
        %1371 = vmatprep.subr.bf16.mxu0 0
        %1372 = vmatpush1.bf16.msra.mxu0 %v1017
        %1373 = vmatprep.subr.bf16.mxu0 0
        %1374 = vmatpush1.bf16.msra.mxu0 0
        %1375 = vmatprep.subr.bf16.mxu0 0
        %1376 = vmatpush1.bf16.msra.mxu0 0
        %1377 = vmatprep.subr.bf16.mxu0 0
        %1378 = vmatpush1.bf16.msra.mxu0 0
        %1379 = vmatprep.subr.bf16.mxu0 0
        %1380 = vmatpush1.bf16.msra.mxu0 0
        %1381 = vmatprep.subr.bf16.mxu0 0
        %1382 = vmatpush1.bf16.msra.mxu0 0
        %1383 = vmatprep.subr.bf16.mxu0 0
        %1384 = vmatpush1.bf16.msra.mxu0 0
        %1385 = vmatprep.subr.bf16.mxu0 0
        %1386 = vmatpush1.bf16.msra.mxu0 0
        %1387 = vmatprep.subr.bf16.mxu0 0
        %1388 = vmatpush1.bf16.msra.mxu0 0
        %1389 = vmatprep.subr.bf16.mxu0 0
        %1390 = vmatpush1.bf16.msra.mxu0 0
        %1391 = vmatprep.subr.bf16.mxu0 0
        %1392 = vmatpush1.bf16.msra.mxu0 0
        %1393 = vmatprep.subr.bf16.mxu0 0
        %1394 = vmatpush1.bf16.msra.mxu0 0
        %1395 = vmatprep.subr.bf16.mxu0 0
        %1396 = vmatpush1.bf16.msra.mxu0 0
        %1397 = vmatprep.subr.bf16.mxu0 0
        %1398 = vmatpush1.bf16.msra.mxu0 0
        %1399 = vmatprep.subr.bf16.mxu0 0
        %1400 = vmatpush1.bf16.msra.mxu0 0
        %1401 = vmatprep.subr.bf16.mxu0 0
        %1402 = vmatpush1.bf16.msra.mxu0 0
        %1403 = vmatprep.mubr.bf16.mxu0 0
        %1404 = vmatmul.mubr.bf16.gmra.mrb[0].mxu0 %v1369
        %v1405 = vpop.f32.mrb[0].mxu0
        %v1406 = vadd.f32 0.0, %v1405
        %v1407 = vpop.f32.mrb[0].mxu0
        %v1408 = vpop.f32.mrb[0].mxu0
        %v1409 = vadd.f32 0.0, %v1408
        %v1410 = vpop.f32.mrb[0].mxu0
        %1411 = vdwg.mxu0
        %v1413 = vsel %vm1231, %v1322, 0
        %1415 = vmatprep.subr.bf16.mxu0 0
        %1416 = vmatpush1.bf16.msra.mxu0 %v1018
        %1417 = vmatprep.subr.bf16.mxu0 0
        %1418 = vmatpush1.bf16.msra.mxu0 0
        %1419 = vmatprep.subr.bf16.mxu0 0
        %1420 = vmatpush1.bf16.msra.mxu0 0
        %1421 = vmatprep.subr.bf16.mxu0 0
        %1422 = vmatpush1.bf16.msra.mxu0 0
        %1423 = vmatprep.subr.bf16.mxu0 0
        %1424 = vmatpush1.bf16.msra.mxu0 0
        %1425 = vmatprep.subr.bf16.mxu0 0
        %1426 = vmatpush1.bf16.msra.mxu0 0
        %1427 = vmatprep.subr.bf16.mxu0 0
        %1428 = vmatpush1.bf16.msra.mxu0 0
        %1429 = vmatprep.subr.bf16.mxu0 0
        %1430 = vmatpush1.bf16.msra.mxu0 0
        %1431 = vmatprep.subr.bf16.mxu0 0
        %1432 = vmatpush1.bf16.msra.mxu0 0
        %1433 = vmatprep.subr.bf16.mxu0 0
        %1434 = vmatpush1.bf16.msra.mxu0 0
        %1435 = vmatprep.subr.bf16.mxu0 0
        %1436 = vmatpush1.bf16.msra.mxu0 0
        %1437 = vmatprep.subr.bf16.mxu0 0
        %1438 = vmatpush1.bf16.msra.mxu0 0
        %1439 = vmatprep.subr.bf16.mxu0 0
        %1440 = vmatpush1.bf16.msra.mxu0 0
        %1441 = vmatprep.subr.bf16.mxu0 0
        %1442 = vmatpush1.bf16.msra.mxu0 0
        %1443 = vmatprep.subr.bf16.mxu0 0
        %1444 = vmatpush1.bf16.msra.mxu0 0
        %1445 = vmatprep.subr.bf16.mxu0 0
        %1446 = vmatpush1.bf16.msra.mxu0 0
        %1447 = vmatprep.mubr.bf16.mxu0 0
        %1448 = vmatmul.mubr.bf16.gmra.mrb[0].mxu0 %v1413
        %v1449 = vpop.f32.mrb[0].mxu0
        %v1450 = vadd.f32 0.0, %v1449
        %v1451 = vpop.f32.mrb[0].mxu0
        %v1452 = vpop.f32.mrb[0].mxu0
        %v1453 = vadd.f32 0.0, %v1452
        %v1454 = vpop.f32.mrb[0].mxu0
        %1455 = vdwg.mxu0
        %v1457 = vsel %vm1231, %v1323, 0
        %1459 = vmatprep.subr.bf16.mxu0 0
        %1460 = vmatpush1.bf16.msra.mxu0 %v1019
        %1461 = vmatprep.subr.bf16.mxu0 0
        %1462 = vmatpush1.bf16.msra.mxu0 0
        %1463 = vmatprep.subr.bf16.mxu0 0
        %1464 = vmatpush1.bf16.msra.mxu0 0
        %1465 = vmatprep.subr.bf16.mxu0 0
        %1466 = vmatpush1.bf16.msra.mxu0 0
        %1467 = vmatprep.subr.bf16.mxu0 0
        %1468 = vmatpush1.bf16.msra.mxu0 0
        %1469 = vmatprep.subr.bf16.mxu0 0
        %1470 = vmatpush1.bf16.msra.mxu0 0
        %1471 = vmatprep.subr.bf16.mxu0 0
        %1472 = vmatpush1.bf16.msra.mxu0 0
        %1473 = vmatprep.subr.bf16.mxu0 0
        %1474 = vmatpush1.bf16.msra.mxu0 0
        %1475 = vmatprep.subr.bf16.mxu0 0
        %1476 = vmatpush1.bf16.msra.mxu0 0
        %1477 = vmatprep.subr.bf16.mxu0 0
        %1478 = vmatpush1.bf16.msra.mxu0 0
        %1479 = vmatprep.subr.bf16.mxu0 0
        %1480 = vmatpush1.bf16.msra.mxu0 0
        %1481 = vmatprep.subr.bf16.mxu0 0
        %1482 = vmatpush1.bf16.msra.mxu0 0
        %1483 = vmatprep.subr.bf16.mxu0 0
        %1484 = vmatpush1.bf16.msra.mxu0 0
        %1485 = vmatprep.subr.bf16.mxu0 0
        %1486 = vmatpush1.bf16.msra.mxu0 0
        %1487 = vmatprep.subr.bf16.mxu0 0
        %1488 = vmatpush1.bf16.msra.mxu0 0
        %1489 = vmatprep.subr.bf16.mxu0 0
        %1490 = vmatpush1.bf16.msra.mxu0 0
        %1491 = vmatprep.mubr.bf16.mxu0 0
        %1492 = vmatmul.mubr.bf16.gmra.mrb[0].mxu0 %v1457
        %v1493 = vpop.f32.mrb[0].mxu0
        %v1494 = vadd.f32 0.0, %v1493
        %v1495 = vpop.f32.mrb[0].mxu0
        %v1496 = vpop.f32.mrb[0].mxu0
        %v1497 = vadd.f32 0.0, %v1496
        %v1498 = vpop.f32.mrb[0].mxu0
        %1499 = vdwg.mxu0
        %1502 = vrot.lane.b32.xlu0 %v1406, 32
        %v1503 = vpop.permute.xlu0 %1502
        %1504 = vrot.lane.b32.xlu0 %v1409, 32
        %v1505 = vpop.permute.xlu0 %1504
        %1510 = vrot.lane.b32.xlu0 %v1450, 64
        %v1511 = vpop.permute.xlu0 %1510
        %1512 = vrot.lane.b32.xlu0 %v1453, 64
        %v1513 = vpop.permute.xlu0 %1512
        %1518 = vrot.lane.b32.xlu0 %v1494, 96
        %v1519 = vpop.permute.xlu0 %1518
        %1520 = vrot.lane.b32.xlu0 %v1497, 96
        %v1521 = vpop.permute.xlu0 %1520
        %v1524 = vsel %vm1020, %v1362, %v1503
        %v1525 = vsel %vm1020, %v1365, %v1505
        %vm1526 = vcmask 523264
        %v1527 = vsel %vm1526, %v1524, %v1511
        %v1528 = vsel %vm1526, %v1525, %v1513
        %vm1529 = vcmask 785408
        %v1530 = vsel %vm1529, %v1527, %v1519
        %v1531 = vsel %vm1529, %v1528, %v1521
        %v1532 = vld [vmem:[%s6] sm:$0xf]
        %v1533 = vld [vmem:[%s6 + $0x4] sm:$0xf]
        %v1534 = vld [vmem:[%s6 + $0x8] sm:$0xf]
        %v1535 = vld [vmem:[%s6 + $0xc] sm:$0xf]
        %v1536 = vld [vmem:[%s6 + $0x10] sm:$0xf]
        %v1537 = vld [vmem:[%s6 + $0x14] sm:$0xf]
        %v1538 = vld [vmem:[%s6 + $0x18] sm:$0xf]
        %v1539 = vld [vmem:[%s6 + $0x1c] sm:$0xf]
        %v1540 = vld [vmem:[%s6 + $0x20] sm:$0xf]
        %v1541 = vld [vmem:[%s6 + $0x24] sm:$0xf]
        %v1542 = vld [vmem:[%s6 + $0x28] sm:$0xf]
        %v1543 = vld [vmem:[%s6 + $0x2c] sm:$0xf]
        %v1544 = vld [vmem:[%s6 + $0x30] sm:$0xf]
        %v1545 = vld [vmem:[%s6 + $0x34] sm:$0xf]
        %v1546 = vld [vmem:[%s6 + $0x38] sm:$0xf]
        %v1547 = vld [vmem:[%s6 + $0x3c] sm:$0xf]
        %v1548 = vpack.c.bf16 %v1531, %v1530
        %v1549 = vld [vmem:[%s7] sm:$0x1]
        %v1551 = vlaneseq
        %v1552 = vshrl.u32 %v1551, 7
        %v1553 = vsub.s32 0, %v1552
        %v1554 = vrot.slane %v1549, %v1553
        %v1572 = vunpack.c.l.b16 %v1532
        %v1573 = vunpack.c.l.b16 %v1533
        %v1574 = vunpack.c.l.b16 %v1534
        %v1575 = vunpack.c.l.b16 %v1535
        %v1576 = vunpack.c.l.b16 %v1536
        %v1577 = vunpack.c.l.b16 %v1537
        %v1578 = vunpack.c.l.b16 %v1538
        %v1579 = vunpack.c.l.b16 %v1539
        %v1580 = vunpack.c.l.b16 %v1540
        %v1581 = vunpack.c.l.b16 %v1541
        %v1582 = vunpack.c.l.b16 %v1542
        %v1583 = vunpack.c.l.b16 %v1543
        %v1584 = vunpack.c.l.b16 %v1544
        %v1585 = vunpack.c.l.b16 %v1545
        %v1586 = vunpack.c.l.b16 %v1546
        %v1587 = vunpack.c.l.b16 %v1547
        %v1588 = vpack.c.b16 %v1573, %v1572
        %v1589 = vpack.c.b16 %v1575, %v1574
        %v1590 = vpack.c.b16 %v1577, %v1576
        %v1591 = vpack.c.b16 %v1579, %v1578
        %v1592 = vpack.c.b16 %v1581, %v1580
        %v1593 = vpack.c.b16 %v1583, %v1582
        %v1594 = vpack.c.b16 %v1585, %v1584
        %v1595 = vpack.c.b16 %v1587, %v1586
        %1604 = vmatprep.subr.bf16.mxu0 0
        %1605 = vmatpush1.bf16.msra.mxu0 %v1588
        %1606 = vmatprep.subr.bf16.mxu0 0
        %1607 = vmatpush1.bf16.msra.mxu0 %v1589
        %1608 = vmatprep.subr.bf16.mxu0 0
        %1609 = vmatpush1.bf16.msra.mxu0 %v1590
        %1610 = vmatprep.subr.bf16.mxu0 0
        %1611 = vmatpush1.bf16.msra.mxu0 %v1591
        %1612 = vmatprep.subr.bf16.mxu0 0
        %1613 = vmatpush1.bf16.msra.mxu0 %v1592
        %1614 = vmatprep.subr.bf16.mxu0 0
        %1615 = vmatpush1.bf16.msra.mxu0 %v1593
        %1616 = vmatprep.subr.bf16.mxu0 0
        %1617 = vmatpush1.bf16.msra.mxu0 %v1594
        %1618 = vmatprep.subr.bf16.mxu0 0
        %1619 = vmatpush1.bf16.msra.mxu0 %v1595
        %1620 = vmatprep.subr.bf16.mxu0 0
        %1621 = vmatpush1.bf16.msra.mxu0 0
        %1622 = vmatprep.subr.bf16.mxu0 0
        %1623 = vmatpush1.bf16.msra.mxu0 0
        %1624 = vmatprep.subr.bf16.mxu0 0
        %1625 = vmatpush1.bf16.msra.mxu0 0
        %1626 = vmatprep.subr.bf16.mxu0 0
        %1627 = vmatpush1.bf16.msra.mxu0 0
        %1628 = vmatprep.subr.bf16.mxu0 0
        %1629 = vmatpush1.bf16.msra.mxu0 0
        %1630 = vmatprep.subr.bf16.mxu0 0
        %1631 = vmatpush1.bf16.msra.mxu0 0
        %1632 = vmatprep.subr.bf16.mxu0 0
        %1633 = vmatpush1.bf16.msra.mxu0 0
        %1634 = vmatprep.subr.bf16.mxu0 0
        %1635 = vmatpush1.bf16.msra.mxu0 0
        %1636 = vmatprep.mubr.bf16.mxu0 0
        %1637 = vmatmul.mubr.bf16.gmra.mrb[0].mxu0 %v1548
        %v1638 = vpop.f32.mrb[0].mxu0
        %v1639 = vadd.f32 %v1554, %v1638
        %v1640 = vpop.f32.mrb[0].mxu0
        %v1641 = vpop.f32.mrb[0].mxu0
        %v1642 = vadd.f32 %v1554, %v1641
        %v1643 = vpop.f32.mrb[0].mxu0
        %1644 = vdwg.mxu0
        %v1645 = vadd.f32 %v1639, %v683
        %v1646 = vadd.f32 %v1642, %v684
        %v1647 = vld [vmem:[%s8] sm:$0x1]
        %v1648 = vld [vmem:[%s9] sm:$0x1]
        %1649 = vadd.xlane.f32.xlu0 %v1645
        %v1650 = vpop.xlane.xlu0 %1649
        %1651 = vadd.xlane.f32.xlu0 %v1646
        %v1652 = vpop.xlane.xlu0 %1651
        %v1653 = vmul.f32 %v1650, %v650
        %v1654 = vmul.f32 %v1652, %v650
        %v1655 = vsub.f32 %v1645, %v1653
        %v1656 = vsub.f32 %v1646, %v1654
        %v1657 = vmul.f32 %v1655, %v1655
        %v1658 = vmul.f32 %v1656, %v1656
        %1659 = vadd.xlane.f32.xlu0 %v1657
        %v1660 = vpop.xlane.xlu0 %1659
        %1661 = vadd.xlane.f32.xlu0 %v1658
        %v1662 = vpop.xlane.xlu0 %1661
        %v1663 = vmul.f32 %v1660, %v650
        %v1664 = vmul.f32 %v1662, %v650
        %v1665 = vadd.f32 %v1663, 1e-12
        %v1666 = vadd.f32 %v1664, 1e-12
        %v1667 = vrsqrt.pop %v1665
        %v1668 = vrsqrt.pop %v1666
        %v1669 = vmul.f32 %v1655, %v1667
        %v1670 = vmul.f32 %v1656, %v1668
        %v1672 = vlaneseq
        %v1673 = vshrl.u32 %v1672, 7
        %v1674 = vsub.s32 0, %v1673
        %v1675 = vrot.slane %v1647, %v1674
        %v1677 = vmul.f32 %v1669, %v1675
        %v1678 = vmul.f32 %v1670, %v1675
        %v1680 = vlaneseq
        %v1681 = vshrl.u32 %v1680, 7
        %v1682 = vsub.s32 0, %v1681
        %v1683 = vrot.slane %v1648, %v1682
        %v1685 = vadd.f32 %v1677, %v1683
        %v1686 = vadd.f32 %v1678, %v1683
        %v1687 = vld [vmem:[%s10] sm:$0xff]
        %v1688 = vld [vmem:[%s10 + $0x8] sm:$0xff]
        %v1689 = vld [vmem:[%s10 + $0x10] sm:$0xff]
        %v1690 = vld [vmem:[%s10 + $0x18] sm:$0xff]
        %v1691 = vld [vmem:[%s10 + $0x20] sm:$0xff]
        %v1692 = vld [vmem:[%s10 + $0x28] sm:$0xff]
        %v1693 = vld [vmem:[%s10 + $0x30] sm:$0xff]
        %v1694 = vld [vmem:[%s10 + $0x38] sm:$0xff]
        %v1695 = vld [vmem:[%s10 + $0x40] sm:$0xff]
        %v1696 = vld [vmem:[%s10 + $0x48] sm:$0xff]
        %v1697 = vld [vmem:[%s10 + $0x50] sm:$0xff]
        %v1698 = vld [vmem:[%s10 + $0x58] sm:$0xff]
        %v1699 = vld [vmem:[%s10 + $0x60] sm:$0xff]
        %v1700 = vld [vmem:[%s10 + $0x68] sm:$0xff]
        %v1701 = vld [vmem:[%s10 + $0x70] sm:$0xff]
        %v1702 = vld [vmem:[%s10 + $0x78] sm:$0xff]
        %v1703 = vpack.c.bf16 %v1686, %v1685
        %v1704 = vld [vmem:[%s11] sm:$0x3]
        %v1706 = vlaneseq
        %v1707 = vshrl.u32 %v1706, 7
        %v1708 = vsub.s32 0, %v1707
        %v1709 = vrot.slane %v1704, %v1708
        %v1710 = vlaneseq
        %v1711 = vshrl.u32 %v1710, 7
        %v1712 = vsub.s32 1, %v1711
        %v1713 = vrot.slane %v1704, %v1712
        %v1732 = vunpack.c.l.b16 %v1687
        %v1733 = vunpack.c.h.b16 %v1687
        %v1734 = vunpack.c.l.b16 %v1688
        %v1735 = vunpack.c.h.b16 %v1688
        %v1736 = vunpack.c.l.b16 %v1689
        %v1737 = vunpack.c.h.b16 %v1689
        %v1738 = vunpack.c.l.b16 %v1690
        %v1739 = vunpack.c.h.b16 %v1690
        %v1740 = vunpack.c.l.b16 %v1691
        %v1741 = vunpack.c.h.b16 %v1691
        %v1742 = vunpack.c.l.b16 %v1692
        %v1743 = vunpack.c.h.b16 %v1692
        %v1744 = vunpack.c.l.b16 %v1693
        %v1745 = vunpack.c.h.b16 %v1693
        %v1746 = vunpack.c.l.b16 %v1694
        %v1747 = vunpack.c.h.b16 %v1694
        %v1748 = vunpack.c.l.b16 %v1695
        %v1749 = vunpack.c.h.b16 %v1695
        %v1750 = vunpack.c.l.b16 %v1696
        %v1751 = vunpack.c.h.b16 %v1696
        %v1752 = vunpack.c.l.b16 %v1697
        %v1753 = vunpack.c.h.b16 %v1697
        %v1754 = vunpack.c.l.b16 %v1698
        %v1755 = vunpack.c.h.b16 %v1698
        %v1756 = vunpack.c.l.b16 %v1699
        %v1757 = vunpack.c.h.b16 %v1699
        %v1758 = vunpack.c.l.b16 %v1700
        %v1759 = vunpack.c.h.b16 %v1700
        %v1760 = vunpack.c.l.b16 %v1701
        %v1761 = vunpack.c.h.b16 %v1701
        %v1762 = vunpack.c.l.b16 %v1702
        %v1763 = vunpack.c.h.b16 %v1702
        %v1764 = vpack.c.b16 %v1734, %v1732
        %v1765 = vpack.c.b16 %v1735, %v1733
        %v1766 = vpack.c.b16 %v1738, %v1736
        %v1767 = vpack.c.b16 %v1739, %v1737
        %v1768 = vpack.c.b16 %v1742, %v1740
        %v1769 = vpack.c.b16 %v1743, %v1741
        %v1770 = vpack.c.b16 %v1746, %v1744
        %v1771 = vpack.c.b16 %v1747, %v1745
        %v1772 = vpack.c.b16 %v1750, %v1748
        %v1773 = vpack.c.b16 %v1751, %v1749
        %v1774 = vpack.c.b16 %v1754, %v1752
        %v1775 = vpack.c.b16 %v1755, %v1753
        %v1776 = vpack.c.b16 %v1758, %v1756
        %v1777 = vpack.c.b16 %v1759, %v1757
        %v1778 = vpack.c.b16 %v1762, %v1760
        %v1779 = vpack.c.b16 %v1763, %v1761
        %1796 = vmatprep.subr.bf16.mxu0 %v1765
        %1797 = vmatpush1.bf16.msra.mxu0 %v1764
        %1798 = vmatprep.subr.bf16.mxu0 %v1767
        %1799 = vmatpush1.bf16.msra.mxu0 %v1766
        %1800 = vmatprep.subr.bf16.mxu0 %v1769
        %1801 = vmatpush1.bf16.msra.mxu0 %v1768
        %1802 = vmatprep.subr.bf16.mxu0 %v1771
        %1803 = vmatpush1.bf16.msra.mxu0 %v1770
        %1804 = vmatprep.subr.bf16.mxu0 %v1773
        %1805 = vmatpush1.bf16.msra.mxu0 %v1772
        %1806 = vmatprep.subr.bf16.mxu0 %v1775
        %1807 = vmatpush1.bf16.msra.mxu0 %v1774
        %1808 = vmatprep.subr.bf16.mxu0 %v1777
        %1809 = vmatpush1.bf16.msra.mxu0 %v1776
        %1810 = vmatprep.subr.bf16.mxu0 %v1779
        %1811 = vmatpush1.bf16.msra.mxu0 %v1778
        %1812 = vmatprep.subr.bf16.mxu0 0
        %1813 = vmatpush1.bf16.msra.mxu0 0
        %1814 = vmatprep.subr.bf16.mxu0 0
        %1815 = vmatpush1.bf16.msra.mxu0 0
        %1816 = vmatprep.subr.bf16.mxu0 0
        %1817 = vmatpush1.bf16.msra.mxu0 0
        %1818 = vmatprep.subr.bf16.mxu0 0
        %1819 = vmatpush1.bf16.msra.mxu0 0
        %1820 = vmatprep.subr.bf16.mxu0 0
        %1821 = vmatpush1.bf16.msra.mxu0 0
        %1822 = vmatprep.subr.bf16.mxu0 0
        %1823 = vmatpush1.bf16.msra.mxu0 0
        %1824 = vmatprep.subr.bf16.mxu0 0
        %1825 = vmatpush1.bf16.msra.mxu0 0
        %1826 = vmatprep.subr.bf16.mxu0 0
        %1827 = vmatpush1.bf16.msra.mxu0 0
        %1828 = vmatprep.mubr.bf16.mxu0 0
        %1829 = vmatmul.mubr.bf16.gmra.mrb[0].mxu0 %v1703
        %v1830 = vpop.f32.mrb[0].mxu0
        %v1831 = vadd.f32 %v1709, %v1830
        %v1832 = vpop.f32.mrb[0].mxu0
        %v1833 = vadd.f32 %v1713, %v1832
        %v1834 = vpop.f32.mrb[0].mxu0
        %v1835 = vadd.f32 %v1709, %v1834
        %v1836 = vpop.f32.mrb[0].mxu0
        %v1837 = vadd.f32 %v1713, %v1836
        %1838 = vdwg.mxu0
        %v1839 = vmul.f32 %v1831, %v1831
        %v1840 = vmul.f32 %v1833, %v1833
        %v1841 = vmul.f32 %v1835, %v1835
        %v1842 = vmul.f32 %v1837, %v1837
        %v1843 = vmul.f32 %v1831, %v1839
        %v1844 = vmul.f32 %v1833, %v1840
        %v1845 = vmul.f32 %v1835, %v1841
        %v1846 = vmul.f32 %v1837, %v1842
        %v1847 = vmul.f32 %v1843, 0.044715
        %v1848 = vmul.f32 %v1844, 0.044715
        %v1849 = vmul.f32 %v1845, 0.044715
        %v1850 = vmul.f32 %v1846, 0.044715
        %v1851 = vadd.f32 %v1831, %v1847
        %v1852 = vadd.f32 %v1833, %v1848
        %v1853 = vadd.f32 %v1835, %v1849
        %v1854 = vadd.f32 %v1837, %v1850
        %v1855 = vmul.f32 %v1851, 0.7978846
        %v1856 = vmul.f32 %v1852, 0.7978846
        %v1857 = vmul.f32 %v1853, 0.7978846
        %v1858 = vmul.f32 %v1854, 0.7978846
        %v1859 = vtanh.pop %v1855
        %v1860 = vtanh.pop %v1856
        %v1861 = vtanh.pop %v1857
        %v1862 = vtanh.pop %v1858
        %v1863 = vadd.f32 %v1859, 1.0
        %v1864 = vadd.f32 %v1860, 1.0
        %v1865 = vadd.f32 %v1861, 1.0
        %v1866 = vadd.f32 %v1862, 1.0
        %v1867 = vmul.f32 %v1863, 0.5
        %v1868 = vmul.f32 %v1864, 0.5
        %v1869 = vmul.f32 %v1865, 0.5
        %v1870 = vmul.f32 %v1866, 0.5
        %v1871 = vmul.f32 %v1831, %v1867
        %v1872 = vmul.f32 %v1833, %v1868
        %v1873 = vmul.f32 %v1835, %v1869
        %v1874 = vmul.f32 %v1837, %v1870
        %v1875 = vld [vmem:[%s12] sm:$0xf]
        %v1876 = vld [vmem:[%s12 + $0x4] sm:$0xf]
        %v1877 = vld [vmem:[%s12 + $0x8] sm:$0xf]
        %v1878 = vld [vmem:[%s12 + $0xc] sm:$0xf]
        %v1879 = vld [vmem:[%s12 + $0x10] sm:$0xf]
        %v1880 = vld [vmem:[%s12 + $0x14] sm:$0xf]
        %v1881 = vld [vmem:[%s12 + $0x18] sm:$0xf]
        %v1882 = vld [vmem:[%s12 + $0x1c] sm:$0xf]
        %v1883 = vld [vmem:[%s12 + $0x20] sm:$0xf]
        %v1884 = vld [vmem:[%s12 + $0x24] sm:$0xf]
        %v1885 = vld [vmem:[%s12 + $0x28] sm:$0xf]
        %v1886 = vld [vmem:[%s12 + $0x2c] sm:$0xf]
        %v1887 = vld [vmem:[%s12 + $0x30] sm:$0xf]
        %v1888 = vld [vmem:[%s12 + $0x34] sm:$0xf]
        %v1889 = vld [vmem:[%s12 + $0x38] sm:$0xf]
        %v1890 = vld [vmem:[%s12 + $0x3c] sm:$0xf]
        %v1891 = vld [vmem:[%s12 + $0x40] sm:$0xf]
        %v1892 = vld [vmem:[%s12 + $0x44] sm:$0xf]
        %v1893 = vld [vmem:[%s12 + $0x48] sm:$0xf]
        %v1894 = vld [vmem:[%s12 + $0x4c] sm:$0xf]
        %v1895 = vld [vmem:[%s12 + $0x50] sm:$0xf]
        %v1896 = vld [vmem:[%s12 + $0x54] sm:$0xf]
        %v1897 = vld [vmem:[%s12 + $0x58] sm:$0xf]
        %v1898 = vld [vmem:[%s12 + $0x5c] sm:$0xf]
        %v1899 = vld [vmem:[%s12 + $0x60] sm:$0xf]
        %v1900 = vld [vmem:[%s12 + $0x64] sm:$0xf]
        %v1901 = vld [vmem:[%s12 + $0x68] sm:$0xf]
        %v1902 = vld [vmem:[%s12 + $0x6c] sm:$0xf]
        %v1903 = vld [vmem:[%s12 + $0x70] sm:$0xf]
        %v1904 = vld [vmem:[%s12 + $0x74] sm:$0xf]
        %v1905 = vld [vmem:[%s12 + $0x78] sm:$0xf]
        %v1906 = vld [vmem:[%s12 + $0x7c] sm:$0xf]
        %v1907 = vpack.c.bf16 %v1873, %v1871
        %v1908 = vpack.c.bf16 %v1874, %v1872
        %v1909 = vld [vmem:[%s13] sm:$0x1]
        %v1911 = vlaneseq
        %v1912 = vshrl.u32 %v1911, 7
        %v1913 = vsub.s32 0, %v1912
        %v1914 = vrot.slane %v1909, %v1913
        %v1948 = vunpack.c.l.b16 %v1875
        %v1949 = vunpack.c.l.b16 %v1876
        %v1950 = vunpack.c.l.b16 %v1877
        %v1951 = vunpack.c.l.b16 %v1878
        %v1952 = vunpack.c.l.b16 %v1879
        %v1953 = vunpack.c.l.b16 %v1880
        %v1954 = vunpack.c.l.b16 %v1881
        %v1955 = vunpack.c.l.b16 %v1882
        %v1956 = vunpack.c.l.b16 %v1883
        %v1957 = vunpack.c.l.b16 %v1884
        %v1958 = vunpack.c.l.b16 %v1885
        %v1959 = vunpack.c.l.b16 %v1886
        %v1960 = vunpack.c.l.b16 %v1887
        %v1961 = vunpack.c.l.b16 %v1888
        %v1962 = vunpack.c.l.b16 %v1889
        %v1963 = vunpack.c.l.b16 %v1890
        %v1964 = vunpack.c.l.b16 %v1891
        %v1965 = vunpack.c.l.b16 %v1892
        %v1966 = vunpack.c.l.b16 %v1893
        %v1967 = vunpack.c.l.b16 %v1894
        %v1968 = vunpack.c.l.b16 %v1895
        %v1969 = vunpack.c.l.b16 %v1896
        %v1970 = vunpack.c.l.b16 %v1897
        %v1971 = vunpack.c.l.b16 %v1898
        %v1972 = vunpack.c.l.b16 %v1899
        %v1973 = vunpack.c.l.b16 %v1900
        %v1974 = vunpack.c.l.b16 %v1901
        %v1975 = vunpack.c.l.b16 %v1902
        %v1976 = vunpack.c.l.b16 %v1903
        %v1977 = vunpack.c.l.b16 %v1904
        %v1978 = vunpack.c.l.b16 %v1905
        %v1979 = vunpack.c.l.b16 %v1906
        %v1980 = vpack.c.b16 %v1949, %v1948
        %v1981 = vpack.c.b16 %v1951, %v1950
        %v1982 = vpack.c.b16 %v1953, %v1952
        %v1983 = vpack.c.b16 %v1955, %v1954
        %v1984 = vpack.c.b16 %v1957, %v1956
        %v1985 = vpack.c.b16 %v1959, %v1958
        %v1986 = vpack.c.b16 %v1961, %v1960
        %v1987 = vpack.c.b16 %v1963, %v1962
        %v1988 = vpack.c.b16 %v1965, %v1964
        %v1989 = vpack.c.b16 %v1967, %v1966
        %v1990 = vpack.c.b16 %v1969, %v1968
        %v1991 = vpack.c.b16 %v1971, %v1970
        %v1992 = vpack.c.b16 %v1973, %v1972
        %v1993 = vpack.c.b16 %v1975, %v1974
        %v1994 = vpack.c.b16 %v1977, %v1976
        %v1995 = vpack.c.b16 %v1979, %v1978
        %2012 = vmatprep.subr.bf16.mxu0 0
        %2013 = vmatpush1.bf16.msra.mxu0 %v1980
        %2014 = vmatprep.subr.bf16.mxu0 0
        %2015 = vmatpush1.bf16.msra.mxu0 %v1981
        %2016 = vmatprep.subr.bf16.mxu0 0
        %2017 = vmatpush1.bf16.msra.mxu0 %v1982
        %2018 = vmatprep.subr.bf16.mxu0 0
        %2019 = vmatpush1.bf16.msra.mxu0 %v1983
        %2020 = vmatprep.subr.bf16.mxu0 0
        %2021 = vmatpush1.bf16.msra.mxu0 %v1984
        %2022 = vmatprep.subr.bf16.mxu0 0
        %2023 = vmatpush1.bf16.msra.mxu0 %v1985
        %2024 = vmatprep.subr.bf16.mxu0 0
        %2025 = vmatpush1.bf16.msra.mxu0 %v1986
        %2026 = vmatprep.subr.bf16.mxu0 0
        %2027 = vmatpush1.bf16.msra.mxu0 %v1987
        %2028 = vmatprep.subr.bf16.mxu0 0
        %2029 = vmatpush1.bf16.msra.mxu0 %v1988
        %2030 = vmatprep.subr.bf16.mxu0 0
        %2031 = vmatpush1.bf16.msra.mxu0 %v1989
        %2032 = vmatprep.subr.bf16.mxu0 0
        %2033 = vmatpush1.bf16.msra.mxu0 %v1990
        %2034 = vmatprep.subr.bf16.mxu0 0
        %2035 = vmatpush1.bf16.msra.mxu0 %v1991
        %2036 = vmatprep.subr.bf16.mxu0 0
        %2037 = vmatpush1.bf16.msra.mxu0 %v1992
        %2038 = vmatprep.subr.bf16.mxu0 0
        %2039 = vmatpush1.bf16.msra.mxu0 %v1993
        %2040 = vmatprep.subr.bf16.mxu0 0
        %2041 = vmatpush1.bf16.msra.mxu0 %v1994
        %2042 = vmatprep.subr.bf16.mxu0 0
        %2043 = vmatpush1.bf16.msra.mxu0 %v1995
        %2044 = vmatprep.mubr.bf16.mxu0 %v1908
        %2045 = vmatmul.mubr.bf16.gmra.mrb[0].mxu0 %v1907
        %v2046 = vpop.f32.mrb[0].mxu0
        %v2047 = vadd.f32 %v1914, %v2046
        %v2048 = vpop.f32.mrb[0].mxu0
        %v2049 = vpop.f32.mrb[0].mxu0
        %v2050 = vadd.f32 %v1914, %v2049
        %v2051 = vpop.f32.mrb[0].mxu0
        %2052 = vdwg.mxu0
        %v2053 = vadd.f32 %v2047, %v1685
        %v2054 = vadd.f32 %v2050, %v1686
        %v2055 = vld [vmem:[%s14] sm:$0x1]
        %v2056 = vld [vmem:[%s15] sm:$0x1]
        %2057 = vadd.xlane.f32.xlu0 %v2053
        %v2058 = vpop.xlane.xlu0 %2057
        %2059 = vadd.xlane.f32.xlu0 %v2054
        %v2060 = vpop.xlane.xlu0 %2059
        %v2061 = vmul.f32 %v2058, %v650
        %v2062 = vmul.f32 %v2060, %v650
        %v2063 = vsub.f32 %v2053, %v2061
        %v2064 = vsub.f32 %v2054, %v2062
        %v2065 = vmul.f32 %v2063, %v2063
        %v2066 = vmul.f32 %v2064, %v2064
        %2067 = vadd.xlane.f32.xlu0 %v2065
        %v2068 = vpop.xlane.xlu0 %2067
        %2069 = vadd.xlane.f32.xlu0 %v2066
        %v2070 = vpop.xlane.xlu0 %2069
        %v2071 = vmul.f32 %v2068, %v650
        %v2072 = vmul.f32 %v2070, %v650
        %v2073 = vadd.f32 %v2071, 1e-12
        %v2074 = vadd.f32 %v2072, 1e-12
        %v2075 = vrsqrt.pop %v2073
        %v2076 = vrsqrt.pop %v2074
        %v2077 = vmul.f32 %v2063, %v2075
        %v2078 = vmul.f32 %v2064, %v2076
        %v2080 = vlaneseq
        %v2081 = vshrl.u32 %v2080, 7
        %v2082 = vsub.s32 0, %v2081
        %v2083 = vrot.slane %v2055, %v2082
        %v2085 = vmul.f32 %v2077, %v2083
        %v2086 = vmul.f32 %v2078, %v2083
        %v2088 = vlaneseq
        %v2089 = vshrl.u32 %v2088, 7
        %v2090 = vsub.s32 0, %v2089
        %v2091 = vrot.slane %v2056, %v2090
        %v2093 = vadd.f32 %v2085, %v2091
        %v2094 = vadd.f32 %v2086, %v2091
        %s2095 = scalar_lea.vmem %s4, 192
        %v2096 = vld [vmem:[%s2095] sm:$0xff]
        %v2097 = vld [vmem:[%s2095 + $0x8] sm:$0xf]
        %v2098 = vld [vmem:[%s2095 + $0xc] sm:$0xff]
        %v2099 = vld [vmem:[%s2095 + $0x14] sm:$0xf]
        %v2100 = vld [vmem:[%s2095 + $0x18] sm:$0xff]
        %v2101 = vld [vmem:[%s2095 + $0x20] sm:$0xf]
        %v2102 = vld [vmem:[%s2095 + $0x24] sm:$0xff]
        %v2103 = vld [vmem:[%s2095 + $0x2c] sm:$0xf]
        %v2104 = vld [vmem:[%s2095 + $0x30] sm:$0xff]
        %v2105 = vld [vmem:[%s2095 + $0x38] sm:$0xf]
        %v2106 = vld [vmem:[%s2095 + $0x3c] sm:$0xff]
        %v2107 = vld [vmem:[%s2095 + $0x44] sm:$0xf]
        %v2108 = vld [vmem:[%s2095 + $0x48] sm:$0xff]
        %v2109 = vld [vmem:[%s2095 + $0x50] sm:$0xf]
        %v2110 = vld [vmem:[%s2095 + $0x54] sm:$0xff]
        %v2111 = vld [vmem:[%s2095 + $0x5c] sm:$0xf]
        %v2112 = vld [vmem:[%s2095 + $0x60] sm:$0xff]
        %v2113 = vld [vmem:[%s2095 + $0x68] sm:$0xf]
        %v2114 = vld [vmem:[%s2095 + $0x6c] sm:$0xff]
        %v2115 = vld [vmem:[%s2095 + $0x74] sm:$0xf]
        %v2116 = vld [vmem:[%s2095 + $0x78] sm:$0xff]
        %v2117 = vld [vmem:[%s2095 + $0x80] sm:$0xf]
        %v2118 = vld [vmem:[%s2095 + $0x84] sm:$0xff]
        %v2119 = vld [vmem:[%s2095 + $0x8c] sm:$0xf]
        %v2120 = vld [vmem:[%s2095 + $0x90] sm:$0xff]
        %v2121 = vld [vmem:[%s2095 + $0x98] sm:$0xf]
        %v2122 = vld [vmem:[%s2095 + $0x9c] sm:$0xff]
        %v2123 = vld [vmem:[%s2095 + $0xa4] sm:$0xf]
        %v2124 = vld [vmem:[%s2095 + $0xa8] sm:$0xff]
        %v2125 = vld [vmem:[%s2095 + $0xb0] sm:$0xf]
        %v2126 = vld [vmem:[%s2095 + $0xb4] sm:$0xff]
        %v2127 = vld [vmem:[%s2095 + $0xbc] sm:$0xf]
        %v2128 = vpack.c.bf16 %v2094, %v2093
        %s2129 = scalar_lea.vmem %s5, 3
        %v2130 = vld [vmem:[%s2129] sm:$0x7]
        %v2132 = vlaneseq
        %v2133 = vshrl.u32 %v2132, 7
        %v2134 = vsub.s32 0, %v2133
        %v2135 = vrot.slane %v2130, %v2134
        %v2136 = vlaneseq
        %v2137 = vshrl.u32 %v2136, 7
        %v2138 = vsub.s32 1, %v2137
        %v2139 = vrot.slane %v2130, %v2138
        %v2140 = vlaneseq
        %v2141 = vshrl.u32 %v2140, 7
        %v2142 = vsub.s32 2, %v2141
        %v2143 = vrot.slane %v2130, %v2142
        %v2179 = vunpack.c.l.b16 %v2096
        %v2180 = vunpack.c.h.b16 %v2096
        %v2181 = vunpack.c.l.b16 %v2097
        %v2182 = vunpack.c.l.b16 %v2098
        %v2183 = vunpack.c.h.b16 %v2098
        %v2184 = vunpack.c.l.b16 %v2099
        %v2185 = vunpack.c.l.b16 %v2100
        %v2186 = vunpack.c.h.b16 %v2100
        %v2187 = vunpack.c.l.b16 %v2101
        %v2188 = vunpack.c.l.b16 %v2102
        %v2189 = vunpack.c.h.b16 %v2102
        %v2190 = vunpack.c.l.b16 %v2103
        %v2191 = vunpack.c.l.b16 %v2104
        %v2192 = vunpack.c.h.b16 %v2104
        %v2193 = vunpack.c.l.b16 %v2105
        %v2194 = vunpack.c.l.b16 %v2106
        %v2195 = vunpack.c.h.b16 %v2106
        %v2196 = vunpack.c.l.b16 %v2107
        %v2197 = vunpack.c.l.b16 %v2108
        %v2198 = vunpack.c.h.b16 %v2108
        %v2199 = vunpack.c.l.b16 %v2109
        %v2200 = vunpack.c.l.b16 %v2110
        %v2201 = vunpack.c.h.b16 %v2110
        %v2202 = vunpack.c.l.b16 %v2111
        %v2203 = vunpack.c.l.b16 %v2112
        %v2204 = vunpack.c.h.b16 %v2112
        %v2205 = vunpack.c.l.b16 %v2113
        %v2206 = vunpack.c.l.b16 %v2114
        %v2207 = vunpack.c.h.b16 %v2114
        %v2208 = vunpack.c.l.b16 %v2115
        %v2209 = vunpack.c.l.b16 %v2116
        %v2210 = vunpack.c.h.b16 %v2116
        %v2211 = vunpack.c.l.b16 %v2117
        %v2212 = vunpack.c.l.b16 %v2118
        %v2213 = vunpack.c.h.b16 %v2118
        %v2214 = vunpack.c.l.b16 %v2119
        %v2215 = vunpack.c.l.b16 %v2120
        %v2216 = vunpack.c.h.b16 %v2120
        %v2217 = vunpack.c.l.b16 %v2121
        %v2218 = vunpack.c.l.b16 %v2122
        %v2219 = vunpack.c.h.b16 %v2122
        %v2220 = vunpack.c.l.b16 %v2123
        %v2221 = vunpack.c.l.b16 %v2124
        %v2222 = vunpack.c.h.b16 %v2124
        %v2223 = vunpack.c.l.b16 %v2125
        %v2224 = vunpack.c.l.b16 %v2126
        %v2225 = vunpack.c.h.b16 %v2126
        %v2226 = vunpack.c.l.b16 %v2127
        %v2227 = vpack.c.b16 %v2182, %v2179
        %v2228 = vpack.c.b16 %v2183, %v2180
        %v2229 = vpack.c.b16 %v2184, %v2181
        %v2230 = vpack.c.b16 %v2188, %v2185
        %v2231 = vpack.c.b16 %v2189, %v2186
        %v2232 = vpack.c.b16 %v2190, %v2187
        %v2233 = vpack.c.b16 %v2194, %v2191
        %v2234 = vpack.c.b16 %v2195, %v2192
        %v2235 = vpack.c.b16 %v2196, %v2193
        %v2236 = vpack.c.b16 %v2200, %v2197
        %v2237 = vpack.c.b16 %v2201, %v2198
        %v2238 = vpack.c.b16 %v2202, %v2199
        %v2239 = vpack.c.b16 %v2206, %v2203
        %v2240 = vpack.c.b16 %v2207, %v2204
        %v2241 = vpack.c.b16 %v2208, %v2205
        %v2242 = vpack.c.b16 %v2212, %v2209
        %v2243 = vpack.c.b16 %v2213, %v2210
        %v2244 = vpack.c.b16 %v2214, %v2211
        %v2245 = vpack.c.b16 %v2218, %v2215
        %v2246 = vpack.c.b16 %v2219, %v2216
        %v2247 = vpack.c.b16 %v2220, %v2217
        %v2248 = vpack.c.b16 %v2224, %v2221
        %v2249 = vpack.c.b16 %v2225, %v2222
        %v2250 = vpack.c.b16 %v2226, %v2223
        %2275 = vmatprep.subr.bf16.mxu0 %v2228
        %2276 = vmatpush1.bf16.msra.mxu0 %v2227
        %2277 = vmatprep.subr.bf16.mxu0 %v2231
        %2278 = vmatpush1.bf16.msra.mxu0 %v2230
        %2279 = vmatprep.subr.bf16.mxu0 %v2234
        %2280 = vmatpush1.bf16.msra.mxu0 %v2233
        %2281 = vmatprep.subr.bf16.mxu0 %v2237
        %2282 = vmatpush1.bf16.msra.mxu0 %v2236
        %2283 = vmatprep.subr.bf16.mxu0 %v2240
        %2284 = vmatpush1.bf16.msra.mxu0 %v2239
        %2285 = vmatprep.subr.bf16.mxu0 %v2243
        %2286 = vmatpush1.bf16.msra.mxu0 %v2242
        %2287 = vmatprep.subr.bf16.mxu0 %v2246
        %2288 = vmatpush1.bf16.msra.mxu0 %v2245
        %2289 = vmatprep.subr.bf16.mxu0 %v2249
        %2290 = vmatpush1.bf16.msra.mxu0 %v2248
        %2291 = vmatprep.subr.bf16.mxu0 0
        %2292 = vmatpush1.bf16.msra.mxu0 0
        %2293 = vmatprep.subr.bf16.mxu0 0
        %2294 = vmatpush1.bf16.msra.mxu0 0
        %2295 = vmatprep.subr.bf16.mxu0 0
        %2296 = vmatpush1.bf16.msra.mxu0 0
        %2297 = vmatprep.subr.bf16.mxu0 0
        %2298 = vmatpush1.bf16.msra.mxu0 0
        %2299 = vmatprep.subr.bf16.mxu0 0
        %2300 = vmatpush1.bf16.msra.mxu0 0
        %2301 = vmatprep.subr.bf16.mxu0 0
        %2302 = vmatpush1.bf16.msra.mxu0 0
        %2303 = vmatprep.subr.bf16.mxu0 0
        %2304 = vmatpush1.bf16.msra.mxu0 0
        %2305 = vmatprep.subr.bf16.mxu0 0
        %2306 = vmatpush1.bf16.msra.mxu0 0
        %2307 = vmatprep.mubr.bf16.mxu0 0
        %2308 = vmatmul.mubr.bf16.gmra.mrb[0].mxu0 %v2128
        %v2309 = vpop.f32.mrb[0].mxu0
        %v2310 = vadd.f32 %v2135, %v2309
        %v2311 = vpop.f32.mrb[0].mxu0
        %v2312 = vadd.f32 %v2139, %v2311
        %v2313 = vpop.f32.mrb[0].mxu0
        %v2314 = vadd.f32 %v2135, %v2313
        %v2315 = vpop.f32.mrb[0].mxu0
        %v2316 = vadd.f32 %v2139, %v2315
        %2317 = vdwg.mxu0
        %2318 = vmatprep.subr.bf16.mxu0 0
        %2319 = vmatpush1.bf16.msra.mxu0 %v2229
        %2320 = vmatprep.subr.bf16.mxu0 0
        %2321 = vmatpush1.bf16.msra.mxu0 %v2232
        %2322 = vmatprep.subr.bf16.mxu0 0
        %2323 = vmatpush1.bf16.msra.mxu0 %v2235
        %2324 = vmatprep.subr.bf16.mxu0 0
        %2325 = vmatpush1.bf16.msra.mxu0 %v2238
        %2326 = vmatprep.subr.bf16.mxu0 0
        %2327 = vmatpush1.bf16.msra.mxu0 %v2241
        %2328 = vmatprep.subr.bf16.mxu0 0
        %2329 = vmatpush1.bf16.msra.mxu0 %v2244
        %2330 = vmatprep.subr.bf16.mxu0 0
        %2331 = vmatpush1.bf16.msra.mxu0 %v2247
        %2332 = vmatprep.subr.bf16.mxu0 0
        %2333 = vmatpush1.bf16.msra.mxu0 %v2250
        %2334 = vmatprep.subr.bf16.mxu0 0
        %2335 = vmatpush1.bf16.msra.mxu0 0
        %2336 = vmatprep.subr.bf16.mxu0 0
        %2337 = vmatpush1.bf16.msra.mxu0 0
        %2338 = vmatprep.subr.bf16.mxu0 0
        %2339 = vmatpush1.bf16.msra.mxu0 0
        %2340 = vmatprep.subr.bf16.mxu0 0
        %2341 = vmatpush1.bf16.msra.mxu0 0
        %2342 = vmatprep.subr.bf16.mxu0 0
        %2343 = vmatpush1.bf16.msra.mxu0 0
        %2344 = vmatprep.subr.bf16.mxu0 0
        %2345 = vmatpush1.bf16.msra.mxu0 0
        %2346 = vmatprep.subr.bf16.mxu0 0
        %2347 = vmatpush1.bf16.msra.mxu0 0
        %2348 = vmatprep.subr.bf16.mxu0 0
        %2349 = vmatpush1.bf16.msra.mxu0 0
        %2350 = vmatprep.mubr.bf16.mxu0 0
        %2351 = vmatmul.mubr.bf16.gmra.mrb[0].mxu0 %v2128
        %v2352 = vpop.f32.mrb[0].mxu0
        %v2353 = vadd.f32 %v2143, %v2352
        %v2354 = vpop.f32.mrb[0].mxu0
        %v2355 = vpop.f32.mrb[0].mxu0
        %v2356 = vadd.f32 %v2143, %v2355
        %v2357 = vpop.f32.mrb[0].mxu0
        %2358 = vdwg.mxu0
        %2361 = vrot.lane.b32.xlu0 %v2310, 96
        %v2362 = vpop.permute.xlu0 %2361
        %2363 = vrot.lane.b32.xlu0 %v2314, 96
        %v2364 = vpop.permute.xlu0 %2363
        %2367 = vrot.lane.b32.xlu0 %v2310, 64
        %v2368 = vpop.permute.xlu0 %2367
        %2369 = vrot.lane.b32.xlu0 %v2314, 64
        %v2370 = vpop.permute.xlu0 %2369
        %2373 = vrot.lane.b32.xlu0 %v2310, 32
        %v2374 = vpop.permute.xlu0 %2373
        %2375 = vrot.lane.b32.xlu0 %v2314, 32
        %v2376 = vpop.permute.xlu0 %2375
        %v2379 = vpack.c.bf16 %v2314, %v2310
        %v2380 = vpack.c.bf16 %v2364, %v2362
        %v2381 = vpack.c.bf16 %v2370, %v2368
        %v2382 = vpack.c.bf16 %v2376, %v2374
        %2385 = vrot.lane.b32.xlu0 %v2312, 96
        %v2386 = vpop.permute.xlu0 %2385
        %2387 = vrot.lane.b32.xlu0 %v2316, 96
        %v2388 = vpop.permute.xlu0 %2387
        %2391 = vrot.lane.b32.xlu0 %v2312, 64
        %v2392 = vpop.permute.xlu0 %2391
        %2393 = vrot.lane.b32.xlu0 %v2316, 64
        %v2394 = vpop.permute.xlu0 %2393
        %2397 = vrot.lane.b32.xlu0 %v2312, 32
        %v2398 = vpop.permute.xlu0 %2397
        %2399 = vrot.lane.b32.xlu0 %v2316, 32
        %v2400 = vpop.permute.xlu0 %2399
        %v2403 = vpack.c.bf16 %v2316, %v2312
        %v2404 = vpack.c.bf16 %v2388, %v2386
        %v2405 = vpack.c.bf16 %v2394, %v2392
        %v2406 = vpack.c.bf16 %v2400, %v2398
        %2409 = vrot.lane.b32.xlu0 %v2353, 96
        %v2410 = vpop.permute.xlu0 %2409
        %2411 = vrot.lane.b32.xlu0 %v2356, 96
        %v2412 = vpop.permute.xlu0 %2411
        %2415 = vrot.lane.b32.xlu0 %v2353, 64
        %v2416 = vpop.permute.xlu0 %2415
        %2417 = vrot.lane.b32.xlu0 %v2356, 64
        %v2418 = vpop.permute.xlu0 %2417
        %2421 = vrot.lane.b32.xlu0 %v2353, 32
        %v2422 = vpop.permute.xlu0 %2421
        %2423 = vrot.lane.b32.xlu0 %v2356, 32
        %v2424 = vpop.permute.xlu0 %2423
        %v2427 = vpack.c.bf16 %v2356, %v2353
        %v2428 = vpack.c.bf16 %v2412, %v2410
        %v2429 = vpack.c.bf16 %v2418, %v2416
        %v2430 = vpack.c.bf16 %v2424, %v2422
        %v2432 = vsel %vm1020, %v2379, 0
        %v2435 = vsel %vm1020, %v2403, 0
        %2437 = vmatprep.subr.bf16.mxu0 0
        %2438 = vmatpush1.bf16.xpose.msra.mxu0 %v2435
        %2439 = vmatprep.subr.bf16.mxu0 0
        %2440 = vmatpush1.bf16.xpose.msra.mxu0 0
        %2441 = vmatprep.subr.bf16.mxu0 0
        %2442 = vmatpush1.bf16.xpose.msra.mxu0 0
        %2443 = vmatprep.subr.bf16.mxu0 0
        %2444 = vmatpush1.bf16.xpose.msra.mxu0 0
        %2445 = vmatprep.subr.bf16.mxu0 0
        %2446 = vmatpush1.bf16.xpose.msra.mxu0 0
        %2447 = vmatprep.subr.bf16.mxu0 0
        %2448 = vmatpush1.bf16.xpose.msra.mxu0 0
        %2449 = vmatprep.subr.bf16.mxu0 0
        %2450 = vmatpush1.bf16.xpose.msra.mxu0 0
        %2451 = vmatprep.subr.bf16.mxu0 0
        %2452 = vmatpush1.bf16.xpose.msra.mxu0 0
        %2453 = vmatprep.subr.bf16.mxu0 0
        %2454 = vmatpush1.bf16.xpose.msra.mxu0 0
        %2455 = vmatprep.subr.bf16.mxu0 0
        %2456 = vmatpush1.bf16.xpose.msra.mxu0 0
        %2457 = vmatprep.subr.bf16.mxu0 0
        %2458 = vmatpush1.bf16.xpose.msra.mxu0 0
        %2459 = vmatprep.subr.bf16.mxu0 0
        %2460 = vmatpush1.bf16.xpose.msra.mxu0 0
        %2461 = vmatprep.subr.bf16.mxu0 0
        %2462 = vmatpush1.bf16.xpose.msra.mxu0 0
        %2463 = vmatprep.subr.bf16.mxu0 0
        %2464 = vmatpush1.bf16.xpose.msra.mxu0 0
        %2465 = vmatprep.subr.bf16.mxu0 0
        %2466 = vmatpush1.bf16.xpose.msra.mxu0 0
        %2467 = vmatprep.subr.bf16.mxu0 0
        %2468 = vmatpush1.bf16.xpose.msra.mxu0 0
        %2469 = vmatprep.mubr.bf16.mxu0 0
        %2470 = vmatmul.mubr.bf16.gmra.mrb[0].mxu0 %v2432
        %v2471 = vpop.f32.mrb[0].mxu0
        %v2472 = vadd.f32 0.0, %v2471
        %v2473 = vpop.f32.mrb[0].mxu0
        %v2474 = vpop.f32.mrb[0].mxu0
        %v2475 = vadd.f32 0.0, %v2474
        %v2476 = vpop.f32.mrb[0].mxu0
        %2477 = vdwg.mxu0
        %v2479 = vsel %vm1020, %v2380, 0
        %v2482 = vsel %vm1020, %v2404, 0
        %2484 = vmatprep.subr.bf16.mxu0 0
        %2485 = vmatpush1.bf16.xpose.msra.mxu0 %v2482
        %2486 = vmatprep.subr.bf16.mxu0 0
        %2487 = vmatpush1.bf16.xpose.msra.mxu0 0
        %2488 = vmatprep.subr.bf16.mxu0 0
        %2489 = vmatpush1.bf16.xpose.msra.mxu0 0
        %2490 = vmatprep.subr.bf16.mxu0 0
        %2491 = vmatpush1.bf16.xpose.msra.mxu0 0
        %2492 = vmatprep.subr.bf16.mxu0 0
        %2493 = vmatpush1.bf16.xpose.msra.mxu0 0
        %2494 = vmatprep.subr.bf16.mxu0 0
        %2495 = vmatpush1.bf16.xpose.msra.mxu0 0
        %2496 = vmatprep.subr.bf16.mxu0 0
        %2497 = vmatpush1.bf16.xpose.msra.mxu0 0
        %2498 = vmatprep.subr.bf16.mxu0 0
        %2499 = vmatpush1.bf16.xpose.msra.mxu0 0
        %2500 = vmatprep.subr.bf16.mxu0 0
        %2501 = vmatpush1.bf16.xpose.msra.mxu0 0
        %2502 = vmatprep.subr.bf16.mxu0 0
        %2503 = vmatpush1.bf16.xpose.msra.mxu0 0
        %2504 = vmatprep.subr.bf16.mxu0 0
        %2505 = vmatpush1.bf16.xpose.msra.mxu0 0
        %2506 = vmatprep.subr.bf16.mxu0 0
        %2507 = vmatpush1.bf16.xpose.msra.mxu0 0
        %2508 = vmatprep.subr.bf16.mxu0 0
        %2509 = vmatpush1.bf16.xpose.msra.mxu0 0
        %2510 = vmatprep.subr.bf16.mxu0 0
        %2511 = vmatpush1.bf16.xpose.msra.mxu0 0
        %2512 = vmatprep.subr.bf16.mxu0 0
        %2513 = vmatpush1.bf16.xpose.msra.mxu0 0
        %2514 = vmatprep.subr.bf16.mxu0 0
        %2515 = vmatpush1.bf16.xpose.msra.mxu0 0
        %2516 = vmatprep.mubr.bf16.mxu0 0
        %2517 = vmatmul.mubr.bf16.gmra.mrb[0].mxu0 %v2479
        %v2518 = vpop.f32.mrb[0].mxu0
        %v2519 = vadd.f32 0.0, %v2518
        %v2520 = vpop.f32.mrb[0].mxu0
        %v2521 = vpop.f32.mrb[0].mxu0
        %v2522 = vadd.f32 0.0, %v2521
        %v2523 = vpop.f32.mrb[0].mxu0
        %2524 = vdwg.mxu0
        %v2526 = vsel %vm1020, %v2381, 0
        %v2529 = vsel %vm1020, %v2405, 0
        %2531 = vmatprep.subr.bf16.mxu0 0
        %2532 = vmatpush1.bf16.xpose.msra.mxu0 %v2529
        %2533 = vmatprep.subr.bf16.mxu0 0
        %2534 = vmatpush1.bf16.xpose.msra.mxu0 0
        %2535 = vmatprep.subr.bf16.mxu0 0
        %2536 = vmatpush1.bf16.xpose.msra.mxu0 0
        %2537 = vmatprep.subr.bf16.mxu0 0
        %2538 = vmatpush1.bf16.xpose.msra.mxu0 0
        %2539 = vmatprep.subr.bf16.mxu0 0
        %2540 = vmatpush1.bf16.xpose.msra.mxu0 0
        %2541 = vmatprep.subr.bf16.mxu0 0
        %2542 = vmatpush1.bf16.xpose.msra.mxu0 0
        %2543 = vmatprep.subr.bf16.mxu0 0
        %2544 = vmatpush1.bf16.xpose.msra.mxu0 0
        %2545 = vmatprep.subr.bf16.mxu0 0
        %2546 = vmatpush1.bf16.xpose.msra.mxu0 0
        %2547 = vmatprep.subr.bf16.mxu0 0
        %2548 = vmatpush1.bf16.xpose.msra.mxu0 0
        %2549 = vmatprep.subr.bf16.mxu0 0
        %2550 = vmatpush1.bf16.xpose.msra.mxu0 0
        %2551 = vmatprep.subr.bf16.mxu0 0
        %2552 = vmatpush1.bf16.xpose.msra.mxu0 0
        %2553 = vmatprep.subr.bf16.mxu0 0
        %2554 = vmatpush1.bf16.xpose.msra.mxu0 0
        %2555 = vmatprep.subr.bf16.mxu0 0
        %2556 = vmatpush1.bf16.xpose.msra.mxu0 0
        %2557 = vmatprep.subr.bf16.mxu0 0
        %2558 = vmatpush1.bf16.xpose.msra.mxu0 0
        %2559 = vmatprep.subr.bf16.mxu0 0
        %2560 = vmatpush1.bf16.xpose.msra.mxu0 0
        %2561 = vmatprep.subr.bf16.mxu0 0
        %2562 = vmatpush1.bf16.xpose.msra.mxu0 0
        %2563 = vmatprep.mubr.bf16.mxu0 0
        %2564 = vmatmul.mubr.bf16.gmra.mrb[0].mxu0 %v2526
        %v2565 = vpop.f32.mrb[0].mxu0
        %v2566 = vadd.f32 0.0, %v2565
        %v2567 = vpop.f32.mrb[0].mxu0
        %v2568 = vpop.f32.mrb[0].mxu0
        %v2569 = vadd.f32 0.0, %v2568
        %v2570 = vpop.f32.mrb[0].mxu0
        %2571 = vdwg.mxu0
        %v2573 = vsel %vm1020, %v2382, 0
        %v2576 = vsel %vm1020, %v2406, 0
        %2578 = vmatprep.subr.bf16.mxu0 0
        %2579 = vmatpush1.bf16.xpose.msra.mxu0 %v2576
        %2580 = vmatprep.subr.bf16.mxu0 0
        %2581 = vmatpush1.bf16.xpose.msra.mxu0 0
        %2582 = vmatprep.subr.bf16.mxu0 0
        %2583 = vmatpush1.bf16.xpose.msra.mxu0 0
        %2584 = vmatprep.subr.bf16.mxu0 0
        %2585 = vmatpush1.bf16.xpose.msra.mxu0 0
        %2586 = vmatprep.subr.bf16.mxu0 0
        %2587 = vmatpush1.bf16.xpose.msra.mxu0 0
        %2588 = vmatprep.subr.bf16.mxu0 0
        %2589 = vmatpush1.bf16.xpose.msra.mxu0 0
        %2590 = vmatprep.subr.bf16.mxu0 0
        %2591 = vmatpush1.bf16.xpose.msra.mxu0 0
        %2592 = vmatprep.subr.bf16.mxu0 0
        %2593 = vmatpush1.bf16.xpose.msra.mxu0 0
        %2594 = vmatprep.subr.bf16.mxu0 0
        %2595 = vmatpush1.bf16.xpose.msra.mxu0 0
        %2596 = vmatprep.subr.bf16.mxu0 0
        %2597 = vmatpush1.bf16.xpose.msra.mxu0 0
        %2598 = vmatprep.subr.bf16.mxu0 0
        %2599 = vmatpush1.bf16.xpose.msra.mxu0 0
        %2600 = vmatprep.subr.bf16.mxu0 0
        %2601 = vmatpush1.bf16.xpose.msra.mxu0 0
        %2602 = vmatprep.subr.bf16.mxu0 0
        %2603 = vmatpush1.bf16.xpose.msra.mxu0 0
        %2604 = vmatprep.subr.bf16.mxu0 0
        %2605 = vmatpush1.bf16.xpose.msra.mxu0 0
        %2606 = vmatprep.subr.bf16.mxu0 0
        %2607 = vmatpush1.bf16.xpose.msra.mxu0 0
        %2608 = vmatprep.subr.bf16.mxu0 0
        %2609 = vmatpush1.bf16.xpose.msra.mxu0 0
        %2610 = vmatprep.mubr.bf16.mxu0 0
        %2611 = vmatmul.mubr.bf16.gmra.mrb[0].mxu0 %v2573
        %v2612 = vpop.f32.mrb[0].mxu0
        %v2613 = vadd.f32 0.0, %v2612
        %v2614 = vpop.f32.mrb[0].mxu0
        %v2615 = vpop.f32.mrb[0].mxu0
        %v2616 = vadd.f32 0.0, %v2615
        %v2617 = vpop.f32.mrb[0].mxu0
        %2618 = vdwg.mxu0
        %v2619 = vmul.f32 %v2472, 0.17677669
        %v2620 = vmul.f32 %v2475, 0.17677669
        %v2621 = vmul.f32 %v2519, 0.17677669
        %v2622 = vmul.f32 %v2522, 0.17677669
        %v2623 = vmul.f32 %v2566, 0.17677669
        %v2624 = vmul.f32 %v2569, 0.17677669
        %v2625 = vmul.f32 %v2613, 0.17677669
        %v2626 = vmul.f32 %v2616, 0.17677669
        %v2627 = vadd.f32 %v2619, %v1221
        %v2628 = vadd.f32 %v2620, %v1221
        %v2629 = vadd.f32 %v2621, %v1221
        %v2630 = vadd.f32 %v2622, %v1221
        %v2631 = vadd.f32 %v2623, %v1221
        %v2632 = vadd.f32 %v2624, %v1221
        %v2633 = vadd.f32 %v2625, %v1221
        %v2634 = vadd.f32 %v2626, %v1221
        %v2635 = vsel %vm1231, %v2627, -inf
        %2636 = vmax.xlane.f32.xlu0 %v2635
        %v2637 = vpop.xlane.xlu0 %2636
        %v2638 = vsel %vm1231, %v2628, -inf
        %2639 = vmax.xlane.f32.xlu0 %v2638
        %v2640 = vpop.xlane.xlu0 %2639
        %v2641 = vsel %vm1231, %v2629, -inf
        %2642 = vmax.xlane.f32.xlu0 %v2641
        %v2643 = vpop.xlane.xlu0 %2642
        %v2644 = vsel %vm1231, %v2630, -inf
        %2645 = vmax.xlane.f32.xlu0 %v2644
        %v2646 = vpop.xlane.xlu0 %2645
        %v2647 = vsel %vm1231, %v2631, -inf
        %2648 = vmax.xlane.f32.xlu0 %v2647
        %v2649 = vpop.xlane.xlu0 %2648
        %v2650 = vsel %vm1231, %v2632, -inf
        %2651 = vmax.xlane.f32.xlu0 %v2650
        %v2652 = vpop.xlane.xlu0 %2651
        %v2653 = vsel %vm1231, %v2633, -inf
        %2654 = vmax.xlane.f32.xlu0 %v2653
        %v2655 = vpop.xlane.xlu0 %2654
        %v2656 = vsel %vm1231, %v2634, -inf
        %2657 = vmax.xlane.f32.xlu0 %v2656
        %v2658 = vpop.xlane.xlu0 %2657
        %v2659 = vsub.f32 %v2627, %v2637
        %v2660 = vsub.f32 %v2628, %v2640
        %v2661 = vsub.f32 %v2629, %v2643
        %v2662 = vsub.f32 %v2630, %v2646
        %v2663 = vsub.f32 %v2631, %v2649
        %v2664 = vsub.f32 %v2632, %v2652
        %v2665 = vsub.f32 %v2633, %v2655
        %v2666 = vsub.f32 %v2634, %v2658
        %v2667 = vmul.f32 %v2659, 1.442695
        %v2668 = vpow.pop %v2667
        %v2669 = vmul.f32 %v2660, 1.442695
        %v2670 = vpow.pop %v2669
        %v2671 = vmul.f32 %v2661, 1.442695
        %v2672 = vpow.pop %v2671
        %v2673 = vmul.f32 %v2662, 1.442695
        %v2674 = vpow.pop %v2673
        %v2675 = vmul.f32 %v2663, 1.442695
        %v2676 = vpow.pop %v2675
        %v2677 = vmul.f32 %v2664, 1.442695
        %v2678 = vpow.pop %v2677
        %v2679 = vmul.f32 %v2665, 1.442695
        %v2680 = vpow.pop %v2679
        %v2681 = vmul.f32 %v2666, 1.442695
        %v2682 = vpow.pop %v2681
        %v2683 = vsel %vm1231, %v2668, 0.0
        %2684 = vadd.xlane.f32.xlu0 %v2683
        %v2685 = vpop.xlane.xlu0 %2684
        %v2686 = vsel %vm1231, %v2670, 0.0
        %2687 = vadd.xlane.f32.xlu0 %v2686
        %v2688 = vpop.xlane.xlu0 %2687
        %v2689 = vsel %vm1231, %v2672, 0.0
        %2690 = vadd.xlane.f32.xlu0 %v2689
        %v2691 = vpop.xlane.xlu0 %2690
        %v2692 = vsel %vm1231, %v2674, 0.0
        %2693 = vadd.xlane.f32.xlu0 %v2692
        %v2694 = vpop.xlane.xlu0 %2693
        %v2695 = vsel %vm1231, %v2676, 0.0
        %2696 = vadd.xlane.f32.xlu0 %v2695
        %v2697 = vpop.xlane.xlu0 %2696
        %v2698 = vsel %vm1231, %v2678, 0.0
        %2699 = vadd.xlane.f32.xlu0 %v2698
        %v2700 = vpop.xlane.xlu0 %2699
        %v2701 = vsel %vm1231, %v2680, 0.0
        %2702 = vadd.xlane.f32.xlu0 %v2701
        %v2703 = vpop.xlane.xlu0 %2702
        %v2704 = vsel %vm1231, %v2682, 0.0
        %2705 = vadd.xlane.f32.xlu0 %v2704
        %v2706 = vpop.xlane.xlu0 %2705
        %v2707 = vrcp.pop %v2685
        %v2708 = vrcp.pop %v2688
        %v2709 = vrcp.pop %v2691
        %v2710 = vrcp.pop %v2694
        %v2711 = vrcp.pop %v2697
        %v2712 = vrcp.pop %v2700
        %v2713 = vrcp.pop %v2703
        %v2714 = vrcp.pop %v2706
        %v2715 = vmul.f32 %v2668, %v2707
        %v2716 = vmul.f32 %v2670, %v2708
        %v2717 = vmul.f32 %v2672, %v2709
        %v2718 = vmul.f32 %v2674, %v2710
        %v2719 = vmul.f32 %v2676, %v2711
        %v2720 = vmul.f32 %v2678, %v2712
        %v2721 = vmul.f32 %v2680, %v2713
        %v2722 = vmul.f32 %v2682, %v2714
        %v2723 = vpack.c.bf16 %v2716, %v2715
        %v2724 = vpack.c.bf16 %v2718, %v2717
        %v2725 = vpack.c.bf16 %v2720, %v2719
        %v2726 = vpack.c.bf16 %v2722, %v2721
        %v2728 = vsel %vm1231, %v2723, 0
        %2730 = vmatprep.subr.bf16.mxu0 0
        %2731 = vmatpush1.bf16.msra.mxu0 %v2427
        %2732 = vmatprep.subr.bf16.mxu0 0
        %2733 = vmatpush1.bf16.msra.mxu0 0
        %2734 = vmatprep.subr.bf16.mxu0 0
        %2735 = vmatpush1.bf16.msra.mxu0 0
        %2736 = vmatprep.subr.bf16.mxu0 0
        %2737 = vmatpush1.bf16.msra.mxu0 0
        %2738 = vmatprep.subr.bf16.mxu0 0
        %2739 = vmatpush1.bf16.msra.mxu0 0
        %2740 = vmatprep.subr.bf16.mxu0 0
        %2741 = vmatpush1.bf16.msra.mxu0 0
        %2742 = vmatprep.subr.bf16.mxu0 0
        %2743 = vmatpush1.bf16.msra.mxu0 0
        %2744 = vmatprep.subr.bf16.mxu0 0
        %2745 = vmatpush1.bf16.msra.mxu0 0
        %2746 = vmatprep.subr.bf16.mxu0 0
        %2747 = vmatpush1.bf16.msra.mxu0 0
        %2748 = vmatprep.subr.bf16.mxu0 0
        %2749 = vmatpush1.bf16.msra.mxu0 0
        %2750 = vmatprep.subr.bf16.mxu0 0
        %2751 = vmatpush1.bf16.msra.mxu0 0
        %2752 = vmatprep.subr.bf16.mxu0 0
        %2753 = vmatpush1.bf16.msra.mxu0 0
        %2754 = vmatprep.subr.bf16.mxu0 0
        %2755 = vmatpush1.bf16.msra.mxu0 0
        %2756 = vmatprep.subr.bf16.mxu0 0
        %2757 = vmatpush1.bf16.msra.mxu0 0
        %2758 = vmatprep.subr.bf16.mxu0 0
        %2759 = vmatpush1.bf16.msra.mxu0 0
        %2760 = vmatprep.subr.bf16.mxu0 0
        %2761 = vmatpush1.bf16.msra.mxu0 0
        %2762 = vmatprep.mubr.bf16.mxu0 0
        %2763 = vmatmul.mubr.bf16.gmra.mrb[0].mxu0 %v2728
        %v2764 = vpop.f32.mrb[0].mxu0
        %v2765 = vadd.f32 0.0, %v2764
        %v2766 = vpop.f32.mrb[0].mxu0
        %v2767 = vpop.f32.mrb[0].mxu0
        %v2768 = vadd.f32 0.0, %v2767
        %v2769 = vpop.f32.mrb[0].mxu0
        %2770 = vdwg.mxu0
        %v2772 = vsel %vm1231, %v2724, 0
        %2774 = vmatprep.subr.bf16.mxu0 0
        %2775 = vmatpush1.bf16.msra.mxu0 %v2428
        %2776 = vmatprep.subr.bf16.mxu0 0
        %2777 = vmatpush1.bf16.msra.mxu0 0
        %2778 = vmatprep.subr.bf16.mxu0 0
        %2779 = vmatpush1.bf16.msra.mxu0 0
        %2780 = vmatprep.subr.bf16.mxu0 0
        %2781 = vmatpush1.bf16.msra.mxu0 0
        %2782 = vmatprep.subr.bf16.mxu0 0
        %2783 = vmatpush1.bf16.msra.mxu0 0
        %2784 = vmatprep.subr.bf16.mxu0 0
        %2785 = vmatpush1.bf16.msra.mxu0 0
        %2786 = vmatprep.subr.bf16.mxu0 0
        %2787 = vmatpush1.bf16.msra.mxu0 0
        %2788 = vmatprep.subr.bf16.mxu0 0
        %2789 = vmatpush1.bf16.msra.mxu0 0
        %2790 = vmatprep.subr.bf16.mxu0 0
        %2791 = vmatpush1.bf16.msra.mxu0 0
        %2792 = vmatprep.subr.bf16.mxu0 0
        %2793 = vmatpush1.bf16.msra.mxu0 0
        %2794 = vmatprep.subr.bf16.mxu0 0
        %2795 = vmatpush1.bf16.msra.mxu0 0
        %2796 = vmatprep.subr.bf16.mxu0 0
        %2797 = vmatpush1.bf16.msra.mxu0 0
        %2798 = vmatprep.subr.bf16.mxu0 0
        %2799 = vmatpush1.bf16.msra.mxu0 0
        %2800 = vmatprep.subr.bf16.mxu0 0
        %2801 = vmatpush1.bf16.msra.mxu0 0
        %2802 = vmatprep.subr.bf16.mxu0 0
        %2803 = vmatpush1.bf16.msra.mxu0 0
        %2804 = vmatprep.subr.bf16.mxu0 0
        %2805 = vmatpush1.bf16.msra.mxu0 0
        %2806 = vmatprep.mubr.bf16.mxu0 0
        %2807 = vmatmul.mubr.bf16.gmra.mrb[0].mxu0 %v2772
        %v2808 = vpop.f32.mrb[0].mxu0
        %v2809 = vadd.f32 0.0, %v2808
        %v2810 = vpop.f32.mrb[0].mxu0
        %v2811 = vpop.f32.mrb[0].mxu0
        %v2812 = vadd.f32 0.0, %v2811
        %v2813 = vpop.f32.mrb[0].mxu0
        %2814 = vdwg.mxu0
        %v2816 = vsel %vm1231, %v2725, 0
        %2818 = vmatprep.subr.bf16.mxu0 0
        %2819 = vmatpush1.bf16.msra.mxu0 %v2429
        %2820 = vmatprep.subr.bf16.mxu0 0
        %2821 = vmatpush1.bf16.msra.mxu0 0
        %2822 = vmatprep.subr.bf16.mxu0 0
        %2823 = vmatpush1.bf16.msra.mxu0 0
        %2824 = vmatprep.subr.bf16.mxu0 0
        %2825 = vmatpush1.bf16.msra.mxu0 0
        %2826 = vmatprep.subr.bf16.mxu0 0
        %2827 = vmatpush1.bf16.msra.mxu0 0
        %2828 = vmatprep.subr.bf16.mxu0 0
        %2829 = vmatpush1.bf16.msra.mxu0 0
        %2830 = vmatprep.subr.bf16.mxu0 0
        %2831 = vmatpush1.bf16.msra.mxu0 0
        %2832 = vmatprep.subr.bf16.mxu0 0
        %2833 = vmatpush1.bf16.msra.mxu0 0
        %2834 = vmatprep.subr.bf16.mxu0 0
        %2835 = vmatpush1.bf16.msra.mxu0 0
        %2836 = vmatprep.subr.bf16.mxu0 0
        %2837 = vmatpush1.bf16.msra.mxu0 0
        %2838 = vmatprep.subr.bf16.mxu0 0
        %2839 = vmatpush1.bf16.msra.mxu0 0
        %2840 = vmatprep.subr.bf16.mxu0 0
        %2841 = vmatpush1.bf16.msra.mxu0 0
        %2842 = vmatprep.subr.bf16.mxu0 0
        %2843 = vmatpush1.bf16.msra.mxu0 0
        %2844 = vmatprep.subr.bf16.mxu0 0
        %2845 = vmatpush1.bf16.msra.mxu0 0
        %2846 = vmatprep.subr.bf16.mxu0 0
        %2847 = vmatpush1.bf16.msra.mxu0 0
        %2848 = vmatprep.subr.bf16.mxu0 0
        %2849 = vmatpush1.bf16.msra.mxu0 0
        %2850 = vmatprep.mubr.bf16.mxu0 0
        %2851 = vmatmul.mubr.bf16.gmra.mrb[0].mxu0 %v2816
        %v2852 = vpop.f32.mrb[0].mxu0
        %v2853 = vadd.f32 0.0, %v2852
        %v2854 = vpop.f32.mrb[0].mxu0
        %v2855 = vpop.f32.mrb[0].mxu0
        %v2856 = vadd.f32 0.0, %v2855
        %v2857 = vpop.f32.mrb[0].mxu0
        %2858 = vdwg.mxu0
        %v2860 = vsel %vm1231, %v2726, 0
        %2862 = vmatprep.subr.bf16.mxu0 0
        %2863 = vmatpush1.bf16.msra.mxu0 %v2430
        %2864 = vmatprep.subr.bf16.mxu0 0
        %2865 = vmatpush1.bf16.msra.mxu0 0
        %2866 = vmatprep.subr.bf16.mxu0 0
        %2867 = vmatpush1.bf16.msra.mxu0 0
        %2868 = vmatprep.subr.bf16.mxu0 0
        %2869 = vmatpush1.bf16.msra.mxu0 0
        %2870 = vmatprep.subr.bf16.mxu0 0
        %2871 = vmatpush1.bf16.msra.mxu0 0
        %2872 = vmatprep.subr.bf16.mxu0 0
        %2873 = vmatpush1.bf16.msra.mxu0 0
        %2874 = vmatprep.subr.bf16.mxu0 0
        %2875 = vmatpush1.bf16.msra.mxu0 0
        %2876 = vmatprep.subr.bf16.mxu0 0
        %2877 = vmatpush1.bf16.msra.mxu0 0
        %2878 = vmatprep.subr.bf16.mxu0 0
        %2879 = vmatpush1.bf16.msra.mxu0 0
        %2880 = vmatprep.subr.bf16.mxu0 0
        %2881 = vmatpush1.bf16.msra.mxu0 0
        %2882 = vmatprep.subr.bf16.mxu0 0
        %2883 = vmatpush1.bf16.msra.mxu0 0
        %2884 = vmatprep.subr.bf16.mxu0 0
        %2885 = vmatpush1.bf16.msra.mxu0 0
        %2886 = vmatprep.subr.bf16.mxu0 0
        %2887 = vmatpush1.bf16.msra.mxu0 0
        %2888 = vmatprep.subr.bf16.mxu0 0
        %2889 = vmatpush1.bf16.msra.mxu0 0
        %2890 = vmatprep.subr.bf16.mxu0 0
        %2891 = vmatpush1.bf16.msra.mxu0 0
        %2892 = vmatprep.subr.bf16.mxu0 0
        %2893 = vmatpush1.bf16.msra.mxu0 0
        %2894 = vmatprep.mubr.bf16.mxu0 0
        %2895 = vmatmul.mubr.bf16.gmra.mrb[0].mxu0 %v2860
        %v2896 = vpop.f32.mrb[0].mxu0
        %v2897 = vadd.f32 0.0, %v2896
        %v2898 = vpop.f32.mrb[0].mxu0
        %v2899 = vpop.f32.mrb[0].mxu0
        %v2900 = vadd.f32 0.0, %v2899
        %v2901 = vpop.f32.mrb[0].mxu0
        %2902 = vdwg.mxu0
        %2905 = vrot.lane.b32.xlu0 %v2809, 32
        %v2906 = vpop.permute.xlu0 %2905
        %2907 = vrot.lane.b32.xlu0 %v2812, 32
        %v2908 = vpop.permute.xlu0 %2907
        %2913 = vrot.lane.b32.xlu0 %v2853, 64
        %v2914 = vpop.permute.xlu0 %2913
        %2915 = vrot.lane.b32.xlu0 %v2856, 64
        %v2916 = vpop.permute.xlu0 %2915
        %2921 = vrot.lane.b32.xlu0 %v2897, 96
        %v2922 = vpop.permute.xlu0 %2921
        %2923 = vrot.lane.b32.xlu0 %v2900, 96
        %v2924 = vpop.permute.xlu0 %2923
        %v2927 = vsel %vm1020, %v2765, %v2906
        %v2928 = vsel %vm1020, %v2768, %v2908
        %v2929 = vsel %vm1526, %v2927, %v2914
        %v2930 = vsel %vm1526, %v2928, %v2916
        %v2931 = vsel %vm1529, %v2929, %v2922
        %v2932 = vsel %vm1529, %v2930, %v2924
        %s2933 = scalar_lea.vmem %s6, 64
        %v2934 = vld [vmem:[%s2933] sm:$0xf]
        %v2935 = vld [vmem:[%s2933 + $0x4] sm:$0xf]
        %v2936 = vld [vmem:[%s2933 + $0x8] sm:$0xf]
        %v2937 = vld [vmem:[%s2933 + $0xc] sm:$0xf]
        %v2938 = vld [vmem:[%s2933 + $0x10] sm:$0xf]
        %v2939 = vld [vmem:[%s2933 + $0x14] sm:$0xf]
        %v2940 = vld [vmem:[%s2933 + $0x18] sm:$0xf]
        %v2941 = vld [vmem:[%s2933 + $0x1c] sm:$0xf]
        %v2942 = vld [vmem:[%s2933 + $0x20] sm:$0xf]
        %v2943 = vld [vmem:[%s2933 + $0x24] sm:$0xf]
        %v2944 = vld [vmem:[%s2933 + $0x28] sm:$0xf]
        %v2945 = vld [vmem:[%s2933 + $0x2c] sm:$0xf]
        %v2946 = vld [vmem:[%s2933 + $0x30] sm:$0xf]
        %v2947 = vld [vmem:[%s2933 + $0x34] sm:$0xf]
        %v2948 = vld [vmem:[%s2933 + $0x38] sm:$0xf]
        %v2949 = vld [vmem:[%s2933 + $0x3c] sm:$0xf]
        %v2950 = vpack.c.bf16 %v2932, %v2931
        %s2951 = scalar_lea.vmem %s7, 1
        %v2952 = vld [vmem:[%s2951] sm:$0x1]
        %v2954 = vlaneseq
        %v2955 = vshrl.u32 %v2954, 7
        %v2956 = vsub.s32 0, %v2955
        %v2957 = vrot.slane %v2952, %v2956
        %v2975 = vunpack.c.l.b16 %v2934
        %v2976 = vunpack.c.l.b16 %v2935
        %v2977 = vunpack.c.l.b16 %v2936
        %v2978 = vunpack.c.l.b16 %v2937
        %v2979 = vunpack.c.l.b16 %v2938
        %v2980 = vunpack.c.l.b16 %v2939
        %v2981 = vunpack.c.l.b16 %v2940
        %v2982 = vunpack.c.l.b16 %v2941
        %v2983 = vunpack.c.l.b16 %v2942
        %v2984 = vunpack.c.l.b16 %v2943
        %v2985 = vunpack.c.l.b16 %v2944
        %v2986 = vunpack.c.l.b16 %v2945
        %v2987 = vunpack.c.l.b16 %v2946
        %v2988 = vunpack.c.l.b16 %v2947
        %v2989 = vunpack.c.l.b16 %v2948
        %v2990 = vunpack.c.l.b16 %v2949
        %v2991 = vpack.c.b16 %v2976, %v2975
        %v2992 = vpack.c.b16 %v2978, %v2977
        %v2993 = vpack.c.b16 %v2980, %v2979
        %v2994 = vpack.c.b16 %v2982, %v2981
        %v2995 = vpack.c.b16 %v2984, %v2983
        %v2996 = vpack.c.b16 %v2986, %v2985
        %v2997 = vpack.c.b16 %v2988, %v2987
        %v2998 = vpack.c.b16 %v2990, %v2989
        %3007 = vmatprep.subr.bf16.mxu0 0
        %3008 = vmatpush1.bf16.msra.mxu0 %v2991
        %3009 = vmatprep.subr.bf16.mxu0 0
        %3010 = vmatpush1.bf16.msra.mxu0 %v2992
        %3011 = vmatprep.subr.bf16.mxu0 0
        %3012 = vmatpush1.bf16.msra.mxu0 %v2993
        %3013 = vmatprep.subr.bf16.mxu0 0
        %3014 = vmatpush1.bf16.msra.mxu0 %v2994
        %3015 = vmatprep.subr.bf16.mxu0 0
        %3016 = vmatpush1.bf16.msra.mxu0 %v2995
        %3017 = vmatprep.subr.bf16.mxu0 0
        %3018 = vmatpush1.bf16.msra.mxu0 %v2996
        %3019 = vmatprep.subr.bf16.mxu0 0
        %3020 = vmatpush1.bf16.msra.mxu0 %v2997
        %3021 = vmatprep.subr.bf16.mxu0 0
        %3022 = vmatpush1.bf16.msra.mxu0 %v2998
        %3023 = vmatprep.subr.bf16.mxu0 0
        %3024 = vmatpush1.bf16.msra.mxu0 0
        %3025 = vmatprep.subr.bf16.mxu0 0
        %3026 = vmatpush1.bf16.msra.mxu0 0
        %3027 = vmatprep.subr.bf16.mxu0 0
        %3028 = vmatpush1.bf16.msra.mxu0 0
        %3029 = vmatprep.subr.bf16.mxu0 0
        %3030 = vmatpush1.bf16.msra.mxu0 0
        %3031 = vmatprep.subr.bf16.mxu0 0
        %3032 = vmatpush1.bf16.msra.mxu0 0
        %3033 = vmatprep.subr.bf16.mxu0 0
        %3034 = vmatpush1.bf16.msra.mxu0 0
        %3035 = vmatprep.subr.bf16.mxu0 0
        %3036 = vmatpush1.bf16.msra.mxu0 0
        %3037 = vmatprep.subr.bf16.mxu0 0
        %3038 = vmatpush1.bf16.msra.mxu0 0
        %3039 = vmatprep.mubr.bf16.mxu0 0
        %3040 = vmatmul.mubr.bf16.gmra.mrb[0].mxu0 %v2950
        %v3041 = vpop.f32.mrb[0].mxu0
        %v3042 = vadd.f32 %v2957, %v3041
        %v3043 = vpop.f32.mrb[0].mxu0
        %v3044 = vpop.f32.mrb[0].mxu0
        %v3045 = vadd.f32 %v2957, %v3044
        %v3046 = vpop.f32.mrb[0].mxu0
        %3047 = vdwg.mxu0
        %v3048 = vadd.f32 %v3042, %v2093
        %v3049 = vadd.f32 %v3045, %v2094
        %s3050 = scalar_lea.vmem %s8, 1
        %v3051 = vld [vmem:[%s3050] sm:$0x1]
        %s3052 = scalar_lea.vmem %s9, 1
        %v3053 = vld [vmem:[%s3052] sm:$0x1]
        %3054 = vadd.xlane.f32.xlu0 %v3048
        %v3055 = vpop.xlane.xlu0 %3054
        %3056 = vadd.xlane.f32.xlu0 %v3049
        %v3057 = vpop.xlane.xlu0 %3056
        %v3058 = vmul.f32 %v3055, %v650
        %v3059 = vmul.f32 %v3057, %v650
        %v3060 = vsub.f32 %v3048, %v3058
        %v3061 = vsub.f32 %v3049, %v3059
        %v3062 = vmul.f32 %v3060, %v3060
        %v3063 = vmul.f32 %v3061, %v3061
        %3064 = vadd.xlane.f32.xlu0 %v3062
        %v3065 = vpop.xlane.xlu0 %3064
        %3066 = vadd.xlane.f32.xlu0 %v3063
        %v3067 = vpop.xlane.xlu0 %3066
        %v3068 = vmul.f32 %v3065, %v650
        %v3069 = vmul.f32 %v3067, %v650
        %v3070 = vadd.f32 %v3068, 1e-12
        %v3071 = vadd.f32 %v3069, 1e-12
        %v3072 = vrsqrt.pop %v3070
        %v3073 = vrsqrt.pop %v3071
        %v3074 = vmul.f32 %v3060, %v3072
        %v3075 = vmul.f32 %v3061, %v3073
        %v3077 = vlaneseq
        %v3078 = vshrl.u32 %v3077, 7
        %v3079 = vsub.s32 0, %v3078
        %v3080 = vrot.slane %v3051, %v3079
        %v3082 = vmul.f32 %v3074, %v3080
        %v3083 = vmul.f32 %v3075, %v3080
        %v3085 = vlaneseq
        %v3086 = vshrl.u32 %v3085, 7
        %v3087 = vsub.s32 0, %v3086
        %v3088 = vrot.slane %v3053, %v3087
        %v3090 = vadd.f32 %v3082, %v3088
        %v3091 = vadd.f32 %v3083, %v3088
        %s3092 = scalar_lea.vmem %s10, 128
        %v3093 = vld [vmem:[%s3092] sm:$0xff]
        %v3094 = vld [vmem:[%s3092 + $0x8] sm:$0xff]
        %v3095 = vld [vmem:[%s3092 + $0x10] sm:$0xff]
        %v3096 = vld [vmem:[%s3092 + $0x18] sm:$0xff]
        %v3097 = vld [vmem:[%s3092 + $0x20] sm:$0xff]
        %v3098 = vld [vmem:[%s3092 + $0x28] sm:$0xff]
        %v3099 = vld [vmem:[%s3092 + $0x30] sm:$0xff]
        %v3100 = vld [vmem:[%s3092 + $0x38] sm:$0xff]
        %v3101 = vld [vmem:[%s3092 + $0x40] sm:$0xff]
        %v3102 = vld [vmem:[%s3092 + $0x48] sm:$0xff]
        %v3103 = vld [vmem:[%s3092 + $0x50] sm:$0xff]
        %v3104 = vld [vmem:[%s3092 + $0x58] sm:$0xff]
        %v3105 = vld [vmem:[%s3092 + $0x60] sm:$0xff]
        %v3106 = vld [vmem:[%s3092 + $0x68] sm:$0xff]
        %v3107 = vld [vmem:[%s3092 + $0x70] sm:$0xff]
        %v3108 = vld [vmem:[%s3092 + $0x78] sm:$0xff]
        %v3109 = vpack.c.bf16 %v3091, %v3090
        %s3110 = scalar_lea.vmem %s11, 2
        %v3111 = vld [vmem:[%s3110] sm:$0x3]
        %v3113 = vlaneseq
        %v3114 = vshrl.u32 %v3113, 7
        %v3115 = vsub.s32 0, %v3114
        %v3116 = vrot.slane %v3111, %v3115
        %v3117 = vlaneseq
        %v3118 = vshrl.u32 %v3117, 7
        %v3119 = vsub.s32 1, %v3118
        %v3120 = vrot.slane %v3111, %v3119
        %v3139 = vunpack.c.l.b16 %v3093
        %v3140 = vunpack.c.h.b16 %v3093
        %v3141 = vunpack.c.l.b16 %v3094
        %v3142 = vunpack.c.h.b16 %v3094
        %v3143 = vunpack.c.l.b16 %v3095
        %v3144 = vunpack.c.h.b16 %v3095
        %v3145 = vunpack.c.l.b16 %v3096
        %v3146 = vunpack.c.h.b16 %v3096
        %v3147 = vunpack.c.l.b16 %v3097
        %v3148 = vunpack.c.h.b16 %v3097
        %v3149 = vunpack.c.l.b16 %v3098
        %v3150 = vunpack.c.h.b16 %v3098
        %v3151 = vunpack.c.l.b16 %v3099
        %v3152 = vunpack.c.h.b16 %v3099
        %v3153 = vunpack.c.l.b16 %v3100
        %v3154 = vunpack.c.h.b16 %v3100
        %v3155 = vunpack.c.l.b16 %v3101
        %v3156 = vunpack.c.h.b16 %v3101
        %v3157 = vunpack.c.l.b16 %v3102
        %v3158 = vunpack.c.h.b16 %v3102
        %v3159 = vunpack.c.l.b16 %v3103
        %v3160 = vunpack.c.h.b16 %v3103
        %v3161 = vunpack.c.l.b16 %v3104
        %v3162 = vunpack.c.h.b16 %v3104
        %v3163 = vunpack.c.l.b16 %v3105
        %v3164 = vunpack.c.h.b16 %v3105
        %v3165 = vunpack.c.l.b16 %v3106
        %v3166 = vunpack.c.h.b16 %v3106
        %v3167 = vunpack.c.l.b16 %v3107
        %v3168 = vunpack.c.h.b16 %v3107
        %v3169 = vunpack.c.l.b16 %v3108
        %v3170 = vunpack.c.h.b16 %v3108
        %v3171 = vpack.c.b16 %v3141, %v3139
        %v3172 = vpack.c.b16 %v3142, %v3140
        %v3173 = vpack.c.b16 %v3145, %v3143
        %v3174 = vpack.c.b16 %v3146, %v3144
        %v3175 = vpack.c.b16 %v3149, %v3147
        %v3176 = vpack.c.b16 %v3150, %v3148
        %v3177 = vpack.c.b16 %v3153, %v3151
        %v3178 = vpack.c.b16 %v3154, %v3152
        %v3179 = vpack.c.b16 %v3157, %v3155
        %v3180 = vpack.c.b16 %v3158, %v3156
        %v3181 = vpack.c.b16 %v3161, %v3159
        %v3182 = vpack.c.b16 %v3162, %v3160
        %v3183 = vpack.c.b16 %v3165, %v3163
        %v3184 = vpack.c.b16 %v3166, %v3164
        %v3185 = vpack.c.b16 %v3169, %v3167
        %v3186 = vpack.c.b16 %v3170, %v3168
        %3203 = vmatprep.subr.bf16.mxu0 %v3172
        %3204 = vmatpush1.bf16.msra.mxu0 %v3171
        %3205 = vmatprep.subr.bf16.mxu0 %v3174
        %3206 = vmatpush1.bf16.msra.mxu0 %v3173
        %3207 = vmatprep.subr.bf16.mxu0 %v3176
        %3208 = vmatpush1.bf16.msra.mxu0 %v3175
        %3209 = vmatprep.subr.bf16.mxu0 %v3178
        %3210 = vmatpush1.bf16.msra.mxu0 %v3177
        %3211 = vmatprep.subr.bf16.mxu0 %v3180
        %3212 = vmatpush1.bf16.msra.mxu0 %v3179
        %3213 = vmatprep.subr.bf16.mxu0 %v3182
        %3214 = vmatpush1.bf16.msra.mxu0 %v3181
        %3215 = vmatprep.subr.bf16.mxu0 %v3184
        %3216 = vmatpush1.bf16.msra.mxu0 %v3183
        %3217 = vmatprep.subr.bf16.mxu0 %v3186
        %3218 = vmatpush1.bf16.msra.mxu0 %v3185
        %3219 = vmatprep.subr.bf16.mxu0 0
        %3220 = vmatpush1.bf16.msra.mxu0 0
        %3221 = vmatprep.subr.bf16.mxu0 0
        %3222 = vmatpush1.bf16.msra.mxu0 0
        %3223 = vmatprep.subr.bf16.mxu0 0
        %3224 = vmatpush1.bf16.msra.mxu0 0
        %3225 = vmatprep.subr.bf16.mxu0 0
        %3226 = vmatpush1.bf16.msra.mxu0 0
        %3227 = vmatprep.subr.bf16.mxu0 0
        %3228 = vmatpush1.bf16.msra.mxu0 0
        %3229 = vmatprep.subr.bf16.mxu0 0
        %3230 = vmatpush1.bf16.msra.mxu0 0
        %3231 = vmatprep.subr.bf16.mxu0 0
        %3232 = vmatpush1.bf16.msra.mxu0 0
        %3233 = vmatprep.subr.bf16.mxu0 0
        %3234 = vmatpush1.bf16.msra.mxu0 0
        %3235 = vmatprep.mubr.bf16.mxu0 0
        %3236 = vmatmul.mubr.bf16.gmra.mrb[0].mxu0 %v3109
        %v3237 = vpop.f32.mrb[0].mxu0
        %v3238 = vadd.f32 %v3116, %v3237
        %v3239 = vpop.f32.mrb[0].mxu0
        %v3240 = vadd.f32 %v3120, %v3239
        %v3241 = vpop.f32.mrb[0].mxu0
        %v3242 = vadd.f32 %v3116, %v3241
        %v3243 = vpop.f32.mrb[0].mxu0
        %v3244 = vadd.f32 %v3120, %v3243
        %3245 = vdwg.mxu0
        %v3246 = vmul.f32 %v3238, %v3238
        %v3247 = vmul.f32 %v3240, %v3240
        %v3248 = vmul.f32 %v3242, %v3242
        %v3249 = vmul.f32 %v3244, %v3244
        %v3250 = vmul.f32 %v3238, %v3246
        %v3251 = vmul.f32 %v3240, %v3247
        %v3252 = vmul.f32 %v3242, %v3248
        %v3253 = vmul.f32 %v3244, %v3249
        %v3254 = vmul.f32 %v3250, 0.044715
        %v3255 = vmul.f32 %v3251, 0.044715
        %v3256 = vmul.f32 %v3252, 0.044715
        %v3257 = vmul.f32 %v3253, 0.044715
        %v3258 = vadd.f32 %v3238, %v3254
        %v3259 = vadd.f32 %v3240, %v3255
        %v3260 = vadd.f32 %v3242, %v3256
        %v3261 = vadd.f32 %v3244, %v3257
        %v3262 = vmul.f32 %v3258, 0.7978846
        %v3263 = vmul.f32 %v3259, 0.7978846
        %v3264 = vmul.f32 %v3260, 0.7978846
        %v3265 = vmul.f32 %v3261, 0.7978846
        %v3266 = vtanh.pop %v3262
        %v3267 = vtanh.pop %v3263
        %v3268 = vtanh.pop %v3264
        %v3269 = vtanh.pop %v3265
        %v3270 = vadd.f32 %v3266, 1.0
        %v3271 = vadd.f32 %v3267, 1.0
        %v3272 = vadd.f32 %v3268, 1.0
        %v3273 = vadd.f32 %v3269, 1.0
        %v3274 = vmul.f32 %v3270, 0.5
        %v3275 = vmul.f32 %v3271, 0.5
        %v3276 = vmul.f32 %v3272, 0.5
        %v3277 = vmul.f32 %v3273, 0.5
        %v3278 = vmul.f32 %v3238, %v3274
        %v3279 = vmul.f32 %v3240, %v3275
        %v3280 = vmul.f32 %v3242, %v3276
        %v3281 = vmul.f32 %v3244, %v3277
        %s3282 = scalar_lea.vmem %s12, 128
        %v3283 = vld [vmem:[%s3282] sm:$0xf]
        %v3284 = vld [vmem:[%s3282 + $0x4] sm:$0xf]
        %v3285 = vld [vmem:[%s3282 + $0x8] sm:$0xf]
        %v3286 = vld [vmem:[%s3282 + $0xc] sm:$0xf]
        %v3287 = vld [vmem:[%s3282 + $0x10] sm:$0xf]
        %v3288 = vld [vmem:[%s3282 + $0x14] sm:$0xf]
        %v3289 = vld [vmem:[%s3282 + $0x18] sm:$0xf]
        %v3290 = vld [vmem:[%s3282 + $0x1c] sm:$0xf]
        %v3291 = vld [vmem:[%s3282 + $0x20] sm:$0xf]
        %v3292 = vld [vmem:[%s3282 + $0x24] sm:$0xf]
        %v3293 = vld [vmem:[%s3282 + $0x28] sm:$0xf]
        %v3294 = vld [vmem:[%s3282 + $0x2c] sm:$0xf]
        %v3295 = vld [vmem:[%s3282 + $0x30] sm:$0xf]
        %v3296 = vld [vmem:[%s3282 + $0x34] sm:$0xf]
        %v3297 = vld [vmem:[%s3282 + $0x38] sm:$0xf]
        %v3298 = vld [vmem:[%s3282 + $0x3c] sm:$0xf]
        %v3299 = vld [vmem:[%s3282 + $0x40] sm:$0xf]
        %v3300 = vld [vmem:[%s3282 + $0x44] sm:$0xf]
        %v3301 = vld [vmem:[%s3282 + $0x48] sm:$0xf]
        %v3302 = vld [vmem:[%s3282 + $0x4c] sm:$0xf]
        %v3303 = vld [vmem:[%s3282 + $0x50] sm:$0xf]
        %v3304 = vld [vmem:[%s3282 + $0x54] sm:$0xf]
        %v3305 = vld [vmem:[%s3282 + $0x58] sm:$0xf]
        %v3306 = vld [vmem:[%s3282 + $0x5c] sm:$0xf]
        %v3307 = vld [vmem:[%s3282 + $0x60] sm:$0xf]
        %v3308 = vld [vmem:[%s3282 + $0x64] sm:$0xf]
        %v3309 = vld [vmem:[%s3282 + $0x68] sm:$0xf]
        %v3310 = vld [vmem:[%s3282 + $0x6c] sm:$0xf]
        %v3311 = vld [vmem:[%s3282 + $0x70] sm:$0xf]
        %v3312 = vld [vmem:[%s3282 + $0x74] sm:$0xf]
        %v3313 = vld [vmem:[%s3282 + $0x78] sm:$0xf]
        %v3314 = vld [vmem:[%s3282 + $0x7c] sm:$0xf]
        %v3315 = vpack.c.bf16 %v3280, %v3278
        %v3316 = vpack.c.bf16 %v3281, %v3279
        %s3317 = scalar_lea.vmem %s13, 1
        %v3318 = vld [vmem:[%s3317] sm:$0x1]
        %v3320 = vlaneseq
        %v3321 = vshrl.u32 %v3320, 7
        %v3322 = vsub.s32 0, %v3321
        %v3323 = vrot.slane %v3318, %v3322
        %v3357 = vunpack.c.l.b16 %v3283
        %v3358 = vunpack.c.l.b16 %v3284
        %v3359 = vunpack.c.l.b16 %v3285
        %v3360 = vunpack.c.l.b16 %v3286
        %v3361 = vunpack.c.l.b16 %v3287
        %v3362 = vunpack.c.l.b16 %v3288
        %v3363 = vunpack.c.l.b16 %v3289
        %v3364 = vunpack.c.l.b16 %v3290
        %v3365 = vunpack.c.l.b16 %v3291
        %v3366 = vunpack.c.l.b16 %v3292
        %v3367 = vunpack.c.l.b16 %v3293
        %v3368 = vunpack.c.l.b16 %v3294
        %v3369 = vunpack.c.l.b16 %v3295
        %v3370 = vunpack.c.l.b16 %v3296
        %v3371 = vunpack.c.l.b16 %v3297
        %v3372 = vunpack.c.l.b16 %v3298
        %v3373 = vunpack.c.l.b16 %v3299
        %v3374 = vunpack.c.l.b16 %v3300
        %v3375 = vunpack.c.l.b16 %v3301
        %v3376 = vunpack.c.l.b16 %v3302
        %v3377 = vunpack.c.l.b16 %v3303
        %v3378 = vunpack.c.l.b16 %v3304
        %v3379 = vunpack.c.l.b16 %v3305
        %v3380 = vunpack.c.l.b16 %v3306
        %v3381 = vunpack.c.l.b16 %v3307
        %v3382 = vunpack.c.l.b16 %v3308
        %v3383 = vunpack.c.l.b16 %v3309
        %v3384 = vunpack.c.l.b16 %v3310
        %v3385 = vunpack.c.l.b16 %v3311
        %v3386 = vunpack.c.l.b16 %v3312
        %v3387 = vunpack.c.l.b16 %v3313
        %v3388 = vunpack.c.l.b16 %v3314
        %v3389 = vpack.c.b16 %v3358, %v3357
        %v3390 = vpack.c.b16 %v3360, %v3359
        %v3391 = vpack.c.b16 %v3362, %v3361
        %v3392 = vpack.c.b16 %v3364, %v3363
        %v3393 = vpack.c.b16 %v3366, %v3365
        %v3394 = vpack.c.b16 %v3368, %v3367
        %v3395 = vpack.c.b16 %v3370, %v3369
        %v3396 = vpack.c.b16 %v3372, %v3371
        %v3397 = vpack.c.b16 %v3374, %v3373
        %v3398 = vpack.c.b16 %v3376, %v3375
        %v3399 = vpack.c.b16 %v3378, %v3377
        %v3400 = vpack.c.b16 %v3380, %v3379
        %v3401 = vpack.c.b16 %v3382, %v3381
        %v3402 = vpack.c.b16 %v3384, %v3383
        %v3403 = vpack.c.b16 %v3386, %v3385
        %v3404 = vpack.c.b16 %v3388, %v3387
        %3421 = vmatprep.subr.bf16.mxu0 0
        %3422 = vmatpush1.bf16.msra.mxu0 %v3389
        %3423 = vmatprep.subr.bf16.mxu0 0
        %3424 = vmatpush1.bf16.msra.mxu0 %v3390
        %3425 = vmatprep.subr.bf16.mxu0 0
        %3426 = vmatpush1.bf16.msra.mxu0 %v3391
        %3427 = vmatprep.subr.bf16.mxu0 0
        %3428 = vmatpush1.bf16.msra.mxu0 %v3392
        %3429 = vmatprep.subr.bf16.mxu0 0
        %3430 = vmatpush1.bf16.msra.mxu0 %v3393
        %3431 = vmatprep.subr.bf16.mxu0 0
        %3432 = vmatpush1.bf16.msra.mxu0 %v3394
        %3433 = vmatprep.subr.bf16.mxu0 0
        %3434 = vmatpush1.bf16.msra.mxu0 %v3395
        %3435 = vmatprep.subr.bf16.mxu0 0
        %3436 = vmatpush1.bf16.msra.mxu0 %v3396
        %3437 = vmatprep.subr.bf16.mxu0 0
        %3438 = vmatpush1.bf16.msra.mxu0 %v3397
        %3439 = vmatprep.subr.bf16.mxu0 0
        %3440 = vmatpush1.bf16.msra.mxu0 %v3398
        %3441 = vmatprep.subr.bf16.mxu0 0
        %3442 = vmatpush1.bf16.msra.mxu0 %v3399
        %3443 = vmatprep.subr.bf16.mxu0 0
        %3444 = vmatpush1.bf16.msra.mxu0 %v3400
        %3445 = vmatprep.subr.bf16.mxu0 0
        %3446 = vmatpush1.bf16.msra.mxu0 %v3401
        %3447 = vmatprep.subr.bf16.mxu0 0
        %3448 = vmatpush1.bf16.msra.mxu0 %v3402
        %3449 = vmatprep.subr.bf16.mxu0 0
        %3450 = vmatpush1.bf16.msra.mxu0 %v3403
        %3451 = vmatprep.subr.bf16.mxu0 0
        %3452 = vmatpush1.bf16.msra.mxu0 %v3404
        %3453 = vmatprep.mubr.bf16.mxu0 %v3316
        %3454 = vmatmul.mubr.bf16.gmra.mrb[0].mxu0 %v3315
        %v3455 = vpop.f32.mrb[0].mxu0
        %v3456 = vadd.f32 %v3323, %v3455
        %v3457 = vpop.f32.mrb[0].mxu0
        %v3458 = vpop.f32.mrb[0].mxu0
        %v3459 = vadd.f32 %v3323, %v3458
        %v3460 = vpop.f32.mrb[0].mxu0
        %3461 = vdwg.mxu0
        %v3462 = vadd.f32 %v3456, %v3090
        %v3463 = vadd.f32 %v3459, %v3091
        %s3464 = scalar_lea.vmem %s14, 1
        %v3465 = vld [vmem:[%s3464] sm:$0x1]
        %s3466 = scalar_lea.vmem %s15, 1
        %v3467 = vld [vmem:[%s3466] sm:$0x1]
        %3468 = vadd.xlane.f32.xlu0 %v3462
        %v3469 = vpop.xlane.xlu0 %3468
        %3470 = vadd.xlane.f32.xlu0 %v3463
        %v3471 = vpop.xlane.xlu0 %3470
        %v3472 = vmul.f32 %v3469, %v650
        %v3473 = vmul.f32 %v3471, %v650
        %v3474 = vsub.f32 %v3462, %v3472
        %v3475 = vsub.f32 %v3463, %v3473
        %v3476 = vmul.f32 %v3474, %v3474
        %v3477 = vmul.f32 %v3475, %v3475
        %3478 = vadd.xlane.f32.xlu0 %v3476
        %v3479 = vpop.xlane.xlu0 %3478
        %3480 = vadd.xlane.f32.xlu0 %v3477
        %v3481 = vpop.xlane.xlu0 %3480
        %v3482 = vmul.f32 %v3479, %v650
        %v3483 = vmul.f32 %v3481, %v650
        %v3484 = vadd.f32 %v3482, 1e-12
        %v3485 = vadd.f32 %v3483, 1e-12
        %v3486 = vrsqrt.pop %v3484
        %v3487 = vrsqrt.pop %v3485
        %v3488 = vmul.f32 %v3474, %v3486
        %v3489 = vmul.f32 %v3475, %v3487
        %v3491 = vlaneseq
        %v3492 = vshrl.u32 %v3491, 7
        %v3493 = vsub.s32 0, %v3492
        %v3494 = vrot.slane %v3465, %v3493
        %v3496 = vmul.f32 %v3488, %v3494
        %v3497 = vmul.f32 %v3489, %v3494
        %v3499 = vlaneseq
        %v3500 = vshrl.u32 %v3499, 7
        %v3501 = vsub.s32 0, %v3500
        %v3502 = vrot.slane %v3467, %v3501
        %v3504 = vadd.f32 %v3496, %v3502
        %v3505 = vadd.f32 %v3497, %v3502
        %v3506 = vadd.f32 %v3504, %v3505
        %v3507 = vrot.slane %v3506, 4
        %v3508 = vadd.f32 %v3506, %v3507
        %v3509 = vrot.slane %v3508, 2
        %v3510 = vadd.f32 %v3508, %v3509
        %v3511 = vrot.slane %v3510, 1
        %v3512 = vadd.f32 %v3510, %v3511
        %v3513 = vrcp.pop 16.0
        %v3514 = vmul.f32 %v3512, %v3513
        %v3515 = vld [vmem:[%s16] sm:$0xf]
        %v3516 = vld [vmem:[%s16 + $0x4] sm:$0xf]
        %v3517 = vld [vmem:[%s16 + $0x8] sm:$0xf]
        %v3518 = vld [vmem:[%s16 + $0xc] sm:$0xf]
        %v3519 = vld [vmem:[%s16 + $0x10] sm:$0xf]
        %v3520 = vld [vmem:[%s16 + $0x14] sm:$0xf]
        %v3521 = vld [vmem:[%s16 + $0x18] sm:$0xf]
        %v3522 = vld [vmem:[%s16 + $0x1c] sm:$0xf]
        %v3523 = vld [vmem:[%s16 + $0x20] sm:$0xf]
        %v3524 = vld [vmem:[%s16 + $0x24] sm:$0xf]
        %v3525 = vld [vmem:[%s16 + $0x28] sm:$0xf]
        %v3526 = vld [vmem:[%s16 + $0x2c] sm:$0xf]
        %v3527 = vld [vmem:[%s16 + $0x30] sm:$0xf]
        %v3528 = vld [vmem:[%s16 + $0x34] sm:$0xf]
        %v3529 = vld [vmem:[%s16 + $0x38] sm:$0xf]
        %v3530 = vld [vmem:[%s16 + $0x3c] sm:$0xf]
        %v3531 = vpack.c.bf16 %v3514, %v3514
        %v3532 = vld [vmem:[%s17] sm:$0x1]
        %v3549 = vunpack.c.l.b16 %v3515
        %v3550 = vunpack.c.l.b16 %v3516
        %v3551 = vunpack.c.l.b16 %v3517
        %v3552 = vunpack.c.l.b16 %v3518
        %v3553 = vunpack.c.l.b16 %v3519
        %v3554 = vunpack.c.l.b16 %v3520
        %v3555 = vunpack.c.l.b16 %v3521
        %v3556 = vunpack.c.l.b16 %v3522
        %v3557 = vunpack.c.l.b16 %v3523
        %v3558 = vunpack.c.l.b16 %v3524
        %v3559 = vunpack.c.l.b16 %v3525
        %v3560 = vunpack.c.l.b16 %v3526
        %v3561 = vunpack.c.l.b16 %v3527
        %v3562 = vunpack.c.l.b16 %v3528
        %v3563 = vunpack.c.l.b16 %v3529
        %v3564 = vunpack.c.l.b16 %v3530
        %v3565 = vpack.c.b16 %v3550, %v3549
        %v3566 = vpack.c.b16 %v3552, %v3551
        %v3567 = vpack.c.b16 %v3554, %v3553
        %v3568 = vpack.c.b16 %v3556, %v3555
        %v3569 = vpack.c.b16 %v3558, %v3557
        %v3570 = vpack.c.b16 %v3560, %v3559
        %v3571 = vpack.c.b16 %v3562, %v3561
        %v3572 = vpack.c.b16 %v3564, %v3563
        %3581 = vmatprep.subr.bf16.mxu0 0
        %3582 = vmatpush1.bf16.msra.mxu0 %v3565
        %3583 = vmatprep.subr.bf16.mxu0 0
        %3584 = vmatpush1.bf16.msra.mxu0 %v3566
        %3585 = vmatprep.subr.bf16.mxu0 0
        %3586 = vmatpush1.bf16.msra.mxu0 %v3567
        %3587 = vmatprep.subr.bf16.mxu0 0
        %3588 = vmatpush1.bf16.msra.mxu0 %v3568
        %3589 = vmatprep.subr.bf16.mxu0 0
        %3590 = vmatpush1.bf16.msra.mxu0 %v3569
        %3591 = vmatprep.subr.bf16.mxu0 0
        %3592 = vmatpush1.bf16.msra.mxu0 %v3570
        %3593 = vmatprep.subr.bf16.mxu0 0
        %3594 = vmatpush1.bf16.msra.mxu0 %v3571
        %3595 = vmatprep.subr.bf16.mxu0 0
        %3596 = vmatpush1.bf16.msra.mxu0 %v3572
        %3597 = vmatprep.subr.bf16.mxu0 0
        %3598 = vmatpush1.bf16.msra.mxu0 0
        %3599 = vmatprep.subr.bf16.mxu0 0
        %3600 = vmatpush1.bf16.msra.mxu0 0
        %3601 = vmatprep.subr.bf16.mxu0 0
        %3602 = vmatpush1.bf16.msra.mxu0 0
        %3603 = vmatprep.subr.bf16.mxu0 0
        %3604 = vmatpush1.bf16.msra.mxu0 0
        %3605 = vmatprep.subr.bf16.mxu0 0
        %3606 = vmatpush1.bf16.msra.mxu0 0
        %3607 = vmatprep.subr.bf16.mxu0 0
        %3608 = vmatpush1.bf16.msra.mxu0 0
        %3609 = vmatprep.subr.bf16.mxu0 0
        %3610 = vmatpush1.bf16.msra.mxu0 0
        %3611 = vmatprep.subr.bf16.mxu0 0
        %3612 = vmatpush1.bf16.msra.mxu0 0
        %3613 = vmatprep.mubr.bf16.mxu0 0
        %3614 = vmatmul.mubr.bf16.gmra.mrb[0].mxu0 %v3531
        %v3615 = vpop.f32.mrb[0].mxu0
        %v3616 = vadd.f32 %v3532, %v3615
        %v3617 = vpop.f32.mrb[0].mxu0
        %v3618 = vpop.f32.mrb[0].mxu0
        %v3619 = vpop.f32.mrb[0].mxu0
        %3620 = vdwg.mxu0
        %v3621 = vmax.f32 %v3616, 0.0
        %v3622 = vld [vmem:[%s18] sm:$0xf]
        %v3623 = vld [vmem:[%s18 + $0x4] sm:$0xf]
        %v3624 = vld [vmem:[%s18 + $0x8] sm:$0xf]
        %v3625 = vld [vmem:[%s18 + $0xc] sm:$0xf]
        %v3626 = vld [vmem:[%s18 + $0x10] sm:$0xf]
        %v3627 = vld [vmem:[%s18 + $0x14] sm:$0xf]
        %v3628 = vld [vmem:[%s18 + $0x18] sm:$0xf]
        %v3629 = vld [vmem:[%s18 + $0x1c] sm:$0xf]
        %v3630 = vld [vmem:[%s18 + $0x20] sm:$0xf]
        %v3631 = vld [vmem:[%s18 + $0x24] sm:$0xf]
        %v3632 = vld [vmem:[%s18 + $0x28] sm:$0xf]
        %v3633 = vld [vmem:[%s18 + $0x2c] sm:$0xf]
        %v3634 = vld [vmem:[%s18 + $0x30] sm:$0xf]
        %v3635 = vld [vmem:[%s18 + $0x34] sm:$0xf]
        %v3636 = vld [vmem:[%s18 + $0x38] sm:$0xf]
        %v3637 = vld [vmem:[%s18 + $0x3c] sm:$0xf]
        %v3638 = vpack.c.bf16 %v3621, %v3621
        %v3639 = vld [vmem:[%s19] sm:$0x1]
        %v3656 = vunpack.c.l.b16 %v3622
        %v3657 = vunpack.c.l.b16 %v3623
        %v3658 = vunpack.c.l.b16 %v3624
        %v3659 = vunpack.c.l.b16 %v3625
        %v3660 = vunpack.c.l.b16 %v3626
        %v3661 = vunpack.c.l.b16 %v3627
        %v3662 = vunpack.c.l.b16 %v3628
        %v3663 = vunpack.c.l.b16 %v3629
        %v3664 = vunpack.c.l.b16 %v3630
        %v3665 = vunpack.c.l.b16 %v3631
        %v3666 = vunpack.c.l.b16 %v3632
        %v3667 = vunpack.c.l.b16 %v3633
        %v3668 = vunpack.c.l.b16 %v3634
        %v3669 = vunpack.c.l.b16 %v3635
        %v3670 = vunpack.c.l.b16 %v3636
        %v3671 = vunpack.c.l.b16 %v3637
        %v3672 = vpack.c.b16 %v3657, %v3656
        %v3673 = vpack.c.b16 %v3659, %v3658
        %v3674 = vpack.c.b16 %v3661, %v3660
        %v3675 = vpack.c.b16 %v3663, %v3662
        %v3676 = vpack.c.b16 %v3665, %v3664
        %v3677 = vpack.c.b16 %v3667, %v3666
        %v3678 = vpack.c.b16 %v3669, %v3668
        %v3679 = vpack.c.b16 %v3671, %v3670
        %3688 = vmatprep.subr.bf16.mxu0 0
        %3689 = vmatpush1.bf16.msra.mxu0 %v3672
        %3690 = vmatprep.subr.bf16.mxu0 0
        %3691 = vmatpush1.bf16.msra.mxu0 %v3673
        %3692 = vmatprep.subr.bf16.mxu0 0
        %3693 = vmatpush1.bf16.msra.mxu0 %v3674
        %3694 = vmatprep.subr.bf16.mxu0 0
        %3695 = vmatpush1.bf16.msra.mxu0 %v3675
        %3696 = vmatprep.subr.bf16.mxu0 0
        %3697 = vmatpush1.bf16.msra.mxu0 %v3676
        %3698 = vmatprep.subr.bf16.mxu0 0
        %3699 = vmatpush1.bf16.msra.mxu0 %v3677
        %3700 = vmatprep.subr.bf16.mxu0 0
        %3701 = vmatpush1.bf16.msra.mxu0 %v3678
        %3702 = vmatprep.subr.bf16.mxu0 0
        %3703 = vmatpush1.bf16.msra.mxu0 %v3679
        %3704 = vmatprep.subr.bf16.mxu0 0
        %3705 = vmatpush1.bf16.msra.mxu0 0
        %3706 = vmatprep.subr.bf16.mxu0 0
        %3707 = vmatpush1.bf16.msra.mxu0 0
        %3708 = vmatprep.subr.bf16.mxu0 0
        %3709 = vmatpush1.bf16.msra.mxu0 0
        %3710 = vmatprep.subr.bf16.mxu0 0
        %3711 = vmatpush1.bf16.msra.mxu0 0
        %3712 = vmatprep.subr.bf16.mxu0 0
        %3713 = vmatpush1.bf16.msra.mxu0 0
        %3714 = vmatprep.subr.bf16.mxu0 0
        %3715 = vmatpush1.bf16.msra.mxu0 0
        %3716 = vmatprep.subr.bf16.mxu0 0
        %3717 = vmatpush1.bf16.msra.mxu0 0
        %3718 = vmatprep.subr.bf16.mxu0 0
        %3719 = vmatpush1.bf16.msra.mxu0 0
        %3720 = vmatprep.mubr.bf16.mxu0 0
        %3721 = vmatmul.mubr.bf16.gmra.mrb[0].mxu0 %v3638
        %v3722 = vpop.f32.mrb[0].mxu0
        %v3723 = vadd.f32 %v3639, %v3722
        %v3724 = vpop.f32.mrb[0].mxu0
        %v3725 = vpop.f32.mrb[0].mxu0
        %v3726 = vpop.f32.mrb[0].mxu0
        %3727 = vdwg.mxu0
        %vm3728 = vcmask 188416
        %3729 = vst.msk [vmem:[%s632] sm:$0x1] %vm3728, %v3723
        %s3730 = sand.u32 %s472, 1
        %s3731 = scalar_lea.sflag [#allocation3], %s3730
        %s3732 = sand.u32 %s472, 1
        %s3733 = scalar_lea.vmem [#allocation2], %s3732
        // Predicated region
        $region101: #{custom_bert_classifier_forward.1} parent=99 // pred_check
          %p3734 = pneg %p482
        $region102: #{custom_bert_classifier_forward.1} parent=99 // pred_check_branch
          %3736 = sbr.rel (%p3734) target = $region104
        $region103: #{custom_bert_classifier_forward.1} parent=99 // pred_region
          %s3738 = ssub.s32 16, 16
          %3739 = vsyncadd %s3731, %s3738
          %s3740 = smul.addr %s34, 16
          %s3741 = scalar_lea.hbm %s20, %s3740
          %s3743 = sshll.u32 %s3733, 4
          %s3744 = int_to_ptr.vmem [resolvable:$true] %s3743
          %3746 = dma.vmem_to_hbm [thread:$0]  %s3744, 16, %s3741, %s3731
        $region104: #{custom_bert_classifier_forward.1} parent=99 // pred_fallthru
          _
      $region100: #{custom_bert_classifier_forward.1} parent=5 // pred_fallthru
        _
      %p3747 = scmp.le.s32.totalorder 2, %s29
      // Predicated region
      $region105: #{custom_bert_classifier_forward.1} parent=5 // pred_check
        %p3748 = pneg %p3747
      $region106: #{custom_bert_classifier_forward.1} parent=5 // pred_check_branch
        %3750 = sbr.rel (%p3748) target = $region108
      $region107: #{custom_bert_classifier_forward.1} parent=5 // pred_region
        %s3751 = ssub.s32 %s29, 2
        // Predicated region
        $region109: #{custom_bert_classifier_forward.1} parent=107 // pred_check
          %p3752 = pneg %p488
        $region110: #{custom_bert_classifier_forward.1} parent=107 // pred_check_branch
          %3754 = sbr.rel (%p3752) target = $region112
        $region111: #{custom_bert_classifier_forward.1} parent=107 // pred_region
          %s3755 = sand.u32 %s473, 1
          %s3756 = scalar_lea.sflag [#allocation3], %s3755
          %s3757 = sand.u32 %s473, 1
          %s3758 = scalar_lea.vmem [#allocation2], %s3757
          %3759 = dma.done %s3756, 16
        $region112: #{custom_bert_classifier_forward.1} parent=107 // pred_fallthru
          _
      $region108: #{custom_bert_classifier_forward.1} parent=5 // pred_fallthru
        _
    $region6: #{custom_bert_classifier_forward.1} parent=1 // loop_footer
      %s33 = sadd.s32 1, %s29
    $region7: #{custom_bert_classifier_forward.1} parent=1 // loop_footer_branch
      %28 = sbr.rel target = $region3
    $region8: #{custom_bert_classifier_forward.1} parent=1 // loop_exit
      _
    %3760 = vsyncpa [#allocation3], 1
    %s3761 = scalar_lea.sflag [#allocation3], 1
    %3762 = vsyncpa %s3761, 1

</llo_original>
